<compile_context>
chip_gen: v6e
topology: v6e:2x2x1
jax: 0.10.0
libtpu: 0.0.40
codegen_flags: <defaults>
</compile_context>

<pallas_src>
import functools

import jax
import jax.numpy as jnp
from jax.experimental import pallas as pl
from jax.experimental.pallas import tpu as pltpu


# ---------------------------------------------------------------------------
# Kernel 1: point MLP (conv1/2/3 with BN folded) + running max over point tiles
# Shared by the STN3d branch (relu_last=True) and the encoder branch
# (relu_last=False, per-batch folded conv1 weight).
# ---------------------------------------------------------------------------
def _point_mlp_kernel(x_ref, w1_ref, t1_ref, w2_ref, t2_ref, w3_ref, t3_ref,
                      o_ref, acc_ref, *, relu_last, w1_per_batch):
    n = pl.program_id(1)

    @pl.when(n == 0)
    def _():
        acc_ref[...] = jnp.full(acc_ref.shape, -jnp.inf, acc_ref.dtype)

    x = x_ref[0].astype(jnp.bfloat16)                                  # (C, TN)
    w1 = w1_ref[0] if w1_per_batch else w1_ref[...]                    # (64, C)

    h = jnp.dot(w1, x, preferred_element_type=jnp.float32)             # (64, TN)
    h = jnp.maximum(h + t1_ref[...], 0.0).astype(jnp.bfloat16)
    h = jnp.dot(w2_ref[...], h, preferred_element_type=jnp.float32)    # (128, TN)
    h = jnp.maximum(h + t2_ref[...], 0.0).astype(jnp.bfloat16)

    tn = x_ref.shape[-1]
    n_lane = tn // 128
    n_ch = acc_ref.shape[0]                                            # 1024
    ch = 256                                                           # conv3 chunk
    for c in range(n_ch // ch):
        lo, hi = c * ch, (c + 1) * ch
        # conv3 chunk: (256, 128) @ (128, TN) -> (256, TN) f32 (no bias here).
        hc = jnp.dot(w3_ref[lo:hi, :], h, preferred_element_type=jnp.float32)
        # VPU-only partial max down to 128 lanes (vreg-aligned value slices).
        m = hc[:, 0:128]
        for j in range(1, n_lane):
            m = jnp.maximum(m, hc[:, j * 128:(j + 1) * 128])
        acc_ref[lo:hi, :] = jnp.maximum(acc_ref[lo:hi, :], m)

    @pl.when(n == pl.num_programs(1) - 1)
    def _():
        # Deferred cross-lane reduce + hoisted conv3 bias (and ReLU for STN),
        # once per batch item.  Exact: max/+bias/relu are monotone per channel.
        pooled = jnp.max(acc_ref[...], axis=-1, keepdims=True) + t3_ref[...]
        if relu_last:
            pooled = jnp.maximum(pooled, 0.0)
        o_ref[0] = pooled                                              # (1024, 1)


# ---------------------------------------------------------------------------
# Kernel 2: STN3d FC head (fc1/fc2 + folded BN + ReLU, fc3) + identity add
# ---------------------------------------------------------------------------
def _fc_head_kernel(x_ref, w4, t4, w5, t5, w6, b6, iden, o_ref):
    h = jnp.dot(x_ref[...].astype(jnp.bfloat16), w4[...],
                preferred_element_type=jnp.float32)
    h = jnp.maximum(h + t4[...], 0.0)
    h = jnp.dot(h.astype(jnp.bfloat16), w5[...],
                preferred_element_type=jnp.float32)
    h = jnp.maximum(h + t5[...], 0.0)
    h = jnp.dot(h.astype(jnp.bfloat16), w6[...],
                preferred_element_type=jnp.float32)
    o_ref[...] = h + b6[...] + iden[...]


# ---------------------------------------------------------------------------
# Wrappers
# ---------------------------------------------------------------------------
def _pad_points(x):
    """Pad the point dim to a multiple of 128 by duplicating the last point
    (duplicates cannot change the max-pool result)."""
    n = x.shape[-1]
    n_pad = ((n + 127) // 128) * 128
    if n_pad != n:
        x = jnp.pad(x, ((0, 0), (0, 0), (0, n_pad - n)), mode="edge")
    return x


def _choose_tile(n):
    # TN=1024 is a portable cap: with conv3 chunked to 256 rows the largest
    # live f32 intermediate is 1 MiB, fitting v5e's 16 MiB scoped VMEM and
    # leaving headroom on v7x's 64 MiB physical VMEM.
    for tn in (1024, 512, 256, 128):
        if n % tn == 0:
            return tn
    raise ValueError("point dim must be a multiple of 128 after padding")


def _fold_trans_into_w1(w1_bf16, trans):
    """conv1(trans^T @ x) == (w1 @ trans^T) @ x : fold the 3x3 transform into
    conv1's weight per batch -> (B, 64, 3) bf16."""
    w1_eff = jnp.einsum("oj,bij->boi", w1_bf16.astype(jnp.float32), trans)
    return w1_eff.astype(jnp.bfloat16)


def _point_mlp_max(x, q, relu_last, w1_eff=None):
    """x: (B, C, N) f32 (NCL).  Returns the max-pooled (B, 1024) f32 feature
    (with conv3 bias and, if relu_last, ReLU already applied)."""
    x = _pad_points(x)
    B, C, N = x.shape
    TN = _choose_tile(N)
    NT = N // TN

    if w1_eff is None:
        w1 = q["w1"]                                                  # (64, C)
        w1_spec = pl.BlockSpec((64, C), lambda b, n: (0, 0))
        per_batch = False
    else:
        w1 = w1_eff                                                   # (B, 64, C)
        w1_spec = pl.BlockSpec((1, 64, C), lambda b, n: (b, 0, 0))
        per_batch = True

    in_specs = [
        pl.BlockSpec((1, C, TN), lambda b, n: (b, 0, n)),
        w1_spec,
        pl.BlockSpec((64, 1), lambda b, n: (0, 0)),
        pl.BlockSpec((128, 64), lambda b, n: (0, 0)),
        pl.BlockSpec((128, 1), lambda b, n: (0, 0)),
        pl.BlockSpec((1024, 128), lambda b, n: (0, 0)),
        pl.BlockSpec((1024, 1), lambda b, n: (0, 0)),
    ]

    flops = 2 * B * N * (C * 64 + 64 * 128 + 128 * 1024)
    bytes_accessed = (x.size * 4 + B * 1024 * 4
                      + 2 * (64 * C * (B if per_batch else 1)
                             + 128 * 64 + 1024 * 128)
                      + 4 * (64 + 128 + 1024))

    kernel = functools.partial(_point_mlp_kernel, relu_last=relu_last,
                               w1_per_batch=per_batch)

    pooled = pl.pallas_call(
        kernel,
        out_shape=jax.ShapeDtypeStruct((B, 1024, 1), jnp.float32),
        grid=(B, NT),
        in_specs=in_specs,
        out_specs=pl.BlockSpec((1, 1024, 1), lambda b, n: (b, 0, 0)),
        scratch_shapes=[pltpu.VMEM((1024, 128), jnp.float32)],
        compiler_params=pltpu.CompilerParams(
            dimension_semantics=("parallel", "arbitrary")),
        cost_estimate=pl.CostEstimate(
            flops=flops, transcendentals=0, bytes_accessed=bytes_accessed),
    )(x, w1, q["t1"], q["w2"], q["t2"], q["w3"], q["t3"])
    return pooled.reshape(B, 1024)


def stn3d_forward(x, p):
    """x: (B, channel, N) f32 NCL.  Returns the (B, 3, 3) input transform."""
    B = x.shape[0]
    pooled = _point_mlp_max(x, p, relu_last=True)                      # (B, 1024)
    out9 = pl.pallas_call(
        _fc_head_kernel,
        out_shape=jax.ShapeDtypeStruct((B, 9), jnp.float32),
    )(pooled, p["w4"], p["t4"], p["w5"], p["t5"], p["w6"], p["b6"], p["iden"])
    return out9.reshape(B, 3, 3)


def pointnet_encoder_forward(x, params):
    """PointNetEncoder.forward (global_feat=True, feature_transform=False).

    x: (B, 3, N) f32.  Returns (global_feat (B, 1024), trans (B, 3, 3), None).
    """
    B, D, N = x.shape
    assert D == 3, "D > 3 (extra point features) not implemented"
    trans = stn3d_forward(x, params["stn"])                            # (B, 3, 3)
    w1_eff = _fold_trans_into_w1(params["enc"]["w1"], trans)           # (B, 64, 3)
    gfeat = _point_mlp_max(x, params["enc"], relu_last=False, w1_eff=w1_eff)
    return gfeat, trans, None


# ---------------------------------------------------------------------------
# Deterministic parameter construction (synthetic init; BN folded into weights)
# ---------------------------------------------------------------------------
def make_params(channel, key):
    eps = 1e-5
    keys = iter(jax.random.split(key, 18))

    def conv_bn(cin, cout, scale=0.1):
        w = scale * jax.random.normal(next(keys), (cout, cin), jnp.float32)
        b = 0.01 * jax.random.normal(next(keys), (cout,), jnp.float32)
        gamma = jnp.ones((cout,), jnp.float32)
        beta = jnp.zeros((cout,), jnp.float32)
        mean = jnp.zeros((cout,), jnp.float32)
        var = jnp.ones((cout,), jnp.float32)
        s = gamma / jnp.sqrt(var + eps)
        wf = (w * s[:, None]).astype(jnp.bfloat16)      # BN scale folded into weight
        t = (s * (b - mean) + beta).reshape(cout, 1).astype(jnp.float32)
        return wf, t

    def fc(cin, cout, scale=0.1, bn=True):
        w = scale * jax.random.normal(next(keys), (cin, cout), jnp.float32)
        b = 0.01 * jax.random.normal(next(keys), (cout,), jnp.float32)
        if bn:
            s = jnp.ones((cout,), jnp.float32) / jnp.sqrt(1.0 + eps)
            wf = (w * s[None, :]).astype(jnp.bfloat16)
            t = (s * b).reshape(1, cout).astype(jnp.float32)
        else:
            wf = w.astype(jnp.bfloat16)
            t = b.reshape(1, cout).astype(jnp.float32)
        return wf, t

    stn = {}
    stn["w1"], stn["t1"] = conv_bn(channel, 64)
    stn["w2"], stn["t2"] = conv_bn(64, 128)
    stn["w3"], stn["t3"] = conv_bn(128, 1024)
    stn["w4"], stn["t4"] = fc(1024, 512)
    stn["w5"], stn["t5"] = fc(512, 256)
    stn["w6"], stn["b6"] = fc(256, 9, bn=False)
    stn["iden"] = jnp.array([[1, 0, 0, 0, 1, 0, 0, 0, 1]], jnp.float32)

    enc = {}
    enc["w1"], enc["t1"] = conv_bn(channel, 64)
    enc["w2"], enc["t2"] = conv_bn(64, 128)
    enc["w3"], enc["t3"] = conv_bn(128, 1024)

    return {"stn": stn, "enc": enc}


# ---------------------------------------------------------------------------
# Pure-JAX reference (same mixed-precision math) for the correctness check
# ---------------------------------------------------------------------------
def _ref_point_mlp(x, q, relu_last, w1_eff=None):
    x16 = x.astype(jnp.bfloat16)
    if w1_eff is None:
        h = jnp.einsum("oc,bcn->bon", q["w1"], x16,
                       preferred_element_type=jnp.float32)
    else:
        h = jnp.einsum("boc,bcn->bon", w1_eff, x16,
                       preferred_element_type=jnp.float32)
    h = jnp.maximum(h + q["t1"][None], 0.0).astype(jnp.bfloat16)
    h = jnp.einsum("oc,bcn->bon", q["w2"], h,
                   preferred_element_type=jnp.float32)
    h = jnp.maximum(h + q["t2"][None], 0.0).astype(jnp.bfloat16)
    h = jnp.einsum("oc,bcn->bon", q["w3"], h,
                   preferred_element_type=jnp.float32)
    pooled = jnp.max(h, axis=-1) + q["t3"][:, 0][None]                 # (B, 1024)
    if relu_last:
        pooled = jnp.maximum(pooled, 0.0)
    return pooled


def _ref_fc_head(pooled, q):
    def fdot(h, w):
        return jnp.dot(h.astype(jnp.bfloat16), w, preferred_element_type=jnp.float32)
    h = jnp.maximum(fdot(pooled, q["w4"]) + q["t4"], 0.0)
    h = jnp.maximum(fdot(h, q["w5"]) + q["t5"], 0.0)
    return fdot(h, q["w6"]) + q["b6"] + q["iden"]


def _reference_forward(x, params):
    stn = params["stn"]
    pooled = _ref_point_mlp(x, stn, relu_last=True)
    trans = _ref_fc_head(pooled, stn).reshape(-1, 3, 3)
    w1_eff = _fold_trans_into_w1(params["enc"]["w1"], trans)
    gfeat = _ref_point_mlp(x, params["enc"], relu_last=False, w1_eff=w1_eff)
    return gfeat, trans, None


if __name__ == "__main__":
    key = jax.random.PRNGKey(0)
    kx, kp = jax.random.split(key)

    B, channel, N = 2, 3, 16                                           # small test shapes
    x = jax.random.normal(kx, (B, channel, N), jnp.float32)            # PyTorch NCL layout
    params = make_params(channel, kp)

    gfeat, trans, trans_feat = pointnet_encoder_forward(x, params)
    gfeat = jax.block_until_ready(gfeat)
    trans = jax.block_until_ready(trans)

    gfeat_ref, trans_ref, _ = _reference_forward(x, params)

    assert gfeat.shape == (B, 1024)
    assert trans.shape == (B, 3, 3)
    assert trans_feat is None
    assert jnp.allclose(trans, trans_ref, atol=1e-3, rtol=1e-3), \
        float(jnp.max(jnp.abs(trans - trans_ref)))
    assert jnp.allclose(gfeat, gfeat_ref, atol=1e-3, rtol=1e-3), \
        float(jnp.max(jnp.abs(gfeat - gfeat_ref)))
    print("KERNEL_OK")
</pallas_src>

<mosaic_0001>
module attributes {stable_mosaic.version = 11 : i64} {
  func.func @_point_mlp_kernel(%arg0: i32, %arg1: i32, %arg2: memref<1x3x128xf32, #tpu.memory_space<vmem>>, %arg3: memref<64x3xbf16, #tpu.memory_space<vmem>>, %arg4: memref<64x1xf32, #tpu.memory_space<vmem>>, %arg5: memref<128x64xbf16, #tpu.memory_space<vmem>>, %arg6: memref<128x1xf32, #tpu.memory_space<vmem>>, %arg7: memref<1024x128xbf16, #tpu.memory_space<vmem>>, %arg8: memref<1024x1xf32, #tpu.memory_space<vmem>>, %arg9: memref<1x1024x1xf32, #tpu.memory_space<vmem>>, %arg10: memref<1024x128xf32, #tpu.memory_space<vmem>>) attributes {dimension_semantics = [#tpu.dimension_semantics<parallel>, #tpu.dimension_semantics<arbitrary>], iteration_bounds = array<i64: 2, 1>, scalar_prefetch = 0 : i64, scratch_operands = 1 : i64, tpu.core_type = #tpu.core_type<tc>, window_params = [{transform_indices = @transform_0, window_bounds = array<i64: 1, 3, 128>}, {pipeline_mode = #tpu.pipeline_mode<synchronous>, transform_indices = @transform_1, window_bounds = array<i64: 64, 3>}, {pipeline_mode = #tpu.pipeline_mode<synchronous>, transform_indices = @transform_2, window_bounds = array<i64: 64, 1>}, {pipeline_mode = #tpu.pipeline_mode<synchronous>, transform_indices = @transform_3, window_bounds = array<i64: 128, 64>}, {pipeline_mode = #tpu.pipeline_mode<synchronous>, transform_indices = @transform_4, window_bounds = array<i64: 128, 1>}, {pipeline_mode = #tpu.pipeline_mode<synchronous>, transform_indices = @transform_5, window_bounds = array<i64: 1024, 128>}, {pipeline_mode = #tpu.pipeline_mode<synchronous>, transform_indices = @transform_6, window_bounds = array<i64: 1024, 1>}, {transform_indices = @transform_7, window_bounds = array<i64: 1, 1024, 1>}]} {
    %c0_i32 = arith.constant 0 : i32
    %0 = arith.cmpi eq, %arg1, %c0_i32 : i32
    %1 = arith.extui %0 : i1 to i32
    %c0_i32_0 = arith.constant 0 : i32
    %2 = arith.cmpi ne, %1, %c0_i32_0 : i32
    scf.if %2 {
      %cst_41 = arith.constant 0xFF800000 : f32
      %45 = vector.broadcast %cst_41 : f32 to vector<1024x128xf32>
      %c0_42 = arith.constant 0 : index
      %c0_43 = arith.constant 0 : index
      %46 = vector.load %arg10[%c0_42, %c0_43] : memref<1024x128xf32, #tpu.memory_space<vmem>>, vector<1024x128xf32>
      tpu.vector_store %arg10[%c0_42, %c0_43], %45 {strides = array<i32>} : memref<1024x128xf32, #tpu.memory_space<vmem>>, vector<1024x128xf32>,
    } else {
    }
    %c0 = arith.constant 0 : index
    %c0_1 = arith.constant 0 : index
    %c0_2 = arith.constant 0 : index
    %3 = vector.load %arg2[%c0, %c0_1, %c0_2] : memref<1x3x128xf32, #tpu.memory_space<vmem>>, vector<1x3x128xf32>
    %4 = vector.shape_cast %3 : vector<1x3x128xf32> to vector<3x128xf32>
    %5 = arith.truncf %4 : vector<3x128xf32> to vector<3x128xbf16>
    %c0_3 = arith.constant 0 : index
    %c0_4 = arith.constant 0 : index
    %6 = vector.load %arg3[%c0_3, %c0_4] : memref<64x3xbf16, #tpu.memory_space<vmem>>, vector<64x3xbf16>
    %cst = arith.constant dense<0.000000e+00> : vector<64x128xf32>
    %7 = tpu.matmul %6, %5, %cst {dimension_numbers = #tpu.dot_dimension_numbers<[1], [0], [0], [1], [0, 0, 1, 1], [], []>} : vector<64x3xbf16>, vector<3x128xbf16>, vector<64x128xf32> -> vector<64x128xf32>
    %c0_5 = arith.constant 0 : index
    %c0_6 = arith.constant 0 : index
    %8 = vector.load %arg4[%c0_5, %c0_6] : memref<64x1xf32, #tpu.memory_space<vmem>>, vector<64x1xf32>
    %9 = vector.broadcast %8 : vector<64x1xf32> to vector<64x128xf32>
    %10 = arith.addf %7, %9 : vector<64x128xf32>
    %cst_7 = arith.constant 0.000000e+00 : f32
    %11 = vector.broadcast %cst_7 : f32 to vector<64x128xf32>
    %12 = arith.maximumf %10, %11 : vector<64x128xf32>
    %13 = arith.truncf %12 : vector<64x128xf32> to vector<64x128xbf16>
    %c0_8 = arith.constant 0 : index
    %c0_9 = arith.constant 0 : index
    %14 = vector.load %arg5[%c0_8, %c0_9] : memref<128x64xbf16, #tpu.memory_space<vmem>>, vector<128x64xbf16>
    %cst_10 = arith.constant dense<0.000000e+00> : vector<128x128xf32>
    %15 = tpu.matmul %14, %13, %cst_10 {dimension_numbers = #tpu.dot_dimension_numbers<[1], [0], [0], [1], [0, 0, 1, 1], [], []>} : vector<128x64xbf16>, vector<64x128xbf16>, vector<128x128xf32> -> vector<128x128xf32>
    %c0_11 = arith.constant 0 : index
    %c0_12 = arith.constant 0 : index
    %16 = vector.load %arg6[%c0_11, %c0_12] : memref<128x1xf32, #tpu.memory_space<vmem>>, vector<128x1xf32>
    %17 = vector.broadcast %16 : vector<128x1xf32> to vector<128x128xf32>
    %18 = arith.addf %15, %17 : vector<128x128xf32>
    %cst_13 = arith.constant 0.000000e+00 : f32
    %19 = vector.broadcast %cst_13 : f32 to vector<128x128xf32>
    %20 = arith.maximumf %18, %19 : vector<128x128xf32>
    %21 = arith.truncf %20 : vector<128x128xf32> to vector<128x128xbf16>
    %c0_14 = arith.constant 0 : index
    %c0_15 = arith.constant 0 : index
    %22 = vector.load %arg7[%c0_14, %c0_15] : memref<1024x128xbf16, #tpu.memory_space<vmem>>, vector<256x128xbf16>
    %cst_16 = arith.constant dense<0.000000e+00> : vector<256x128xf32>
    %23 = tpu.matmul %22, %21, %cst_16 {dimension_numbers = #tpu.dot_dimension_numbers<[1], [0], [0], [1], [0, 0, 1, 1], [], []>} : vector<256x128xbf16>, vector<128x128xbf16>, vector<256x128xf32> -> vector<256x128xf32>
    %c0_17 = arith.constant 0 : index
    %c0_18 = arith.constant 0 : index
    %24 = vector.load %arg10[%c0_17, %c0_18] : memref<1024x128xf32, #tpu.memory_space<vmem>>, vector<256x128xf32>
    %25 = arith.maximumf %24, %23 : vector<256x128xf32>
    %c0_19 = arith.constant 0 : index
    %c0_20 = arith.constant 0 : index
    %26 = vector.load %arg10[%c0_19, %c0_20] : memref<1024x128xf32, #tpu.memory_space<vmem>>, vector<256x128xf32>
    tpu.vector_store %arg10[%c0_19, %c0_20], %25 {strides = array<i32>} : memref<1024x128xf32, #tpu.memory_space<vmem>>, vector<256x128xf32>,
    %c256 = arith.constant 256 : index
    %c0_21 = arith.constant 0 : index
    %27 = vector.load %arg7[%c256, %c0_21] : memref<1024x128xbf16, #tpu.memory_space<vmem>>, vector<256x128xbf16>
    %cst_22 = arith.constant dense<0.000000e+00> : vector<256x128xf32>
    %28 = tpu.matmul %27, %21, %cst_22 {dimension_numbers = #tpu.dot_dimension_numbers<[1], [0], [0], [1], [0, 0, 1, 1], [], []>} : vector<256x128xbf16>, vector<128x128xbf16>, vector<256x128xf32> -> vector<256x128xf32>
    %c256_23 = arith.constant 256 : index
    %c0_24 = arith.constant 0 : index
    %29 = vector.load %arg10[%c256_23, %c0_24] : memref<1024x128xf32, #tpu.memory_space<vmem>>, vector<256x128xf32>
    %30 = arith.maximumf %29, %28 : vector<256x128xf32>
    %c256_25 = arith.constant 256 : index
    %c0_26 = arith.constant 0 : index
    %31 = vector.load %arg10[%c256_25, %c0_26] : memref<1024x128xf32, #tpu.memory_space<vmem>>, vector<256x128xf32>
    tpu.vector_store %arg10[%c256_25, %c0_26], %30 {strides = array<i32>} : memref<1024x128xf32, #tpu.memory_space<vmem>>, vector<256x128xf32>,
    %c512 = arith.constant 512 : index
    %c0_27 = arith.constant 0 : index
    %32 = vector.load %arg7[%c512, %c0_27] : memref<1024x128xbf16, #tpu.memory_space<vmem>>, vector<256x128xbf16>
    %cst_28 = arith.constant dense<0.000000e+00> : vector<256x128xf32>
    %33 = tpu.matmul %32, %21, %cst_28 {dimension_numbers = #tpu.dot_dimension_numbers<[1], [0], [0], [1], [0, 0, 1, 1], [], []>} : vector<256x128xbf16>, vector<128x128xbf16>, vector<256x128xf32> -> vector<256x128xf32>
    %c512_29 = arith.constant 512 : index
    %c0_30 = arith.constant 0 : index
    %34 = vector.load %arg10[%c512_29, %c0_30] : memref<1024x128xf32, #tpu.memory_space<vmem>>, vector<256x128xf32>
    %35 = arith.maximumf %34, %33 : vector<256x128xf32>
    %c512_31 = arith.constant 512 : index
    %c0_32 = arith.constant 0 : index
    %36 = vector.load %arg10[%c512_31, %c0_32] : memref<1024x128xf32, #tpu.memory_space<vmem>>, vector<256x128xf32>
    tpu.vector_store %arg10[%c512_31, %c0_32], %35 {strides = array<i32>} : memref<1024x128xf32, #tpu.memory_space<vmem>>, vector<256x128xf32>,
    %c768 = arith.constant 768 : index
    %c0_33 = arith.constant 0 : index
    %37 = vector.load %arg7[%c768, %c0_33] : memref<1024x128xbf16, #tpu.memory_space<vmem>>, vector<256x128xbf16>
    %cst_34 = arith.constant dense<0.000000e+00> : vector<256x128xf32>
    %38 = tpu.matmul %37, %21, %cst_34 {dimension_numbers = #tpu.dot_dimension_numbers<[1], [0], [0], [1], [0, 0, 1, 1], [], []>} : vector<256x128xbf16>, vector<128x128xbf16>, vector<256x128xf32> -> vector<256x128xf32>
    %c768_35 = arith.constant 768 : index
    %c0_36 = arith.constant 0 : index
    %39 = vector.load %arg10[%c768_35, %c0_36] : memref<1024x128xf32, #tpu.memory_space<vmem>>, vector<256x128xf32>
    %40 = arith.maximumf %39, %38 : vector<256x128xf32>
    %c768_37 = arith.constant 768 : index
    %c0_38 = arith.constant 0 : index
    %41 = vector.load %arg10[%c768_37, %c0_38] : memref<1024x128xf32, #tpu.memory_space<vmem>>, vector<256x128xf32>
    tpu.vector_store %arg10[%c768_37, %c0_38], %40 {strides = array<i32>} : memref<1024x128xf32, #tpu.memory_space<vmem>>, vector<256x128xf32>,
    %c0_i32_39 = arith.constant 0 : i32
    %42 = arith.cmpi eq, %arg1, %c0_i32_39 : i32
    %43 = arith.extui %42 : i1 to i32
    %c0_i32_40 = arith.constant 0 : i32
    %44 = arith.cmpi ne, %43, %c0_i32_40 : i32
    scf.if %44 {
      %c0_41 = arith.constant 0 : index
      %c0_42 = arith.constant 0 : index
      %45 = vector.load %arg10[%c0_41, %c0_42] : memref<1024x128xf32, #tpu.memory_space<vmem>>, vector<1024x128xf32>
      %cst_43 = arith.constant dense<0xFF800000> : vector<1024xf32>
      %46 = vector.multi_reduction <maximumf>, %45, %cst_43 [1] : vector<1024x128xf32> to vector<1024xf32>
      %47 = vector.shape_cast %46 : vector<1024xf32> to vector<1024x1xf32>
      %c0_44 = arith.constant 0 : index
      %c0_45 = arith.constant 0 : index
      %48 = vector.load %arg8[%c0_44, %c0_45] : memref<1024x1xf32, #tpu.memory_space<vmem>>, vector<1024x1xf32>
      %49 = arith.addf %47, %48 : vector<1024x1xf32>
      %cst_46 = arith.constant 0.000000e+00 : f32
      %50 = vector.broadcast %cst_46 : f32 to vector<1024x1xf32>
      %51 = arith.maximumf %49, %50 : vector<1024x1xf32>
      %c0_47 = arith.constant 0 : index
      %c0_48 = arith.constant 0 : index
      %c0_49 = arith.constant 0 : index
      %52 = vector.load %arg9[%c0_47, %c0_48, %c0_49] : memref<1x1024x1xf32, #tpu.memory_space<vmem>>, vector<1x1024x1xf32>
      %53 = vector.shape_cast %52 : vector<1x1024x1xf32> to vector<1024x1xf32>
      %54 = vector.shape_cast %51 : vector<1024x1xf32> to vector<1x1024x1xf32>
      tpu.vector_store %arg9[%c0_47, %c0_48, %c0_49], %54 {strides = array<i32>} : memref<1x1024x1xf32, #tpu.memory_space<vmem>>, vector<1x1024x1xf32>,
    } else {
    }
    return
  }
  func.func @transform_0(%arg0: i32, %arg1: i32) -> (i32, i32, i32) {
    %c0_i32 = arith.constant 0 : i32
    %c0_i32_0 = arith.constant 0 : i32
    return %arg0, %c0_i32, %arg1 : i32, i32, i32
  }
  func.func @transform_1(%arg0: i32, %arg1: i32) -> (i32, i32) {
    %c0_i32 = arith.constant 0 : i32
    %c0_i32_0 = arith.constant 0 : i32
    %c0_i32_1 = arith.constant 0 : i32
    return %c0_i32, %c0_i32_0 : i32, i32
  }
  func.func @transform_2(%arg0: i32, %arg1: i32) -> (i32, i32) {
    %c0_i32 = arith.constant 0 : i32
    %c0_i32_0 = arith.constant 0 : i32
    %c0_i32_1 = arith.constant 0 : i32
    return %c0_i32, %c0_i32_0 : i32, i32
  }
  func.func @transform_3(%arg0: i32, %arg1: i32) -> (i32, i32) {
    %c0_i32 = arith.constant 0 : i32
    %c0_i32_0 = arith.constant 0 : i32
    %c0_i32_1 = arith.constant 0 : i32
    return %c0_i32, %c0_i32_0 : i32, i32
  }
  func.func @transform_4(%arg0: i32, %arg1: i32) -> (i32, i32) {
    %c0_i32 = arith.constant 0 : i32
    %c0_i32_0 = arith.constant 0 : i32
    %c0_i32_1 = arith.constant 0 : i32
    return %c0_i32, %c0_i32_0 : i32, i32
  }
  func.func @transform_5(%arg0: i32, %arg1: i32) -> (i32, i32) {
    %c0_i32 = arith.constant 0 : i32
    %c0_i32_0 = arith.constant 0 : i32
    %c0_i32_1 = arith.constant 0 : i32
    return %c0_i32, %c0_i32_0 : i32, i32
  }
  func.func @transform_6(%arg0: i32, %arg1: i32) -> (i32, i32) {
    %c0_i32 = arith.constant 0 : i32
    %c0_i32_0 = arith.constant 0 : i32
    %c0_i32_1 = arith.constant 0 : i32
    return %c0_i32, %c0_i32_0 : i32, i32
  }
  func.func @transform_7(%arg0: i32, %arg1: i32) -> (i32, i32, i32) {
    %c0_i32 = arith.constant 0 : i32
    %c0_i32_0 = arith.constant 0 : i32
    %c0_i32_1 = arith.constant 0 : i32
    return %arg0, %c0_i32, %c0_i32_0 : i32, i32, i32
  }
}

</mosaic_0001>

<llo_original>
// kernel: tpu_custom_call.1
$region0: #{tpu_custom_call.1}
  #allocation0 [shape = 'u32[]', space=smem, size = 0x4, offset = 0x4, fixed_abs, tag = 'smem constant byte address 0x4 - core index']
  #allocation1 [shape = 'u32[144,128]{1,0:T(1,128)}', space=vmem, size = 0x12000, scoped, tag = 'internal scratch']
  #allocation2 [shape = 'f32[1024,128]{1,0:T(8,128)}', space=vmem, size = 0x80000, scoped, tag = 'scratch operand']
  %s0 = inlined_call_operand.vmem [shape: f32[2,3,128], index: 0, kind: input, shape index: {}]
  %s1 = inlined_call_operand.vmem [shape: bf16[64,3], index: 1, kind: input, shape index: {}]
  %s2 = inlined_call_operand.vmem [shape: f32[64,1], index: 2, kind: input, shape index: {}]
  %s3 = inlined_call_operand.vmem [shape: bf16[128,64], index: 3, kind: input, shape index: {}]
  %s4 = inlined_call_operand.vmem [shape: f32[128,1], index: 4, kind: input, shape index: {}]
  %s5 = inlined_call_operand.vmem [shape: bf16[1024,128], index: 5, kind: input, shape index: {}]
  %s6 = inlined_call_operand.vmem [shape: f32[1024,1], index: 6, kind: input, shape index: {}]
  %s7 = inlined_call_operand.vmem [shape: f32[2,1024,1], index: 7, kind: output, shape index: {}]
  %s8 = sld [smem:[#allocation0]]
  $region69: #{tpu_custom_call.1} parent=0
    _
  %s10 = ssub.s32 1, %s8
  %s11 = scalar_select 0, %s10, %s8
  loop: start=0, step=1, limit=4
  $region2: #{tpu_custom_call.1} parent=0 // loop_pre_header
    _
  $region3: #{tpu_custom_call.1} parent=0 // loop_header
    %s13 = sphi 0, %s17
    %p14 = scmp.ge.s32.totalorder %s13, 4
    %s20 = sphi 0, %s32
    %s21 = sphi 0, %s28
    %s22 = sphi 0, %s20
    %s23 = sphi 0, %s21
    %s24 = sphi 0, %s22
    %s25 = sphi 0, %s23
    %s37 = sphi 0, %s39
    %s40 = sphi 0, %s37
    %s41 = sphi 0, %s40
    %s57 = sphi 0, %s41
    %s61 = sphi 0, %s61
    %s63 = sphi 0, %s61
    %s64 = sphi 0, %s63
    %s78 = sphi 0, %s64
    %s82 = sphi 0, %s82
    %s84 = sphi 0, %s82
    %s85 = sphi 0, %s84
    %s99 = sphi 0, %s85
    %s103 = sphi 0, %s103
    %s105 = sphi 0, %s103
    %s106 = sphi 0, %s105
    %s120 = sphi 0, %s106
    %s124 = sphi 0, %s124
    %s126 = sphi 0, %s124
    %s127 = sphi 0, %s126
    %s141 = sphi 0, %s127
    %s145 = sphi 0, %s145
    %s147 = sphi 0, %s145
    %s148 = sphi 0, %s147
    %s162 = sphi 0, %s148
    %s166 = sphi 0, %s166
    %s168 = sphi 0, %s166
    %s169 = sphi 0, %s168
    %s183 = sphi 0, %s169
    %s189 = sphi 0, %s191
    %s192 = sphi 0, %s189
    %s193 = sphi 0, %s192
    %s209 = sphi 0, %s193
  $region4: #{tpu_custom_call.1} parent=0 // loop_header_branch
    %16 = sbr.rel (%p14) target = $region8
  $region5: #{tpu_custom_call.1} parent=0 // loop_body
    %s18 = ssub.s32 %s13, 1
    %s19 = ssub.s32 %s13, 2
    %s26 = sadd.s32 1, %s21
    %p27 = scmp.ge.s32.totalorder %s26, 1
    %s28 = scalar_select %p27, 0, %s26
    %s29 = sadd.s32 1, %s20
    %s30 = scalar_select %p27, %s29, %s20
    %p31 = scmp.ge.s32.totalorder %s30, 2
    %s32 = scalar_select %p31, 0, %s30
    %s33 = ssub.s32 %s20, %s32
    %s34 = ssub.s32 %s21, %s28
    %s35 = sor.u32 %s33, %s34
    %p36 = scmp.eq.s32.totalorder %s35, 0
    %s38 = sadd.s32 %s37, 1
    %s39 = scalar_select %p36, %s37, %s38
    %p42 = pneg %p36
    %p43 = scmp.eq.s32.totalorder %s13, 1
    %p44 = por %p42, %p43
    %p45 = scmp.ne.s32.totalorder %s37, %s40
    %p46 = scmp.eq.s32.totalorder %s13, 0
    %p47 = por %p45, %p46
    %p48 = scmp.ne.s32.totalorder %s37, %s40
    %p49 = scmp.eq.s32.totalorder %s18, 1
    %p50 = por %p48, %p49
    %p51 = scmp.ne.s32.totalorder %s40, %s41
    %p52 = scmp.eq.s32.totalorder %s18, 0
    %p53 = por %p51, %p52
    %p54 = scmp.ne.s32.totalorder %s40, %s41
    %p55 = scmp.eq.s32.totalorder %s19, 1
    %p56 = por %p54, %p55
    %p58 = scmp.ne.s32.totalorder %s41, %s57
    %p59 = scmp.eq.s32.totalorder %s19, 0
    %p60 = por %p58, %p59
    %s62 = sadd.s32 %s61, 1
    %p65 = scmp.eq.s32.totalorder %s13, 1
    %p66 = scmp.ne.s32.totalorder %s61, %s63
    %p67 = scmp.eq.s32.totalorder %s13, 0
    %p68 = por %p66, %p67
    %p69 = scmp.ne.s32.totalorder %s61, %s63
    %p70 = scmp.eq.s32.totalorder %s18, 1
    %p71 = por %p69, %p70
    %p72 = scmp.ne.s32.totalorder %s63, %s64
    %p73 = scmp.eq.s32.totalorder %s18, 0
    %p74 = por %p72, %p73
    %p75 = scmp.ne.s32.totalorder %s63, %s64
    %p76 = scmp.eq.s32.totalorder %s19, 1
    %p77 = por %p75, %p76
    %p79 = scmp.ne.s32.totalorder %s64, %s78
    %p80 = scmp.eq.s32.totalorder %s19, 0
    %p81 = por %p79, %p80
    %s83 = sadd.s32 %s82, 1
    %p86 = scmp.eq.s32.totalorder %s13, 1
    %p87 = scmp.ne.s32.totalorder %s82, %s84
    %p88 = scmp.eq.s32.totalorder %s13, 0
    %p89 = por %p87, %p88
    %p90 = scmp.ne.s32.totalorder %s82, %s84
    %p91 = scmp.eq.s32.totalorder %s18, 1
    %p92 = por %p90, %p91
    %p93 = scmp.ne.s32.totalorder %s84, %s85
    %p94 = scmp.eq.s32.totalorder %s18, 0
    %p95 = por %p93, %p94
    %p96 = scmp.ne.s32.totalorder %s84, %s85
    %p97 = scmp.eq.s32.totalorder %s19, 1
    %p98 = por %p96, %p97
    %p100 = scmp.ne.s32.totalorder %s85, %s99
    %p101 = scmp.eq.s32.totalorder %s19, 0
    %p102 = por %p100, %p101
    %s104 = sadd.s32 %s103, 1
    %p107 = scmp.eq.s32.totalorder %s13, 1
    %p108 = scmp.ne.s32.totalorder %s103, %s105
    %p109 = scmp.eq.s32.totalorder %s13, 0
    %p110 = por %p108, %p109
    %p111 = scmp.ne.s32.totalorder %s103, %s105
    %p112 = scmp.eq.s32.totalorder %s18, 1
    %p113 = por %p111, %p112
    %p114 = scmp.ne.s32.totalorder %s105, %s106
    %p115 = scmp.eq.s32.totalorder %s18, 0
    %p116 = por %p114, %p115
    %p117 = scmp.ne.s32.totalorder %s105, %s106
    %p118 = scmp.eq.s32.totalorder %s19, 1
    %p119 = por %p117, %p118
    %p121 = scmp.ne.s32.totalorder %s106, %s120
    %p122 = scmp.eq.s32.totalorder %s19, 0
    %p123 = por %p121, %p122
    %s125 = sadd.s32 %s124, 1
    %p128 = scmp.eq.s32.totalorder %s13, 1
    %p129 = scmp.ne.s32.totalorder %s124, %s126
    %p130 = scmp.eq.s32.totalorder %s13, 0
    %p131 = por %p129, %p130
    %p132 = scmp.ne.s32.totalorder %s124, %s126
    %p133 = scmp.eq.s32.totalorder %s18, 1
    %p134 = por %p132, %p133
    %p135 = scmp.ne.s32.totalorder %s126, %s127
    %p136 = scmp.eq.s32.totalorder %s18, 0
    %p137 = por %p135, %p136
    %p138 = scmp.ne.s32.totalorder %s126, %s127
    %p139 = scmp.eq.s32.totalorder %s19, 1
    %p140 = por %p138, %p139
    %p142 = scmp.ne.s32.totalorder %s127, %s141
    %p143 = scmp.eq.s32.totalorder %s19, 0
    %p144 = por %p142, %p143
    %s146 = sadd.s32 %s145, 1
    %p149 = scmp.eq.s32.totalorder %s13, 1
    %p150 = scmp.ne.s32.totalorder %s145, %s147
    %p151 = scmp.eq.s32.totalorder %s13, 0
    %p152 = por %p150, %p151
    %p153 = scmp.ne.s32.totalorder %s145, %s147
    %p154 = scmp.eq.s32.totalorder %s18, 1
    %p155 = por %p153, %p154
    %p156 = scmp.ne.s32.totalorder %s147, %s148
    %p157 = scmp.eq.s32.totalorder %s18, 0
    %p158 = por %p156, %p157
    %p159 = scmp.ne.s32.totalorder %s147, %s148
    %p160 = scmp.eq.s32.totalorder %s19, 1
    %p161 = por %p159, %p160
    %p163 = scmp.ne.s32.totalorder %s148, %s162
    %p164 = scmp.eq.s32.totalorder %s19, 0
    %p165 = por %p163, %p164
    %s167 = sadd.s32 %s166, 1
    %p170 = scmp.eq.s32.totalorder %s13, 1
    %p171 = scmp.ne.s32.totalorder %s166, %s168
    %p172 = scmp.eq.s32.totalorder %s13, 0
    %p173 = por %p171, %p172
    %p174 = scmp.ne.s32.totalorder %s166, %s168
    %p175 = scmp.eq.s32.totalorder %s18, 1
    %p176 = por %p174, %p175
    %p177 = scmp.ne.s32.totalorder %s168, %s169
    %p178 = scmp.eq.s32.totalorder %s18, 0
    %p179 = por %p177, %p178
    %p180 = scmp.ne.s32.totalorder %s168, %s169
    %p181 = scmp.eq.s32.totalorder %s19, 1
    %p182 = por %p180, %p181
    %p184 = scmp.ne.s32.totalorder %s169, %s183
    %p185 = scmp.eq.s32.totalorder %s19, 0
    %p186 = por %p184, %p185
    %s187 = ssub.s32 %s20, %s32
    %p188 = scmp.eq.s32.totalorder %s187, 0
    %s190 = sadd.s32 %s189, 1
    %s191 = scalar_select %p188, %s189, %s190
    %p194 = pneg %p188
    %p195 = scmp.eq.s32.totalorder %s13, 1
    %p196 = por %p194, %p195
    %p197 = scmp.ne.s32.totalorder %s189, %s192
    %p198 = scmp.eq.s32.totalorder %s13, 0
    %p199 = por %p197, %p198
    %p200 = scmp.ne.s32.totalorder %s189, %s192
    %p201 = scmp.eq.s32.totalorder %s18, 1
    %p202 = por %p200, %p201
    %p203 = scmp.ne.s32.totalorder %s192, %s193
    %p204 = scmp.eq.s32.totalorder %s18, 0
    %p205 = por %p203, %p204
    %p206 = scmp.ne.s32.totalorder %s192, %s193
    %p207 = scmp.eq.s32.totalorder %s19, 1
    %p208 = por %p206, %p207
    %p210 = scmp.ne.s32.totalorder %s193, %s209
    %p211 = scmp.eq.s32.totalorder %s19, 0
    %p212 = por %p210, %p211
    %p213 = scmp.le.s32.totalorder 1, %s13
    %p214 = scmp.lt.s32.totalorder %s13, 3
    %p215 = pnand %p213, %p214
    %p216 = pneg %p215
    // Predicated region
    $region9: #{tpu_custom_call.1} parent=5 // pred_check
      _
    $region10: #{tpu_custom_call.1} parent=5 // pred_check_branch
      %218 = sbr.rel (%p215) target = $region12
    $region11: #{tpu_custom_call.1} parent=5 // pred_region
      %s219 = ssub.s32 %s13, 1
      // Predicated region
      $region13: #{tpu_custom_call.1} parent=11 // pred_check
        %p220 = pneg %p74
      $region14: #{tpu_custom_call.1} parent=11 // pred_check_branch
        %222 = sbr.rel (%p220) target = $region16
      $region15: #{tpu_custom_call.1} parent=11 // pred_region
        _
      $region16: #{tpu_custom_call.1} parent=11 // pred_fallthru
        _
      // Predicated region
      $region17: #{tpu_custom_call.1} parent=11 // pred_check
        %p223 = pneg %p95
      $region18: #{tpu_custom_call.1} parent=11 // pred_check_branch
        %225 = sbr.rel (%p223) target = $region20
      $region19: #{tpu_custom_call.1} parent=11 // pred_region
        _
      $region20: #{tpu_custom_call.1} parent=11 // pred_fallthru
        _
      // Predicated region
      $region21: #{tpu_custom_call.1} parent=11 // pred_check
        %p226 = pneg %p116
      $region22: #{tpu_custom_call.1} parent=11 // pred_check_branch
        %228 = sbr.rel (%p226) target = $region24
      $region23: #{tpu_custom_call.1} parent=11 // pred_region
        _
      $region24: #{tpu_custom_call.1} parent=11 // pred_fallthru
        _
      // Predicated region
      $region25: #{tpu_custom_call.1} parent=11 // pred_check
        %p229 = pneg %p137
      $region26: #{tpu_custom_call.1} parent=11 // pred_check_branch
        %231 = sbr.rel (%p229) target = $region28
      $region27: #{tpu_custom_call.1} parent=11 // pred_region
        _
      $region28: #{tpu_custom_call.1} parent=11 // pred_fallthru
        _
      // Predicated region
      $region29: #{tpu_custom_call.1} parent=11 // pred_check
        %p232 = pneg %p158
      $region30: #{tpu_custom_call.1} parent=11 // pred_check_branch
        %234 = sbr.rel (%p232) target = $region32
      $region31: #{tpu_custom_call.1} parent=11 // pred_region
        _
      $region32: #{tpu_custom_call.1} parent=11 // pred_fallthru
        _
      // Predicated region
      $region33: #{tpu_custom_call.1} parent=11 // pred_check
        %p235 = pneg %p179
      $region34: #{tpu_custom_call.1} parent=11 // pred_check_branch
        %237 = sbr.rel (%p235) target = $region36
      $region35: #{tpu_custom_call.1} parent=11 // pred_region
        _
      $region36: #{tpu_custom_call.1} parent=11 // pred_fallthru
        _
    $region12: #{tpu_custom_call.1} parent=5 // pred_fallthru
      _
    %p238 = scmp.lt.s32.totalorder %s13, 2
    // Predicated region
    $region37: #{tpu_custom_call.1} parent=5 // pred_check
      %p239 = pneg %p238
    $region38: #{tpu_custom_call.1} parent=5 // pred_check_branch
      %241 = sbr.rel (%p239) target = $region40
    $region39: #{tpu_custom_call.1} parent=5 // pred_region
      // Predicated region
      $region41: #{tpu_custom_call.1} parent=39 // pred_check
        %p242 = pneg %p47
      $region42: #{tpu_custom_call.1} parent=39 // pred_check_branch
        %244 = sbr.rel (%p242) target = $region44
      $region43: #{tpu_custom_call.1} parent=39 // pred_region
        %p245 = scmp.lt.s32.totalorder %s20, 1
        %s246 = scalar_select %p245, %s20, 1
        %p247 = scmp.lt.s32.totalorder %s21, 0
        %s248 = scalar_select %p247, %s21, 0
        %s249 = sadd.s32 %s248, %s246
        %s250 = smul.addr %s249, 4
        %s251 = scalar_lea.vmem %s0, %s250
      $region44: #{tpu_custom_call.1} parent=39 // pred_fallthru
        _
    $region40: #{tpu_custom_call.1} parent=5 // pred_fallthru
      _
    %p252 = scmp.le.s32.totalorder 1, %s13
    %p253 = scmp.lt.s32.totalorder %s13, 3
    %p254 = pnand %p252, %p253
    %p255 = pneg %p254
    // Predicated region
    $region45: #{tpu_custom_call.1} parent=5 // pred_check
      _
    $region46: #{tpu_custom_call.1} parent=5 // pred_check_branch
      %257 = sbr.rel (%p254) target = $region48
    $region47: #{tpu_custom_call.1} parent=5 // pred_region
      %s258 = ssub.s32 %s13, 1
      %p259 = scmp.lt.s32.totalorder %s22, 1
      %s260 = scalar_select %p259, %s22, 1
      %p261 = scmp.lt.s32.totalorder %s23, 0
      %s262 = scalar_select %p261, %s23, 0
      %s263 = sadd.s32 %s262, %s260
      %s264 = smul.addr %s263, 4
      %s265 = scalar_lea.vmem %s0, %s264
      %p266 = pneg %p53
      %p267 = pneg %p50
      %p268 = pneg %p74
      %p269 = pneg %p71
      %p270 = pneg %p95
      %p271 = pneg %p92
      %p272 = pneg %p116
      %p273 = pneg %p113
      %p274 = pneg %p137
      %p275 = pneg %p134
      %p276 = pneg %p158
      %p277 = pneg %p155
      %p278 = pneg %p179
      %p279 = pneg %p176
      %p280 = pneg %p205
      %p281 = pneg %p202
      %p282 = scmp.lt.s32.totalorder %s22, 1
      %s283 = scalar_select %p282, %s22, 1
      %s284 = smul.addr %s283, 128
      %s285 = smul.addr %s284, 8
      %s286 = scalar_lea.vmem %s7, %s285
      %p287 = scmp.lt.s32.totalorder %s22, 1
      %s288 = scalar_select %p287, %s22, 1
      %p289 = scmp.lt.s32.totalorder %s23, 0
      %s290 = scalar_select %p289, %s23, 0
      %s291 = sadd.s32 %s290, %s288
      %s292 = smul.addr %s291, 4
      %s293 = scalar_lea.vmem %s0, %s292
      %p294 = scmp.lt.s32.totalorder %s22, 1
      %s295 = scalar_select %p294, %s22, 1
      %s296 = smul.addr %s295, 128
      %s297 = smul.addr %s296, 8
      %s298 = scalar_lea.vmem %s7, %s297
      %p300 = scmp.eq.s32.totalorder %s23, 0
      // Predicated region
      $region49: #{tpu_custom_call.1} parent=47 // pred_check
        %p301 = pneg %p300
      $region50: #{tpu_custom_call.1} parent=47 // pred_check_branch
        %303 = sbr.rel (%p301) target = $region52
      $region51: #{tpu_custom_call.1} parent=47 // pred_region
        %304 = vst [vmem:[#allocation2] sm:$0xff] -inf
        %305 = vst [vmem:[#allocation2 + $0x8] sm:$0xff] -inf
        %306 = vst [vmem:[#allocation2 + $0x10] sm:$0xff] -inf
        %307 = vst [vmem:[#allocation2 + $0x18] sm:$0xff] -inf
        %308 = vst [vmem:[#allocation2 + $0x20] sm:$0xff] -inf
        %309 = vst [vmem:[#allocation2 + $0x28] sm:$0xff] -inf
        %310 = vst [vmem:[#allocation2 + $0x30] sm:$0xff] -inf
        %311 = vst [vmem:[#allocation2 + $0x38] sm:$0xff] -inf
        %312 = vst [vmem:[#allocation2 + $0x40] sm:$0xff] -inf
        %313 = vst [vmem:[#allocation2 + $0x48] sm:$0xff] -inf
        %314 = vst [vmem:[#allocation2 + $0x50] sm:$0xff] -inf
        %315 = vst [vmem:[#allocation2 + $0x58] sm:$0xff] -inf
        %316 = vst [vmem:[#allocation2 + $0x60] sm:$0xff] -inf
        %317 = vst [vmem:[#allocation2 + $0x68] sm:$0xff] -inf
        %318 = vst [vmem:[#allocation2 + $0x70] sm:$0xff] -inf
        %319 = vst [vmem:[#allocation2 + $0x78] sm:$0xff] -inf
        %320 = vst [vmem:[#allocation2 + $0x80] sm:$0xff] -inf
        %321 = vst [vmem:[#allocation2 + $0x88] sm:$0xff] -inf
        %322 = vst [vmem:[#allocation2 + $0x90] sm:$0xff] -inf
        %323 = vst [vmem:[#allocation2 + $0x98] sm:$0xff] -inf
        %324 = vst [vmem:[#allocation2 + $0xa0] sm:$0xff] -inf
        %325 = vst [vmem:[#allocation2 + $0xa8] sm:$0xff] -inf
        %326 = vst [vmem:[#allocation2 + $0xb0] sm:$0xff] -inf
        %327 = vst [vmem:[#allocation2 + $0xb8] sm:$0xff] -inf
        %328 = vst [vmem:[#allocation2 + $0xc0] sm:$0xff] -inf
        %329 = vst [vmem:[#allocation2 + $0xc8] sm:$0xff] -inf
        %330 = vst [vmem:[#allocation2 + $0xd0] sm:$0xff] -inf
        %331 = vst [vmem:[#allocation2 + $0xd8] sm:$0xff] -inf
        %332 = vst [vmem:[#allocation2 + $0xe0] sm:$0xff] -inf
        %333 = vst [vmem:[#allocation2 + $0xe8] sm:$0xff] -inf
        %334 = vst [vmem:[#allocation2 + $0xf0] sm:$0xff] -inf
        %335 = vst [vmem:[#allocation2 + $0xf8] sm:$0xff] -inf
        %336 = vst [vmem:[#allocation2 + $0x100] sm:$0xff] -inf
        %337 = vst [vmem:[#allocation2 + $0x108] sm:$0xff] -inf
        %338 = vst [vmem:[#allocation2 + $0x110] sm:$0xff] -inf
        %339 = vst [vmem:[#allocation2 + $0x118] sm:$0xff] -inf
        %340 = vst [vmem:[#allocation2 + $0x120] sm:$0xff] -inf
        %341 = vst [vmem:[#allocation2 + $0x128] sm:$0xff] -inf
        %342 = vst [vmem:[#allocation2 + $0x130] sm:$0xff] -inf
        %343 = vst [vmem:[#allocation2 + $0x138] sm:$0xff] -inf
        %344 = vst [vmem:[#allocation2 + $0x140] sm:$0xff] -inf
        %345 = vst [vmem:[#allocation2 + $0x148] sm:$0xff] -inf
        %346 = vst [vmem:[#allocation2 + $0x150] sm:$0xff] -inf
        %347 = vst [vmem:[#allocation2 + $0x158] sm:$0xff] -inf
        %348 = vst [vmem:[#allocation2 + $0x160] sm:$0xff] -inf
        %349 = vst [vmem:[#allocation2 + $0x168] sm:$0xff] -inf
        %350 = vst [vmem:[#allocation2 + $0x170] sm:$0xff] -inf
        %351 = vst [vmem:[#allocation2 + $0x178] sm:$0xff] -inf
        %352 = vst [vmem:[#allocation2 + $0x180] sm:$0xff] -inf
        %353 = vst [vmem:[#allocation2 + $0x188] sm:$0xff] -inf
        %354 = vst [vmem:[#allocation2 + $0x190] sm:$0xff] -inf
        %355 = vst [vmem:[#allocation2 + $0x198] sm:$0xff] -inf
        %356 = vst [vmem:[#allocation2 + $0x1a0] sm:$0xff] -inf
        %357 = vst [vmem:[#allocation2 + $0x1a8] sm:$0xff] -inf
        %358 = vst [vmem:[#allocation2 + $0x1b0] sm:$0xff] -inf
        %359 = vst [vmem:[#allocation2 + $0x1b8] sm:$0xff] -inf
        %360 = vst [vmem:[#allocation2 + $0x1c0] sm:$0xff] -inf
        %361 = vst [vmem:[#allocation2 + $0x1c8] sm:$0xff] -inf
        %362 = vst [vmem:[#allocation2 + $0x1d0] sm:$0xff] -inf
        %363 = vst [vmem:[#allocation2 + $0x1d8] sm:$0xff] -inf
        %364 = vst [vmem:[#allocation2 + $0x1e0] sm:$0xff] -inf
        %365 = vst [vmem:[#allocation2 + $0x1e8] sm:$0xff] -inf
        %366 = vst [vmem:[#allocation2 + $0x1f0] sm:$0xff] -inf
        %367 = vst [vmem:[#allocation2 + $0x1f8] sm:$0xff] -inf
        %368 = vst [vmem:[#allocation2 + $0x200] sm:$0xff] -inf
        %369 = vst [vmem:[#allocation2 + $0x208] sm:$0xff] -inf
        %370 = vst [vmem:[#allocation2 + $0x210] sm:$0xff] -inf
        %371 = vst [vmem:[#allocation2 + $0x218] sm:$0xff] -inf
        %372 = vst [vmem:[#allocation2 + $0x220] sm:$0xff] -inf
        %373 = vst [vmem:[#allocation2 + $0x228] sm:$0xff] -inf
        %374 = vst [vmem:[#allocation2 + $0x230] sm:$0xff] -inf
        %375 = vst [vmem:[#allocation2 + $0x238] sm:$0xff] -inf
        %376 = vst [vmem:[#allocation2 + $0x240] sm:$0xff] -inf
        %377 = vst [vmem:[#allocation2 + $0x248] sm:$0xff] -inf
        %378 = vst [vmem:[#allocation2 + $0x250] sm:$0xff] -inf
        %379 = vst [vmem:[#allocation2 + $0x258] sm:$0xff] -inf
        %380 = vst [vmem:[#allocation2 + $0x260] sm:$0xff] -inf
        %381 = vst [vmem:[#allocation2 + $0x268] sm:$0xff] -inf
        %382 = vst [vmem:[#allocation2 + $0x270] sm:$0xff] -inf
        %383 = vst [vmem:[#allocation2 + $0x278] sm:$0xff] -inf
        %384 = vst [vmem:[#allocation2 + $0x280] sm:$0xff] -inf
        %385 = vst [vmem:[#allocation2 + $0x288] sm:$0xff] -inf
        %386 = vst [vmem:[#allocation2 + $0x290] sm:$0xff] -inf
        %387 = vst [vmem:[#allocation2 + $0x298] sm:$0xff] -inf
        %388 = vst [vmem:[#allocation2 + $0x2a0] sm:$0xff] -inf
        %389 = vst [vmem:[#allocation2 + $0x2a8] sm:$0xff] -inf
        %390 = vst [vmem:[#allocation2 + $0x2b0] sm:$0xff] -inf
        %391 = vst [vmem:[#allocation2 + $0x2b8] sm:$0xff] -inf
        %392 = vst [vmem:[#allocation2 + $0x2c0] sm:$0xff] -inf
        %393 = vst [vmem:[#allocation2 + $0x2c8] sm:$0xff] -inf
        %394 = vst [vmem:[#allocation2 + $0x2d0] sm:$0xff] -inf
        %395 = vst [vmem:[#allocation2 + $0x2d8] sm:$0xff] -inf
        %396 = vst [vmem:[#allocation2 + $0x2e0] sm:$0xff] -inf
        %397 = vst [vmem:[#allocation2 + $0x2e8] sm:$0xff] -inf
        %398 = vst [vmem:[#allocation2 + $0x2f0] sm:$0xff] -inf
        %399 = vst [vmem:[#allocation2 + $0x2f8] sm:$0xff] -inf
        %400 = vst [vmem:[#allocation2 + $0x300] sm:$0xff] -inf
        %401 = vst [vmem:[#allocation2 + $0x308] sm:$0xff] -inf
        %402 = vst [vmem:[#allocation2 + $0x310] sm:$0xff] -inf
        %403 = vst [vmem:[#allocation2 + $0x318] sm:$0xff] -inf
        %404 = vst [vmem:[#allocation2 + $0x320] sm:$0xff] -inf
        %405 = vst [vmem:[#allocation2 + $0x328] sm:$0xff] -inf
        %406 = vst [vmem:[#allocation2 + $0x330] sm:$0xff] -inf
        %407 = vst [vmem:[#allocation2 + $0x338] sm:$0xff] -inf
        %408 = vst [vmem:[#allocation2 + $0x340] sm:$0xff] -inf
        %409 = vst [vmem:[#allocation2 + $0x348] sm:$0xff] -inf
        %410 = vst [vmem:[#allocation2 + $0x350] sm:$0xff] -inf
        %411 = vst [vmem:[#allocation2 + $0x358] sm:$0xff] -inf
        %412 = vst [vmem:[#allocation2 + $0x360] sm:$0xff] -inf
        %413 = vst [vmem:[#allocation2 + $0x368] sm:$0xff] -inf
        %414 = vst [vmem:[#allocation2 + $0x370] sm:$0xff] -inf
        %415 = vst [vmem:[#allocation2 + $0x378] sm:$0xff] -inf
        %416 = vst [vmem:[#allocation2 + $0x380] sm:$0xff] -inf
        %417 = vst [vmem:[#allocation2 + $0x388] sm:$0xff] -inf
        %418 = vst [vmem:[#allocation2 + $0x390] sm:$0xff] -inf
        %419 = vst [vmem:[#allocation2 + $0x398] sm:$0xff] -inf
        %420 = vst [vmem:[#allocation2 + $0x3a0] sm:$0xff] -inf
        %421 = vst [vmem:[#allocation2 + $0x3a8] sm:$0xff] -inf
        %422 = vst [vmem:[#allocation2 + $0x3b0] sm:$0xff] -inf
        %423 = vst [vmem:[#allocation2 + $0x3b8] sm:$0xff] -inf
        %424 = vst [vmem:[#allocation2 + $0x3c0] sm:$0xff] -inf
        %425 = vst [vmem:[#allocation2 + $0x3c8] sm:$0xff] -inf
        %426 = vst [vmem:[#allocation2 + $0x3d0] sm:$0xff] -inf
        %427 = vst [vmem:[#allocation2 + $0x3d8] sm:$0xff] -inf
        %428 = vst [vmem:[#allocation2 + $0x3e0] sm:$0xff] -inf
        %429 = vst [vmem:[#allocation2 + $0x3e8] sm:$0xff] -inf
        %430 = vst [vmem:[#allocation2 + $0x3f0] sm:$0xff] -inf
        %431 = vst [vmem:[#allocation2 + $0x3f8] sm:$0xff] -inf
      $region52: #{tpu_custom_call.1} parent=47 // pred_fallthru
        _
      %v432 = vld [vmem:[%s293] sm:$0x7]
      %v433 = vpack.c.bf16 %v432, %v432
      %v434 = vld [vmem:[%s1] sm:$0xf]
      %v435 = vld [vmem:[%s1 + $0x4] sm:$0xf]
      %v436 = vld [vmem:[%s1 + $0x8] sm:$0xf]
      %v437 = vld [vmem:[%s1 + $0xc] sm:$0xf]
      %v438 = vld [vmem:[%s1 + $0x10] sm:$0xf]
      %v439 = vld [vmem:[%s1 + $0x14] sm:$0xf]
      %v440 = vld [vmem:[%s1 + $0x18] sm:$0xf]
      %v441 = vld [vmem:[%s1 + $0x1c] sm:$0xf]
      %v442 = vld [vmem:[%s2] sm:$0xff]
      %v443 = vld [vmem:[%s2 + $0x8] sm:$0xff]
      %v444 = vld [vmem:[%s2 + $0x10] sm:$0xff]
      %v445 = vld [vmem:[%s2 + $0x18] sm:$0xff]
      %v446 = vld [vmem:[%s2 + $0x20] sm:$0xff]
      %v447 = vld [vmem:[%s2 + $0x28] sm:$0xff]
      %v448 = vld [vmem:[%s2 + $0x30] sm:$0xff]
      %v449 = vld [vmem:[%s2 + $0x38] sm:$0xff]
      %451 = vset.pattern.permute.xlu0 0
      %452 = vperm.xlu0 %451, %v442
      %v453 = vpop.permute.xlu0 %452
      %456 = vset.pattern.permute.xlu0 0
      %457 = vperm.xlu0 %456, %v443
      %v458 = vpop.permute.xlu0 %457
      %461 = vset.pattern.permute.xlu0 0
      %462 = vperm.xlu0 %461, %v444
      %v463 = vpop.permute.xlu0 %462
      %466 = vset.pattern.permute.xlu0 0
      %467 = vperm.xlu0 %466, %v445
      %v468 = vpop.permute.xlu0 %467
      %471 = vset.pattern.permute.xlu0 0
      %472 = vperm.xlu0 %471, %v446
      %v473 = vpop.permute.xlu0 %472
      %476 = vset.pattern.permute.xlu0 0
      %477 = vperm.xlu0 %476, %v447
      %v478 = vpop.permute.xlu0 %477
      %481 = vset.pattern.permute.xlu0 0
      %482 = vperm.xlu0 %481, %v448
      %v483 = vpop.permute.xlu0 %482
      %486 = vset.pattern.permute.xlu0 0
      %487 = vperm.xlu0 %486, %v449
      %v488 = vpop.permute.xlu0 %487
      %v498 = vunpack.c.l.b16 %v434
      %v499 = vunpack.c.l.b16 %v435
      %v500 = vunpack.c.l.b16 %v436
      %v501 = vunpack.c.l.b16 %v437
      %v502 = vunpack.c.l.b16 %v438
      %v503 = vunpack.c.l.b16 %v439
      %v504 = vunpack.c.l.b16 %v440
      %v505 = vunpack.c.l.b16 %v441
      %v506 = vpack.c.b16 %v499, %v498
      %v507 = vpack.c.b16 %v501, %v500
      %v508 = vpack.c.b16 %v503, %v502
      %v509 = vpack.c.b16 %v505, %v504
      %vm510 = vcmask 23552
      %v512 = vsel %vm510, %v506, 0
      %v515 = vsel %vm510, %v507, 0
      %v518 = vsel %vm510, %v508, 0
      %v521 = vsel %vm510, %v509, 0
      %vm523 = vcmask 1040384
      %vm524 = vcmask 1041408
      %v525 = vsel %vm523, 4294967295, 65535
      %v526 = vsel %vm524, %v525, 0
      %v528 = vand.u32 %v433, %v526
      %530 = vmatprep.subr.bf16.mxu0 0
      %531 = vmatpush1.bf16.msra.mxu0 0
      %532 = vmatprep.subr.bf16.mxu0 0
      %533 = vmatpush1.bf16.msra.mxu0 0
      %534 = vmatprep.subr.bf16.mxu0 0
      %535 = vmatpush1.bf16.msra.mxu0 0
      %536 = vmatprep.subr.bf16.mxu0 0
      %537 = vmatpush1.bf16.msra.mxu0 0
      %538 = vmatprep.subr.bf16.mxu0 0
      %539 = vmatpush1.bf16.msra.mxu0 0
      %540 = vmatprep.subr.bf16.mxu0 0
      %541 = vmatpush1.bf16.msra.mxu0 0
      %542 = vmatprep.subr.bf16.mxu0 0
      %543 = vmatpush1.bf16.msra.mxu0 0
      %544 = vmatprep.subr.bf16.mxu0 0
      %545 = vmatpush1.bf16.msra.mxu0 %v528
      %546 = vmatprep.subr.bf16.mxu0 0
      %547 = vmatpush2.bf16.msra.mxu0 0
      %548 = vmatprep.subr.bf16.mxu0 0
      %549 = vmatpush2.bf16.msra.mxu0 0
      %550 = vmatprep.subr.bf16.mxu0 0
      %551 = vmatpush2.bf16.msra.mxu0 0
      %552 = vmatprep.subr.bf16.mxu0 0
      %553 = vmatpush2.bf16.msra.mxu0 0
      %554 = vmatprep.subr.bf16.mxu0 0
      %555 = vmatpush2.bf16.msra.mxu0 0
      %556 = vmatprep.subr.bf16.mxu0 0
      %557 = vmatpush2.bf16.msra.mxu0 0
      %558 = vmatprep.subr.bf16.mxu0 0
      %559 = vmatpush2.bf16.msra.mxu0 0
      %560 = vmatprep.subr.bf16.mxu0 0
      %561 = vmatpush2.bf16.msra.mxu0 0
      %562 = vmatprep.mubr.bf16.mxu0 0
      %563 = vmatmul.mubr.bf16.gmra.mxu0 %v512
      %v564 = vpop.f32.mrf.mxu0
      %v565 = vadd.f32 %v453, %v564
      %v566 = vpop.f32.mrf.mxu0
      %v567 = vpop.f32.mrf.mxu0
      %v568 = vadd.f32 %v458, %v567
      %v569 = vpop.f32.mrf.mxu0
      %570 = vmatprep.mubr.bf16.mxu0 0
      %571 = vmatmul.mubr.bf16.gmra.mxu0 %v515
      %v572 = vpop.f32.mrf.mxu0
      %v573 = vadd.f32 %v463, %v572
      %v574 = vpop.f32.mrf.mxu0
      %v575 = vpop.f32.mrf.mxu0
      %v576 = vadd.f32 %v468, %v575
      %v577 = vpop.f32.mrf.mxu0
      %578 = vmatprep.mubr.bf16.mxu0 0
      %579 = vmatmul.mubr.bf16.gmra.mxu0 %v518
      %v580 = vpop.f32.mrf.mxu0
      %v581 = vadd.f32 %v473, %v580
      %v582 = vpop.f32.mrf.mxu0
      %v583 = vpop.f32.mrf.mxu0
      %v584 = vadd.f32 %v478, %v583
      %v585 = vpop.f32.mrf.mxu0
      %586 = vmatprep.mubr.bf16.mxu0 0
      %587 = vmatmul.mubr.bf16.gmra.mxu0 %v521
      %v588 = vpop.f32.mrf.mxu0
      %v589 = vadd.f32 %v483, %v588
      %v590 = vpop.f32.mrf.mxu0
      %v591 = vpop.f32.mrf.mxu0
      %v592 = vadd.f32 %v488, %v591
      %v593 = vpop.f32.mrf.mxu0
      %594 = vdwg.mxu0
      %v595 = vmax.f32 %v565, 0.0
      %v596 = vmax.f32 %v568, 0.0
      %v597 = vmax.f32 %v573, 0.0
      %v598 = vmax.f32 %v576, 0.0
      %v599 = vmax.f32 %v581, 0.0
      %v600 = vmax.f32 %v584, 0.0
      %v601 = vmax.f32 %v589, 0.0
      %v602 = vmax.f32 %v592, 0.0
      %v603 = vpack.c.bf16 %v596, %v595
      %v604 = vpack.c.bf16 %v598, %v597
      %v605 = vpack.c.bf16 %v600, %v599
      %v606 = vpack.c.bf16 %v602, %v601
      %v607 = vld [vmem:[%s3] sm:$0xf]
      %v608 = vld [vmem:[%s3 + $0x4] sm:$0xf]
      %v609 = vld [vmem:[%s3 + $0x8] sm:$0xf]
      %v610 = vld [vmem:[%s3 + $0xc] sm:$0xf]
      %v611 = vld [vmem:[%s3 + $0x10] sm:$0xf]
      %v612 = vld [vmem:[%s3 + $0x14] sm:$0xf]
      %v613 = vld [vmem:[%s3 + $0x18] sm:$0xf]
      %v614 = vld [vmem:[%s3 + $0x1c] sm:$0xf]
      %v615 = vld [vmem:[%s3 + $0x20] sm:$0xf]
      %v616 = vld [vmem:[%s3 + $0x24] sm:$0xf]
      %v617 = vld [vmem:[%s3 + $0x28] sm:$0xf]
      %v618 = vld [vmem:[%s3 + $0x2c] sm:$0xf]
      %v619 = vld [vmem:[%s3 + $0x30] sm:$0xf]
      %v620 = vld [vmem:[%s3 + $0x34] sm:$0xf]
      %v621 = vld [vmem:[%s3 + $0x38] sm:$0xf]
      %v622 = vld [vmem:[%s3 + $0x3c] sm:$0xf]
      %v623 = vld [vmem:[%s4] sm:$0xff]
      %v624 = vld [vmem:[%s4 + $0x8] sm:$0xff]
      %v625 = vld [vmem:[%s4 + $0x10] sm:$0xff]
      %v626 = vld [vmem:[%s4 + $0x18] sm:$0xff]
      %v627 = vld [vmem:[%s4 + $0x20] sm:$0xff]
      %v628 = vld [vmem:[%s4 + $0x28] sm:$0xff]
      %v629 = vld [vmem:[%s4 + $0x30] sm:$0xff]
      %v630 = vld [vmem:[%s4 + $0x38] sm:$0xff]
      %v631 = vld [vmem:[%s4 + $0x40] sm:$0xff]
      %v632 = vld [vmem:[%s4 + $0x48] sm:$0xff]
      %v633 = vld [vmem:[%s4 + $0x50] sm:$0xff]
      %v634 = vld [vmem:[%s4 + $0x58] sm:$0xff]
      %v635 = vld [vmem:[%s4 + $0x60] sm:$0xff]
      %v636 = vld [vmem:[%s4 + $0x68] sm:$0xff]
      %v637 = vld [vmem:[%s4 + $0x70] sm:$0xff]
      %v638 = vld [vmem:[%s4 + $0x78] sm:$0xff]
      %640 = vset.pattern.permute.xlu0 0
      %641 = vperm.xlu0 %640, %v623
      %v642 = vpop.permute.xlu0 %641
      %645 = vset.pattern.permute.xlu0 0
      %646 = vperm.xlu0 %645, %v624
      %v647 = vpop.permute.xlu0 %646
      %650 = vset.pattern.permute.xlu0 0
      %651 = vperm.xlu0 %650, %v625
      %v652 = vpop.permute.xlu0 %651
      %655 = vset.pattern.permute.xlu0 0
      %656 = vperm.xlu0 %655, %v626
      %v657 = vpop.permute.xlu0 %656
      %660 = vset.pattern.permute.xlu0 0
      %661 = vperm.xlu0 %660, %v627
      %v662 = vpop.permute.xlu0 %661
      %665 = vset.pattern.permute.xlu0 0
      %666 = vperm.xlu0 %665, %v628
      %v667 = vpop.permute.xlu0 %666
      %670 = vset.pattern.permute.xlu0 0
      %671 = vperm.xlu0 %670, %v629
      %v672 = vpop.permute.xlu0 %671
      %675 = vset.pattern.permute.xlu0 0
      %676 = vperm.xlu0 %675, %v630
      %v677 = vpop.permute.xlu0 %676
      %680 = vset.pattern.permute.xlu0 0
      %681 = vperm.xlu0 %680, %v631
      %v682 = vpop.permute.xlu0 %681
      %685 = vset.pattern.permute.xlu0 0
      %686 = vperm.xlu0 %685, %v632
      %v687 = vpop.permute.xlu0 %686
      %690 = vset.pattern.permute.xlu0 0
      %691 = vperm.xlu0 %690, %v633
      %v692 = vpop.permute.xlu0 %691
      %695 = vset.pattern.permute.xlu0 0
      %696 = vperm.xlu0 %695, %v634
      %v697 = vpop.permute.xlu0 %696
      %700 = vset.pattern.permute.xlu0 0
      %701 = vperm.xlu0 %700, %v635
      %v702 = vpop.permute.xlu0 %701
      %705 = vset.pattern.permute.xlu0 0
      %706 = vperm.xlu0 %705, %v636
      %v707 = vpop.permute.xlu0 %706
      %710 = vset.pattern.permute.xlu0 0
      %711 = vperm.xlu0 %710, %v637
      %v712 = vpop.permute.xlu0 %711
      %715 = vset.pattern.permute.xlu0 0
      %716 = vperm.xlu0 %715, %v638
      %v717 = vpop.permute.xlu0 %716
      %v735 = vunpack.c.l.b16 %v607
      %v736 = vunpack.c.l.b16 %v608
      %v737 = vunpack.c.l.b16 %v609
      %v738 = vunpack.c.l.b16 %v610
      %v739 = vunpack.c.l.b16 %v611
      %v740 = vunpack.c.l.b16 %v612
      %v741 = vunpack.c.l.b16 %v613
      %v742 = vunpack.c.l.b16 %v614
      %v743 = vunpack.c.l.b16 %v615
      %v744 = vunpack.c.l.b16 %v616
      %v745 = vunpack.c.l.b16 %v617
      %v746 = vunpack.c.l.b16 %v618
      %v747 = vunpack.c.l.b16 %v619
      %v748 = vunpack.c.l.b16 %v620
      %v749 = vunpack.c.l.b16 %v621
      %v750 = vunpack.c.l.b16 %v622
      %v751 = vpack.c.b16 %v736, %v735
      %v752 = vpack.c.b16 %v738, %v737
      %v753 = vpack.c.b16 %v740, %v739
      %v754 = vpack.c.b16 %v742, %v741
      %v755 = vpack.c.b16 %v744, %v743
      %v756 = vpack.c.b16 %v746, %v745
      %v757 = vpack.c.b16 %v748, %v747
      %v758 = vpack.c.b16 %v750, %v749
      %vm759 = vcmask 523264
      %v761 = vsel %vm759, %v751, 0
      %v764 = vsel %vm759, %v752, 0
      %v767 = vsel %vm759, %v753, 0
      %v770 = vsel %vm759, %v754, 0
      %v773 = vsel %vm759, %v755, 0
      %v776 = vsel %vm759, %v756, 0
      %v779 = vsel %vm759, %v757, 0
      %v782 = vsel %vm759, %v758, 0
      %784 = vmatprep.subr.bf16.mxu0 0
      %785 = vmatpush1.bf16.msra.mxu0 0
      %786 = vmatprep.subr.bf16.mxu0 0
      %787 = vmatpush1.bf16.msra.mxu0 0
      %788 = vmatprep.subr.bf16.mxu0 0
      %789 = vmatpush1.bf16.msra.mxu0 0
      %790 = vmatprep.subr.bf16.mxu0 0
      %791 = vmatpush1.bf16.msra.mxu0 0
      %792 = vmatprep.subr.bf16.mxu0 0
      %793 = vmatpush1.bf16.msra.mxu0 %v606
      %794 = vmatprep.subr.bf16.mxu0 0
      %795 = vmatpush1.bf16.msra.mxu0 %v605
      %796 = vmatprep.subr.bf16.mxu0 0
      %797 = vmatpush1.bf16.msra.mxu0 %v604
      %798 = vmatprep.subr.bf16.mxu0 0
      %799 = vmatpush1.bf16.msra.mxu0 %v603
      %800 = vmatprep.subr.bf16.mxu0 0
      %801 = vmatpush2.bf16.msra.mxu0 0
      %802 = vmatprep.subr.bf16.mxu0 0
      %803 = vmatpush2.bf16.msra.mxu0 0
      %804 = vmatprep.subr.bf16.mxu0 0
      %805 = vmatpush2.bf16.msra.mxu0 0
      %806 = vmatprep.subr.bf16.mxu0 0
      %807 = vmatpush2.bf16.msra.mxu0 0
      %808 = vmatprep.subr.bf16.mxu0 0
      %809 = vmatpush2.bf16.msra.mxu0 0
      %810 = vmatprep.subr.bf16.mxu0 0
      %811 = vmatpush2.bf16.msra.mxu0 0
      %812 = vmatprep.subr.bf16.mxu0 0
      %813 = vmatpush2.bf16.msra.mxu0 0
      %814 = vmatprep.subr.bf16.mxu0 0
      %815 = vmatpush2.bf16.msra.mxu0 0
      %816 = vmatprep.mubr.bf16.mxu0 0
      %817 = vmatmul.mubr.bf16.gmra.mxu0 %v761
      %v818 = vpop.f32.mrf.mxu0
      %v819 = vadd.f32 %v642, %v818
      %v820 = vpop.f32.mrf.mxu0
      %v821 = vpop.f32.mrf.mxu0
      %v822 = vadd.f32 %v647, %v821
      %v823 = vpop.f32.mrf.mxu0
      %824 = vmatprep.mubr.bf16.mxu0 0
      %825 = vmatmul.mubr.bf16.gmra.mxu0 %v764
      %v826 = vpop.f32.mrf.mxu0
      %v827 = vadd.f32 %v652, %v826
      %v828 = vpop.f32.mrf.mxu0
      %v829 = vpop.f32.mrf.mxu0
      %v830 = vadd.f32 %v657, %v829
      %v831 = vpop.f32.mrf.mxu0
      %832 = vmatprep.mubr.bf16.mxu0 0
      %833 = vmatmul.mubr.bf16.gmra.mxu0 %v767
      %v834 = vpop.f32.mrf.mxu0
      %v835 = vadd.f32 %v662, %v834
      %v836 = vpop.f32.mrf.mxu0
      %v837 = vpop.f32.mrf.mxu0
      %v838 = vadd.f32 %v667, %v837
      %v839 = vpop.f32.mrf.mxu0
      %840 = vmatprep.mubr.bf16.mxu0 0
      %841 = vmatmul.mubr.bf16.gmra.mxu0 %v770
      %v842 = vpop.f32.mrf.mxu0
      %v843 = vadd.f32 %v672, %v842
      %v844 = vpop.f32.mrf.mxu0
      %v845 = vpop.f32.mrf.mxu0
      %v846 = vadd.f32 %v677, %v845
      %v847 = vpop.f32.mrf.mxu0
      %848 = vmatprep.mubr.bf16.mxu0 0
      %849 = vmatmul.mubr.bf16.gmra.mxu0 %v773
      %v850 = vpop.f32.mrf.mxu0
      %v851 = vadd.f32 %v682, %v850
      %v852 = vpop.f32.mrf.mxu0
      %v853 = vpop.f32.mrf.mxu0
      %v854 = vadd.f32 %v687, %v853
      %v855 = vpop.f32.mrf.mxu0
      %856 = vmatprep.mubr.bf16.mxu0 0
      %857 = vmatmul.mubr.bf16.gmra.mxu0 %v776
      %v858 = vpop.f32.mrf.mxu0
      %v859 = vadd.f32 %v692, %v858
      %v860 = vpop.f32.mrf.mxu0
      %v861 = vpop.f32.mrf.mxu0
      %v862 = vadd.f32 %v697, %v861
      %v863 = vpop.f32.mrf.mxu0
      %864 = vmatprep.mubr.bf16.mxu0 0
      %865 = vmatmul.mubr.bf16.gmra.mxu0 %v779
      %v866 = vpop.f32.mrf.mxu0
      %v867 = vadd.f32 %v702, %v866
      %v868 = vpop.f32.mrf.mxu0
      %v869 = vpop.f32.mrf.mxu0
      %v870 = vadd.f32 %v707, %v869
      %v871 = vpop.f32.mrf.mxu0
      %872 = vmatprep.mubr.bf16.mxu0 0
      %873 = vmatmul.mubr.bf16.gmra.mxu0 %v782
      %v874 = vpop.f32.mrf.mxu0
      %v875 = vadd.f32 %v712, %v874
      %v876 = vpop.f32.mrf.mxu0
      %v877 = vpop.f32.mrf.mxu0
      %v878 = vadd.f32 %v717, %v877
      %v879 = vpop.f32.mrf.mxu0
      %880 = vdwg.mxu0
      %v881 = vmax.f32 %v819, 0.0
      %v882 = vmax.f32 %v822, 0.0
      %v883 = vmax.f32 %v827, 0.0
      %v884 = vmax.f32 %v830, 0.0
      %v885 = vmax.f32 %v835, 0.0
      %v886 = vmax.f32 %v838, 0.0
      %v887 = vmax.f32 %v843, 0.0
      %v888 = vmax.f32 %v846, 0.0
      %v889 = vmax.f32 %v851, 0.0
      %v890 = vmax.f32 %v854, 0.0
      %v891 = vmax.f32 %v859, 0.0
      %v892 = vmax.f32 %v862, 0.0
      %v893 = vmax.f32 %v867, 0.0
      %v894 = vmax.f32 %v870, 0.0
      %v895 = vmax.f32 %v875, 0.0
      %v896 = vmax.f32 %v878, 0.0
      %v897 = vpack.c.bf16 %v882, %v881
      %v898 = vpack.c.bf16 %v884, %v883
      %v899 = vpack.c.bf16 %v886, %v885
      %v900 = vpack.c.bf16 %v888, %v887
      %v901 = vpack.c.bf16 %v890, %v889
      %v902 = vpack.c.bf16 %v892, %v891
      %v903 = vpack.c.bf16 %v894, %v893
      %v904 = vpack.c.bf16 %v896, %v895
      %v905 = vld [vmem:[%s5] sm:$0xf]
      %v906 = vld [vmem:[%s5 + $0x4] sm:$0xf]
      %v907 = vld [vmem:[%s5 + $0x8] sm:$0xf]
      %v908 = vld [vmem:[%s5 + $0xc] sm:$0xf]
      %v909 = vld [vmem:[%s5 + $0x10] sm:$0xf]
      %v910 = vld [vmem:[%s5 + $0x14] sm:$0xf]
      %v911 = vld [vmem:[%s5 + $0x18] sm:$0xf]
      %v912 = vld [vmem:[%s5 + $0x1c] sm:$0xf]
      %v913 = vld [vmem:[%s5 + $0x20] sm:$0xf]
      %v914 = vld [vmem:[%s5 + $0x24] sm:$0xf]
      %v915 = vld [vmem:[%s5 + $0x28] sm:$0xf]
      %v916 = vld [vmem:[%s5 + $0x2c] sm:$0xf]
      %v917 = vld [vmem:[%s5 + $0x30] sm:$0xf]
      %v918 = vld [vmem:[%s5 + $0x34] sm:$0xf]
      %v919 = vld [vmem:[%s5 + $0x38] sm:$0xf]
      %v920 = vld [vmem:[%s5 + $0x3c] sm:$0xf]
      %v921 = vld [vmem:[%s5 + $0x40] sm:$0xf]
      %v922 = vld [vmem:[%s5 + $0x44] sm:$0xf]
      %v923 = vld [vmem:[%s5 + $0x48] sm:$0xf]
      %v924 = vld [vmem:[%s5 + $0x4c] sm:$0xf]
      %v925 = vld [vmem:[%s5 + $0x50] sm:$0xf]
      %v926 = vld [vmem:[%s5 + $0x54] sm:$0xf]
      %v927 = vld [vmem:[%s5 + $0x58] sm:$0xf]
      %v928 = vld [vmem:[%s5 + $0x5c] sm:$0xf]
      %v929 = vld [vmem:[%s5 + $0x60] sm:$0xf]
      %v930 = vld [vmem:[%s5 + $0x64] sm:$0xf]
      %v931 = vld [vmem:[%s5 + $0x68] sm:$0xf]
      %v932 = vld [vmem:[%s5 + $0x6c] sm:$0xf]
      %v933 = vld [vmem:[%s5 + $0x70] sm:$0xf]
      %v934 = vld [vmem:[%s5 + $0x74] sm:$0xf]
      %v935 = vld [vmem:[%s5 + $0x78] sm:$0xf]
      %v936 = vld [vmem:[%s5 + $0x7c] sm:$0xf]
      %v969 = vunpack.c.l.b16 %v905
      %v970 = vunpack.c.l.b16 %v906
      %v971 = vunpack.c.l.b16 %v907
      %v972 = vunpack.c.l.b16 %v908
      %v973 = vunpack.c.l.b16 %v909
      %v974 = vunpack.c.l.b16 %v910
      %v975 = vunpack.c.l.b16 %v911
      %v976 = vunpack.c.l.b16 %v912
      %v977 = vunpack.c.l.b16 %v913
      %v978 = vunpack.c.l.b16 %v914
      %v979 = vunpack.c.l.b16 %v915
      %v980 = vunpack.c.l.b16 %v916
      %v981 = vunpack.c.l.b16 %v917
      %v982 = vunpack.c.l.b16 %v918
      %v983 = vunpack.c.l.b16 %v919
      %v984 = vunpack.c.l.b16 %v920
      %v985 = vunpack.c.l.b16 %v921
      %v986 = vunpack.c.l.b16 %v922
      %v987 = vunpack.c.l.b16 %v923
      %v988 = vunpack.c.l.b16 %v924
      %v989 = vunpack.c.l.b16 %v925
      %v990 = vunpack.c.l.b16 %v926
      %v991 = vunpack.c.l.b16 %v927
      %v992 = vunpack.c.l.b16 %v928
      %v993 = vunpack.c.l.b16 %v929
      %v994 = vunpack.c.l.b16 %v930
      %v995 = vunpack.c.l.b16 %v931
      %v996 = vunpack.c.l.b16 %v932
      %v997 = vunpack.c.l.b16 %v933
      %v998 = vunpack.c.l.b16 %v934
      %v999 = vunpack.c.l.b16 %v935
      %v1000 = vunpack.c.l.b16 %v936
      %v1001 = vpack.c.b16 %v970, %v969
      %v1002 = vpack.c.b16 %v972, %v971
      %v1003 = vpack.c.b16 %v974, %v973
      %v1004 = vpack.c.b16 %v976, %v975
      %v1005 = vpack.c.b16 %v978, %v977
      %v1006 = vpack.c.b16 %v980, %v979
      %v1007 = vpack.c.b16 %v982, %v981
      %v1008 = vpack.c.b16 %v984, %v983
      %v1009 = vpack.c.b16 %v986, %v985
      %v1010 = vpack.c.b16 %v988, %v987
      %v1011 = vpack.c.b16 %v990, %v989
      %v1012 = vpack.c.b16 %v992, %v991
      %v1013 = vpack.c.b16 %v994, %v993
      %v1014 = vpack.c.b16 %v996, %v995
      %v1015 = vpack.c.b16 %v998, %v997
      %v1016 = vpack.c.b16 %v1000, %v999
      %1033 = vmatprep.subr.bf16.mxu0 0
      %1034 = vmatpush1.bf16.msra.mxu0 %v904
      %1035 = vmatprep.subr.bf16.mxu0 0
      %1036 = vmatpush1.bf16.msra.mxu0 %v903
      %1037 = vmatprep.subr.bf16.mxu0 0
      %1038 = vmatpush1.bf16.msra.mxu0 %v902
      %1039 = vmatprep.subr.bf16.mxu0 0
      %1040 = vmatpush1.bf16.msra.mxu0 %v901
      %1041 = vmatprep.subr.bf16.mxu0 0
      %1042 = vmatpush1.bf16.msra.mxu0 %v900
      %1043 = vmatprep.subr.bf16.mxu0 0
      %1044 = vmatpush1.bf16.msra.mxu0 %v899
      %1045 = vmatprep.subr.bf16.mxu0 0
      %1046 = vmatpush1.bf16.msra.mxu0 %v898
      %1047 = vmatprep.subr.bf16.mxu0 0
      %1048 = vmatpush1.bf16.msra.mxu0 %v897
      %1049 = vmatprep.subr.bf16.mxu0 0
      %1050 = vmatpush2.bf16.msra.mxu0 0
      %1051 = vmatprep.subr.bf16.mxu0 0
      %1052 = vmatpush2.bf16.msra.mxu0 0
      %1053 = vmatprep.subr.bf16.mxu0 0
      %1054 = vmatpush2.bf16.msra.mxu0 0
      %1055 = vmatprep.subr.bf16.mxu0 0
      %1056 = vmatpush2.bf16.msra.mxu0 0
      %1057 = vmatprep.subr.bf16.mxu0 0
      %1058 = vmatpush2.bf16.msra.mxu0 0
      %1059 = vmatprep.subr.bf16.mxu0 0
      %1060 = vmatpush2.bf16.msra.mxu0 0
      %1061 = vmatprep.subr.bf16.mxu0 0
      %1062 = vmatpush2.bf16.msra.mxu0 0
      %1063 = vmatprep.subr.bf16.mxu0 0
      %1064 = vmatpush2.bf16.msra.mxu0 0
      %1065 = vmatprep.mubr.bf16.mxu0 0
      %1066 = vmatmul.mubr.bf16.gmra.mxu0 %v1001
      %v1067 = vpop.f32.mrf.mxu0
      %v1068 = vadd.f32 0.0, %v1067
      %v1069 = vpop.f32.mrf.mxu0
      %v1070 = vpop.f32.mrf.mxu0
      %v1071 = vadd.f32 0.0, %v1070
      %v1072 = vpop.f32.mrf.mxu0
      %1073 = vmatprep.mubr.bf16.mxu0 0
      %1074 = vmatmul.mubr.bf16.gmra.mxu0 %v1002
      %v1075 = vpop.f32.mrf.mxu0
      %v1076 = vadd.f32 0.0, %v1075
      %v1077 = vpop.f32.mrf.mxu0
      %v1078 = vpop.f32.mrf.mxu0
      %v1079 = vadd.f32 0.0, %v1078
      %v1080 = vpop.f32.mrf.mxu0
      %1081 = vmatprep.mubr.bf16.mxu0 0
      %1082 = vmatmul.mubr.bf16.gmra.mxu0 %v1003
      %v1083 = vpop.f32.mrf.mxu0
      %v1084 = vadd.f32 0.0, %v1083
      %v1085 = vpop.f32.mrf.mxu0
      %v1086 = vpop.f32.mrf.mxu0
      %v1087 = vadd.f32 0.0, %v1086
      %v1088 = vpop.f32.mrf.mxu0
      %1089 = vmatprep.mubr.bf16.mxu0 0
      %1090 = vmatmul.mubr.bf16.gmra.mxu0 %v1004
      %v1091 = vpop.f32.mrf.mxu0
      %v1092 = vadd.f32 0.0, %v1091
      %v1093 = vpop.f32.mrf.mxu0
      %v1094 = vpop.f32.mrf.mxu0
      %v1095 = vadd.f32 0.0, %v1094
      %v1096 = vpop.f32.mrf.mxu0
      %1097 = vmatprep.mubr.bf16.mxu0 0
      %1098 = vmatmul.mubr.bf16.gmra.mxu0 %v1005
      %v1099 = vpop.f32.mrf.mxu0
      %v1100 = vadd.f32 0.0, %v1099
      %v1101 = vpop.f32.mrf.mxu0
      %v1102 = vpop.f32.mrf.mxu0
      %v1103 = vadd.f32 0.0, %v1102
      %v1104 = vpop.f32.mrf.mxu0
      %1105 = vmatprep.mubr.bf16.mxu0 0
      %1106 = vmatmul.mubr.bf16.gmra.mxu0 %v1006
      %v1107 = vpop.f32.mrf.mxu0
      %v1108 = vadd.f32 0.0, %v1107
      %v1109 = vpop.f32.mrf.mxu0
      %v1110 = vpop.f32.mrf.mxu0
      %v1111 = vadd.f32 0.0, %v1110
      %v1112 = vpop.f32.mrf.mxu0
      %1113 = vmatprep.mubr.bf16.mxu0 0
      %1114 = vmatmul.mubr.bf16.gmra.mxu0 %v1007
      %v1115 = vpop.f32.mrf.mxu0
      %v1116 = vadd.f32 0.0, %v1115
      %v1117 = vpop.f32.mrf.mxu0
      %v1118 = vpop.f32.mrf.mxu0
      %v1119 = vadd.f32 0.0, %v1118
      %v1120 = vpop.f32.mrf.mxu0
      %1121 = vmatprep.mubr.bf16.mxu0 0
      %1122 = vmatmul.mubr.bf16.gmra.mxu0 %v1008
      %v1123 = vpop.f32.mrf.mxu0
      %v1124 = vadd.f32 0.0, %v1123
      %v1125 = vpop.f32.mrf.mxu0
      %v1126 = vpop.f32.mrf.mxu0
      %v1127 = vadd.f32 0.0, %v1126
      %v1128 = vpop.f32.mrf.mxu0
      %1129 = vmatprep.mubr.bf16.mxu0 0
      %1130 = vmatmul.mubr.bf16.gmra.mxu0 %v1009
      %v1131 = vpop.f32.mrf.mxu0
      %v1132 = vadd.f32 0.0, %v1131
      %v1133 = vpop.f32.mrf.mxu0
      %v1134 = vpop.f32.mrf.mxu0
      %v1135 = vadd.f32 0.0, %v1134
      %v1136 = vpop.f32.mrf.mxu0
      %1137 = vmatprep.mubr.bf16.mxu0 0
      %1138 = vmatmul.mubr.bf16.gmra.mxu0 %v1010
      %v1139 = vpop.f32.mrf.mxu0
      %v1140 = vadd.f32 0.0, %v1139
      %v1141 = vpop.f32.mrf.mxu0
      %v1142 = vpop.f32.mrf.mxu0
      %v1143 = vadd.f32 0.0, %v1142
      %v1144 = vpop.f32.mrf.mxu0
      %1145 = vmatprep.mubr.bf16.mxu0 0
      %1146 = vmatmul.mubr.bf16.gmra.mxu0 %v1011
      %v1147 = vpop.f32.mrf.mxu0
      %v1148 = vadd.f32 0.0, %v1147
      %v1149 = vpop.f32.mrf.mxu0
      %v1150 = vpop.f32.mrf.mxu0
      %v1151 = vadd.f32 0.0, %v1150
      %v1152 = vpop.f32.mrf.mxu0
      %1153 = vmatprep.mubr.bf16.mxu0 0
      %1154 = vmatmul.mubr.bf16.gmra.mxu0 %v1012
      %v1155 = vpop.f32.mrf.mxu0
      %v1156 = vadd.f32 0.0, %v1155
      %v1157 = vpop.f32.mrf.mxu0
      %v1158 = vpop.f32.mrf.mxu0
      %v1159 = vadd.f32 0.0, %v1158
      %v1160 = vpop.f32.mrf.mxu0
      %1161 = vmatprep.mubr.bf16.mxu0 0
      %1162 = vmatmul.mubr.bf16.gmra.mxu0 %v1013
      %v1163 = vpop.f32.mrf.mxu0
      %v1164 = vadd.f32 0.0, %v1163
      %v1165 = vpop.f32.mrf.mxu0
      %v1166 = vpop.f32.mrf.mxu0
      %v1167 = vadd.f32 0.0, %v1166
      %v1168 = vpop.f32.mrf.mxu0
      %1169 = vmatprep.mubr.bf16.mxu0 0
      %1170 = vmatmul.mubr.bf16.gmra.mxu0 %v1014
      %v1171 = vpop.f32.mrf.mxu0
      %v1172 = vadd.f32 0.0, %v1171
      %v1173 = vpop.f32.mrf.mxu0
      %v1174 = vpop.f32.mrf.mxu0
      %v1175 = vadd.f32 0.0, %v1174
      %v1176 = vpop.f32.mrf.mxu0
      %1177 = vmatprep.mubr.bf16.mxu0 0
      %1178 = vmatmul.mubr.bf16.gmra.mxu0 %v1015
      %v1179 = vpop.f32.mrf.mxu0
      %v1180 = vadd.f32 0.0, %v1179
      %v1181 = vpop.f32.mrf.mxu0
      %v1182 = vpop.f32.mrf.mxu0
      %v1183 = vadd.f32 0.0, %v1182
      %v1184 = vpop.f32.mrf.mxu0
      %1185 = vmatprep.mubr.bf16.mxu0 0
      %1186 = vmatmul.mubr.bf16.gmra.mxu0 %v1016
      %v1187 = vpop.f32.mrf.mxu0
      %v1188 = vadd.f32 0.0, %v1187
      %v1189 = vpop.f32.mrf.mxu0
      %v1190 = vpop.f32.mrf.mxu0
      %v1191 = vadd.f32 0.0, %v1190
      %v1192 = vpop.f32.mrf.mxu0
      %1193 = vdwg.mxu0
      %v1194 = vld [vmem:[#allocation2] sm:$0xff]
      %v1195 = vld [vmem:[#allocation2 + $0x8] sm:$0xff]
      %v1196 = vld [vmem:[#allocation2 + $0x10] sm:$0xff]
      %v1197 = vld [vmem:[#allocation2 + $0x18] sm:$0xff]
      %v1198 = vld [vmem:[#allocation2 + $0x20] sm:$0xff]
      %v1199 = vld [vmem:[#allocation2 + $0x28] sm:$0xff]
      %v1200 = vld [vmem:[#allocation2 + $0x30] sm:$0xff]
      %v1201 = vld [vmem:[#allocation2 + $0x38] sm:$0xff]
      %v1202 = vld [vmem:[#allocation2 + $0x40] sm:$0xff]
      %v1203 = vld [vmem:[#allocation2 + $0x48] sm:$0xff]
      %v1204 = vld [vmem:[#allocation2 + $0x50] sm:$0xff]
      %v1205 = vld [vmem:[#allocation2 + $0x58] sm:$0xff]
      %v1206 = vld [vmem:[#allocation2 + $0x60] sm:$0xff]
      %v1207 = vld [vmem:[#allocation2 + $0x68] sm:$0xff]
      %v1208 = vld [vmem:[#allocation2 + $0x70] sm:$0xff]
      %v1209 = vld [vmem:[#allocation2 + $0x78] sm:$0xff]
      %v1210 = vld [vmem:[#allocation2 + $0x80] sm:$0xff]
      %v1211 = vld [vmem:[#allocation2 + $0x88] sm:$0xff]
      %v1212 = vld [vmem:[#allocation2 + $0x90] sm:$0xff]
      %v1213 = vld [vmem:[#allocation2 + $0x98] sm:$0xff]
      %v1214 = vld [vmem:[#allocation2 + $0xa0] sm:$0xff]
      %v1215 = vld [vmem:[#allocation2 + $0xa8] sm:$0xff]
      %v1216 = vld [vmem:[#allocation2 + $0xb0] sm:$0xff]
      %v1217 = vld [vmem:[#allocation2 + $0xb8] sm:$0xff]
      %v1218 = vld [vmem:[#allocation2 + $0xc0] sm:$0xff]
      %v1219 = vld [vmem:[#allocation2 + $0xc8] sm:$0xff]
      %v1220 = vld [vmem:[#allocation2 + $0xd0] sm:$0xff]
      %v1221 = vld [vmem:[#allocation2 + $0xd8] sm:$0xff]
      %v1222 = vld [vmem:[#allocation2 + $0xe0] sm:$0xff]
      %v1223 = vld [vmem:[#allocation2 + $0xe8] sm:$0xff]
      %v1224 = vld [vmem:[#allocation2 + $0xf0] sm:$0xff]
      %v1225 = vld [vmem:[#allocation2 + $0xf8] sm:$0xff]
      %v1226 = vmax.f32 %v1194, %v1068
      %v1227 = vmax.f32 %v1195, %v1071
      %v1228 = vmax.f32 %v1196, %v1076
      %v1229 = vmax.f32 %v1197, %v1079
      %v1230 = vmax.f32 %v1198, %v1084
      %v1231 = vmax.f32 %v1199, %v1087
      %v1232 = vmax.f32 %v1200, %v1092
      %v1233 = vmax.f32 %v1201, %v1095
      %v1234 = vmax.f32 %v1202, %v1100
      %v1235 = vmax.f32 %v1203, %v1103
      %v1236 = vmax.f32 %v1204, %v1108
      %v1237 = vmax.f32 %v1205, %v1111
      %v1238 = vmax.f32 %v1206, %v1116
      %v1239 = vmax.f32 %v1207, %v1119
      %v1240 = vmax.f32 %v1208, %v1124
      %v1241 = vmax.f32 %v1209, %v1127
      %v1242 = vmax.f32 %v1210, %v1132
      %v1243 = vmax.f32 %v1211, %v1135
      %v1244 = vmax.f32 %v1212, %v1140
      %v1245 = vmax.f32 %v1213, %v1143
      %v1246 = vmax.f32 %v1214, %v1148
      %v1247 = vmax.f32 %v1215, %v1151
      %v1248 = vmax.f32 %v1216, %v1156
      %v1249 = vmax.f32 %v1217, %v1159
      %v1250 = vmax.f32 %v1218, %v1164
      %v1251 = vmax.f32 %v1219, %v1167
      %v1252 = vmax.f32 %v1220, %v1172
      %v1253 = vmax.f32 %v1221, %v1175
      %v1254 = vmax.f32 %v1222, %v1180
      %v1255 = vmax.f32 %v1223, %v1183
      %v1256 = vmax.f32 %v1224, %v1188
      %v1257 = vmax.f32 %v1225, %v1191
      %1258 = vst [vmem:[#allocation2] sm:$0xff] %v1226
      %1259 = vst [vmem:[#allocation2 + $0x8] sm:$0xff] %v1227
      %1260 = vst [vmem:[#allocation2 + $0x10] sm:$0xff] %v1228
      %1261 = vst [vmem:[#allocation2 + $0x18] sm:$0xff] %v1229
      %1262 = vst [vmem:[#allocation2 + $0x20] sm:$0xff] %v1230
      %1263 = vst [vmem:[#allocation2 + $0x28] sm:$0xff] %v1231
      %1264 = vst [vmem:[#allocation2 + $0x30] sm:$0xff] %v1232
      %1265 = vst [vmem:[#allocation2 + $0x38] sm:$0xff] %v1233
      %1266 = vst [vmem:[#allocation2 + $0x40] sm:$0xff] %v1234
      %1267 = vst [vmem:[#allocation2 + $0x48] sm:$0xff] %v1235
      %1268 = vst [vmem:[#allocation2 + $0x50] sm:$0xff] %v1236
      %1269 = vst [vmem:[#allocation2 + $0x58] sm:$0xff] %v1237
      %1270 = vst [vmem:[#allocation2 + $0x60] sm:$0xff] %v1238
      %1271 = vst [vmem:[#allocation2 + $0x68] sm:$0xff] %v1239
      %1272 = vst [vmem:[#allocation2 + $0x70] sm:$0xff] %v1240
      %1273 = vst [vmem:[#allocation2 + $0x78] sm:$0xff] %v1241
      %1274 = vst [vmem:[#allocation2 + $0x80] sm:$0xff] %v1242
      %1275 = vst [vmem:[#allocation2 + $0x88] sm:$0xff] %v1243
      %1276 = vst [vmem:[#allocation2 + $0x90] sm:$0xff] %v1244
      %1277 = vst [vmem:[#allocation2 + $0x98] sm:$0xff] %v1245
      %1278 = vst [vmem:[#allocation2 + $0xa0] sm:$0xff] %v1246
      %1279 = vst [vmem:[#allocation2 + $0xa8] sm:$0xff] %v1247
      %1280 = vst [vmem:[#allocation2 + $0xb0] sm:$0xff] %v1248
      %1281 = vst [vmem:[#allocation2 + $0xb8] sm:$0xff] %v1249
      %1282 = vst [vmem:[#allocation2 + $0xc0] sm:$0xff] %v1250
      %1283 = vst [vmem:[#allocation2 + $0xc8] sm:$0xff] %v1251
      %1284 = vst [vmem:[#allocation2 + $0xd0] sm:$0xff] %v1252
      %1285 = vst [vmem:[#allocation2 + $0xd8] sm:$0xff] %v1253
      %1286 = vst [vmem:[#allocation2 + $0xe0] sm:$0xff] %v1254
      %1287 = vst [vmem:[#allocation2 + $0xe8] sm:$0xff] %v1255
      %1288 = vst [vmem:[#allocation2 + $0xf0] sm:$0xff] %v1256
      %1289 = vst [vmem:[#allocation2 + $0xf8] sm:$0xff] %v1257
      %v1290 = vld [vmem:[%s5 + $0x80] sm:$0xf]
      %v1291 = vld [vmem:[%s5 + $0x84] sm:$0xf]
      %v1292 = vld [vmem:[%s5 + $0x88] sm:$0xf]
      %v1293 = vld [vmem:[%s5 + $0x8c] sm:$0xf]
      %v1294 = vld [vmem:[%s5 + $0x90] sm:$0xf]
      %v1295 = vld [vmem:[%s5 + $0x94] sm:$0xf]
      %v1296 = vld [vmem:[%s5 + $0x98] sm:$0xf]
      %v1297 = vld [vmem:[%s5 + $0x9c] sm:$0xf]
      %v1298 = vld [vmem:[%s5 + $0xa0] sm:$0xf]
      %v1299 = vld [vmem:[%s5 + $0xa4] sm:$0xf]
      %v1300 = vld [vmem:[%s5 + $0xa8] sm:$0xf]
      %v1301 = vld [vmem:[%s5 + $0xac] sm:$0xf]
      %v1302 = vld [vmem:[%s5 + $0xb0] sm:$0xf]
      %v1303 = vld [vmem:[%s5 + $0xb4] sm:$0xf]
      %v1304 = vld [vmem:[%s5 + $0xb8] sm:$0xf]
      %v1305 = vld [vmem:[%s5 + $0xbc] sm:$0xf]
      %v1306 = vld [vmem:[%s5 + $0xc0] sm:$0xf]
      %v1307 = vld [vmem:[%s5 + $0xc4] sm:$0xf]
      %v1308 = vld [vmem:[%s5 + $0xc8] sm:$0xf]
      %v1309 = vld [vmem:[%s5 + $0xcc] sm:$0xf]
      %v1310 = vld [vmem:[%s5 + $0xd0] sm:$0xf]
      %v1311 = vld [vmem:[%s5 + $0xd4] sm:$0xf]
      %v1312 = vld [vmem:[%s5 + $0xd8] sm:$0xf]
      %v1313 = vld [vmem:[%s5 + $0xdc] sm:$0xf]
      %v1314 = vld [vmem:[%s5 + $0xe0] sm:$0xf]
      %v1315 = vld [vmem:[%s5 + $0xe4] sm:$0xf]
      %v1316 = vld [vmem:[%s5 + $0xe8] sm:$0xf]
      %v1317 = vld [vmem:[%s5 + $0xec] sm:$0xf]
      %v1318 = vld [vmem:[%s5 + $0xf0] sm:$0xf]
      %v1319 = vld [vmem:[%s5 + $0xf4] sm:$0xf]
      %v1320 = vld [vmem:[%s5 + $0xf8] sm:$0xf]
      %v1321 = vld [vmem:[%s5 + $0xfc] sm:$0xf]
      %v1354 = vunpack.c.l.b16 %v1290
      %v1355 = vunpack.c.l.b16 %v1291
      %v1356 = vunpack.c.l.b16 %v1292
      %v1357 = vunpack.c.l.b16 %v1293
      %v1358 = vunpack.c.l.b16 %v1294
      %v1359 = vunpack.c.l.b16 %v1295
      %v1360 = vunpack.c.l.b16 %v1296
      %v1361 = vunpack.c.l.b16 %v1297
      %v1362 = vunpack.c.l.b16 %v1298
      %v1363 = vunpack.c.l.b16 %v1299
      %v1364 = vunpack.c.l.b16 %v1300
      %v1365 = vunpack.c.l.b16 %v1301
      %v1366 = vunpack.c.l.b16 %v1302
      %v1367 = vunpack.c.l.b16 %v1303
      %v1368 = vunpack.c.l.b16 %v1304
      %v1369 = vunpack.c.l.b16 %v1305
      %v1370 = vunpack.c.l.b16 %v1306
      %v1371 = vunpack.c.l.b16 %v1307
      %v1372 = vunpack.c.l.b16 %v1308
      %v1373 = vunpack.c.l.b16 %v1309
      %v1374 = vunpack.c.l.b16 %v1310
      %v1375 = vunpack.c.l.b16 %v1311
      %v1376 = vunpack.c.l.b16 %v1312
      %v1377 = vunpack.c.l.b16 %v1313
      %v1378 = vunpack.c.l.b16 %v1314
      %v1379 = vunpack.c.l.b16 %v1315
      %v1380 = vunpack.c.l.b16 %v1316
      %v1381 = vunpack.c.l.b16 %v1317
      %v1382 = vunpack.c.l.b16 %v1318
      %v1383 = vunpack.c.l.b16 %v1319
      %v1384 = vunpack.c.l.b16 %v1320
      %v1385 = vunpack.c.l.b16 %v1321
      %v1386 = vpack.c.b16 %v1355, %v1354
      %v1387 = vpack.c.b16 %v1357, %v1356
      %v1388 = vpack.c.b16 %v1359, %v1358
      %v1389 = vpack.c.b16 %v1361, %v1360
      %v1390 = vpack.c.b16 %v1363, %v1362
      %v1391 = vpack.c.b16 %v1365, %v1364
      %v1392 = vpack.c.b16 %v1367, %v1366
      %v1393 = vpack.c.b16 %v1369, %v1368
      %v1394 = vpack.c.b16 %v1371, %v1370
      %v1395 = vpack.c.b16 %v1373, %v1372
      %v1396 = vpack.c.b16 %v1375, %v1374
      %v1397 = vpack.c.b16 %v1377, %v1376
      %v1398 = vpack.c.b16 %v1379, %v1378
      %v1399 = vpack.c.b16 %v1381, %v1380
      %v1400 = vpack.c.b16 %v1383, %v1382
      %v1401 = vpack.c.b16 %v1385, %v1384
      %1418 = vmatprep.subr.bf16.mxu0 0
      %1419 = vmatpush1.bf16.msra.mxu0 %v904
      %1420 = vmatprep.subr.bf16.mxu0 0
      %1421 = vmatpush1.bf16.msra.mxu0 %v903
      %1422 = vmatprep.subr.bf16.mxu0 0
      %1423 = vmatpush1.bf16.msra.mxu0 %v902
      %1424 = vmatprep.subr.bf16.mxu0 0
      %1425 = vmatpush1.bf16.msra.mxu0 %v901
      %1426 = vmatprep.subr.bf16.mxu0 0
      %1427 = vmatpush1.bf16.msra.mxu0 %v900
      %1428 = vmatprep.subr.bf16.mxu0 0
      %1429 = vmatpush1.bf16.msra.mxu0 %v899
      %1430 = vmatprep.subr.bf16.mxu0 0
      %1431 = vmatpush1.bf16.msra.mxu0 %v898
      %1432 = vmatprep.subr.bf16.mxu0 0
      %1433 = vmatpush1.bf16.msra.mxu0 %v897
      %1434 = vmatprep.subr.bf16.mxu0 0
      %1435 = vmatpush2.bf16.msra.mxu0 0
      %1436 = vmatprep.subr.bf16.mxu0 0
      %1437 = vmatpush2.bf16.msra.mxu0 0
      %1438 = vmatprep.subr.bf16.mxu0 0
      %1439 = vmatpush2.bf16.msra.mxu0 0
      %1440 = vmatprep.subr.bf16.mxu0 0
      %1441 = vmatpush2.bf16.msra.mxu0 0
      %1442 = vmatprep.subr.bf16.mxu0 0
      %1443 = vmatpush2.bf16.msra.mxu0 0
      %1444 = vmatprep.subr.bf16.mxu0 0
      %1445 = vmatpush2.bf16.msra.mxu0 0
      %1446 = vmatprep.subr.bf16.mxu0 0
      %1447 = vmatpush2.bf16.msra.mxu0 0
      %1448 = vmatprep.subr.bf16.mxu0 0
      %1449 = vmatpush2.bf16.msra.mxu0 0
      %1450 = vmatprep.mubr.bf16.mxu0 0
      %1451 = vmatmul.mubr.bf16.gmra.mxu0 %v1386
      %v1452 = vpop.f32.mrf.mxu0
      %v1453 = vadd.f32 0.0, %v1452
      %v1454 = vpop.f32.mrf.mxu0
      %v1455 = vpop.f32.mrf.mxu0
      %v1456 = vadd.f32 0.0, %v1455
      %v1457 = vpop.f32.mrf.mxu0
      %1458 = vmatprep.mubr.bf16.mxu0 0
      %1459 = vmatmul.mubr.bf16.gmra.mxu0 %v1387
      %v1460 = vpop.f32.mrf.mxu0
      %v1461 = vadd.f32 0.0, %v1460
      %v1462 = vpop.f32.mrf.mxu0
      %v1463 = vpop.f32.mrf.mxu0
      %v1464 = vadd.f32 0.0, %v1463
      %v1465 = vpop.f32.mrf.mxu0
      %1466 = vmatprep.mubr.bf16.mxu0 0
      %1467 = vmatmul.mubr.bf16.gmra.mxu0 %v1388
      %v1468 = vpop.f32.mrf.mxu0
      %v1469 = vadd.f32 0.0, %v1468
      %v1470 = vpop.f32.mrf.mxu0
      %v1471 = vpop.f32.mrf.mxu0
      %v1472 = vadd.f32 0.0, %v1471
      %v1473 = vpop.f32.mrf.mxu0
      %1474 = vmatprep.mubr.bf16.mxu0 0
      %1475 = vmatmul.mubr.bf16.gmra.mxu0 %v1389
      %v1476 = vpop.f32.mrf.mxu0
      %v1477 = vadd.f32 0.0, %v1476
      %v1478 = vpop.f32.mrf.mxu0
      %v1479 = vpop.f32.mrf.mxu0
      %v1480 = vadd.f32 0.0, %v1479
      %v1481 = vpop.f32.mrf.mxu0
      %1482 = vmatprep.mubr.bf16.mxu0 0
      %1483 = vmatmul.mubr.bf16.gmra.mxu0 %v1390
      %v1484 = vpop.f32.mrf.mxu0
      %v1485 = vadd.f32 0.0, %v1484
      %v1486 = vpop.f32.mrf.mxu0
      %v1487 = vpop.f32.mrf.mxu0
      %v1488 = vadd.f32 0.0, %v1487
      %v1489 = vpop.f32.mrf.mxu0
      %1490 = vmatprep.mubr.bf16.mxu0 0
      %1491 = vmatmul.mubr.bf16.gmra.mxu0 %v1391
      %v1492 = vpop.f32.mrf.mxu0
      %v1493 = vadd.f32 0.0, %v1492
      %v1494 = vpop.f32.mrf.mxu0
      %v1495 = vpop.f32.mrf.mxu0
      %v1496 = vadd.f32 0.0, %v1495
      %v1497 = vpop.f32.mrf.mxu0
      %1498 = vmatprep.mubr.bf16.mxu0 0
      %1499 = vmatmul.mubr.bf16.gmra.mxu0 %v1392
      %v1500 = vpop.f32.mrf.mxu0
      %v1501 = vadd.f32 0.0, %v1500
      %v1502 = vpop.f32.mrf.mxu0
      %v1503 = vpop.f32.mrf.mxu0
      %v1504 = vadd.f32 0.0, %v1503
      %v1505 = vpop.f32.mrf.mxu0
      %1506 = vmatprep.mubr.bf16.mxu0 0
      %1507 = vmatmul.mubr.bf16.gmra.mxu0 %v1393
      %v1508 = vpop.f32.mrf.mxu0
      %v1509 = vadd.f32 0.0, %v1508
      %v1510 = vpop.f32.mrf.mxu0
      %v1511 = vpop.f32.mrf.mxu0
      %v1512 = vadd.f32 0.0, %v1511
      %v1513 = vpop.f32.mrf.mxu0
      %1514 = vmatprep.mubr.bf16.mxu0 0
      %1515 = vmatmul.mubr.bf16.gmra.mxu0 %v1394
      %v1516 = vpop.f32.mrf.mxu0
      %v1517 = vadd.f32 0.0, %v1516
      %v1518 = vpop.f32.mrf.mxu0
      %v1519 = vpop.f32.mrf.mxu0
      %v1520 = vadd.f32 0.0, %v1519
      %v1521 = vpop.f32.mrf.mxu0
      %1522 = vmatprep.mubr.bf16.mxu0 0
      %1523 = vmatmul.mubr.bf16.gmra.mxu0 %v1395
      %v1524 = vpop.f32.mrf.mxu0
      %v1525 = vadd.f32 0.0, %v1524
      %v1526 = vpop.f32.mrf.mxu0
      %v1527 = vpop.f32.mrf.mxu0
      %v1528 = vadd.f32 0.0, %v1527
      %v1529 = vpop.f32.mrf.mxu0
      %1530 = vmatprep.mubr.bf16.mxu0 0
      %1531 = vmatmul.mubr.bf16.gmra.mxu0 %v1396
      %v1532 = vpop.f32.mrf.mxu0
      %v1533 = vadd.f32 0.0, %v1532
      %v1534 = vpop.f32.mrf.mxu0
      %v1535 = vpop.f32.mrf.mxu0
      %v1536 = vadd.f32 0.0, %v1535
      %v1537 = vpop.f32.mrf.mxu0
      %1538 = vmatprep.mubr.bf16.mxu0 0
      %1539 = vmatmul.mubr.bf16.gmra.mxu0 %v1397
      %v1540 = vpop.f32.mrf.mxu0
      %v1541 = vadd.f32 0.0, %v1540
      %v1542 = vpop.f32.mrf.mxu0
      %v1543 = vpop.f32.mrf.mxu0
      %v1544 = vadd.f32 0.0, %v1543
      %v1545 = vpop.f32.mrf.mxu0
      %1546 = vmatprep.mubr.bf16.mxu0 0
      %1547 = vmatmul.mubr.bf16.gmra.mxu0 %v1398
      %v1548 = vpop.f32.mrf.mxu0
      %v1549 = vadd.f32 0.0, %v1548
      %v1550 = vpop.f32.mrf.mxu0
      %v1551 = vpop.f32.mrf.mxu0
      %v1552 = vadd.f32 0.0, %v1551
      %v1553 = vpop.f32.mrf.mxu0
      %1554 = vmatprep.mubr.bf16.mxu0 0
      %1555 = vmatmul.mubr.bf16.gmra.mxu0 %v1399
      %v1556 = vpop.f32.mrf.mxu0
      %v1557 = vadd.f32 0.0, %v1556
      %v1558 = vpop.f32.mrf.mxu0
      %v1559 = vpop.f32.mrf.mxu0
      %v1560 = vadd.f32 0.0, %v1559
      %v1561 = vpop.f32.mrf.mxu0
      %1562 = vmatprep.mubr.bf16.mxu0 0
      %1563 = vmatmul.mubr.bf16.gmra.mxu0 %v1400
      %v1564 = vpop.f32.mrf.mxu0
      %v1565 = vadd.f32 0.0, %v1564
      %v1566 = vpop.f32.mrf.mxu0
      %v1567 = vpop.f32.mrf.mxu0
      %v1568 = vadd.f32 0.0, %v1567
      %v1569 = vpop.f32.mrf.mxu0
      %1570 = vmatprep.mubr.bf16.mxu0 0
      %1571 = vmatmul.mubr.bf16.gmra.mxu0 %v1401
      %v1572 = vpop.f32.mrf.mxu0
      %v1573 = vadd.f32 0.0, %v1572
      %v1574 = vpop.f32.mrf.mxu0
      %v1575 = vpop.f32.mrf.mxu0
      %v1576 = vadd.f32 0.0, %v1575
      %v1577 = vpop.f32.mrf.mxu0
      %1578 = vdwg.mxu0
      %v1579 = vld [vmem:[#allocation2 + $0x100] sm:$0xff]
      %v1580 = vld [vmem:[#allocation2 + $0x108] sm:$0xff]
      %v1581 = vld [vmem:[#allocation2 + $0x110] sm:$0xff]
      %v1582 = vld [vmem:[#allocation2 + $0x118] sm:$0xff]
      %v1583 = vld [vmem:[#allocation2 + $0x120] sm:$0xff]
      %v1584 = vld [vmem:[#allocation2 + $0x128] sm:$0xff]
      %v1585 = vld [vmem:[#allocation2 + $0x130] sm:$0xff]
      %v1586 = vld [vmem:[#allocation2 + $0x138] sm:$0xff]
      %v1587 = vld [vmem:[#allocation2 + $0x140] sm:$0xff]
      %v1588 = vld [vmem:[#allocation2 + $0x148] sm:$0xff]
      %v1589 = vld [vmem:[#allocation2 + $0x150] sm:$0xff]
      %v1590 = vld [vmem:[#allocation2 + $0x158] sm:$0xff]
      %v1591 = vld [vmem:[#allocation2 + $0x160] sm:$0xff]
      %v1592 = vld [vmem:[#allocation2 + $0x168] sm:$0xff]
      %v1593 = vld [vmem:[#allocation2 + $0x170] sm:$0xff]
      %v1594 = vld [vmem:[#allocation2 + $0x178] sm:$0xff]
      %v1595 = vld [vmem:[#allocation2 + $0x180] sm:$0xff]
      %v1596 = vld [vmem:[#allocation2 + $0x188] sm:$0xff]
      %v1597 = vld [vmem:[#allocation2 + $0x190] sm:$0xff]
      %v1598 = vld [vmem:[#allocation2 + $0x198] sm:$0xff]
      %v1599 = vld [vmem:[#allocation2 + $0x1a0] sm:$0xff]
      %v1600 = vld [vmem:[#allocation2 + $0x1a8] sm:$0xff]
      %v1601 = vld [vmem:[#allocation2 + $0x1b0] sm:$0xff]
      %v1602 = vld [vmem:[#allocation2 + $0x1b8] sm:$0xff]
      %v1603 = vld [vmem:[#allocation2 + $0x1c0] sm:$0xff]
      %v1604 = vld [vmem:[#allocation2 + $0x1c8] sm:$0xff]
      %v1605 = vld [vmem:[#allocation2 + $0x1d0] sm:$0xff]
      %v1606 = vld [vmem:[#allocation2 + $0x1d8] sm:$0xff]
      %v1607 = vld [vmem:[#allocation2 + $0x1e0] sm:$0xff]
      %v1608 = vld [vmem:[#allocation2 + $0x1e8] sm:$0xff]
      %v1609 = vld [vmem:[#allocation2 + $0x1f0] sm:$0xff]
      %v1610 = vld [vmem:[#allocation2 + $0x1f8] sm:$0xff]
      %v1611 = vmax.f32 %v1579, %v1453
      %v1612 = vmax.f32 %v1580, %v1456
      %v1613 = vmax.f32 %v1581, %v1461
      %v1614 = vmax.f32 %v1582, %v1464
      %v1615 = vmax.f32 %v1583, %v1469
      %v1616 = vmax.f32 %v1584, %v1472
      %v1617 = vmax.f32 %v1585, %v1477
      %v1618 = vmax.f32 %v1586, %v1480
      %v1619 = vmax.f32 %v1587, %v1485
      %v1620 = vmax.f32 %v1588, %v1488
      %v1621 = vmax.f32 %v1589, %v1493
      %v1622 = vmax.f32 %v1590, %v1496
      %v1623 = vmax.f32 %v1591, %v1501
      %v1624 = vmax.f32 %v1592, %v1504
      %v1625 = vmax.f32 %v1593, %v1509
      %v1626 = vmax.f32 %v1594, %v1512
      %v1627 = vmax.f32 %v1595, %v1517
      %v1628 = vmax.f32 %v1596, %v1520
      %v1629 = vmax.f32 %v1597, %v1525
      %v1630 = vmax.f32 %v1598, %v1528
      %v1631 = vmax.f32 %v1599, %v1533
      %v1632 = vmax.f32 %v1600, %v1536
      %v1633 = vmax.f32 %v1601, %v1541
      %v1634 = vmax.f32 %v1602, %v1544
      %v1635 = vmax.f32 %v1603, %v1549
      %v1636 = vmax.f32 %v1604, %v1552
      %v1637 = vmax.f32 %v1605, %v1557
      %v1638 = vmax.f32 %v1606, %v1560
      %v1639 = vmax.f32 %v1607, %v1565
      %v1640 = vmax.f32 %v1608, %v1568
      %v1641 = vmax.f32 %v1609, %v1573
      %v1642 = vmax.f32 %v1610, %v1576
      %1643 = vst [vmem:[#allocation2 + $0x100] sm:$0xff] %v1611
      %1644 = vst [vmem:[#allocation2 + $0x108] sm:$0xff] %v1612
      %1645 = vst [vmem:[#allocation2 + $0x110] sm:$0xff] %v1613
      %1646 = vst [vmem:[#allocation2 + $0x118] sm:$0xff] %v1614
      %1647 = vst [vmem:[#allocation2 + $0x120] sm:$0xff] %v1615
      %1648 = vst [vmem:[#allocation2 + $0x128] sm:$0xff] %v1616
      %1649 = vst [vmem:[#allocation2 + $0x130] sm:$0xff] %v1617
      %1650 = vst [vmem:[#allocation2 + $0x138] sm:$0xff] %v1618
      %1651 = vst [vmem:[#allocation2 + $0x140] sm:$0xff] %v1619
      %1652 = vst [vmem:[#allocation2 + $0x148] sm:$0xff] %v1620
      %1653 = vst [vmem:[#allocation2 + $0x150] sm:$0xff] %v1621
      %1654 = vst [vmem:[#allocation2 + $0x158] sm:$0xff] %v1622
      %1655 = vst [vmem:[#allocation2 + $0x160] sm:$0xff] %v1623
      %1656 = vst [vmem:[#allocation2 + $0x168] sm:$0xff] %v1624
      %1657 = vst [vmem:[#allocation2 + $0x170] sm:$0xff] %v1625
      %1658 = vst [vmem:[#allocation2 + $0x178] sm:$0xff] %v1626
      %1659 = vst [vmem:[#allocation2 + $0x180] sm:$0xff] %v1627
      %1660 = vst [vmem:[#allocation2 + $0x188] sm:$0xff] %v1628
      %1661 = vst [vmem:[#allocation2 + $0x190] sm:$0xff] %v1629
      %1662 = vst [vmem:[#allocation2 + $0x198] sm:$0xff] %v1630
      %1663 = vst [vmem:[#allocation2 + $0x1a0] sm:$0xff] %v1631
      %1664 = vst [vmem:[#allocation2 + $0x1a8] sm:$0xff] %v1632
      %1665 = vst [vmem:[#allocation2 + $0x1b0] sm:$0xff] %v1633
      %1666 = vst [vmem:[#allocation2 + $0x1b8] sm:$0xff] %v1634
      %1667 = vst [vmem:[#allocation2 + $0x1c0] sm:$0xff] %v1635
      %1668 = vst [vmem:[#allocation2 + $0x1c8] sm:$0xff] %v1636
      %1669 = vst [vmem:[#allocation2 + $0x1d0] sm:$0xff] %v1637
      %1670 = vst [vmem:[#allocation2 + $0x1d8] sm:$0xff] %v1638
      %1671 = vst [vmem:[#allocation2 + $0x1e0] sm:$0xff] %v1639
      %1672 = vst [vmem:[#allocation2 + $0x1e8] sm:$0xff] %v1640
      %1673 = vst [vmem:[#allocation2 + $0x1f0] sm:$0xff] %v1641
      %1674 = vst [vmem:[#allocation2 + $0x1f8] sm:$0xff] %v1642
      %v1675 = vld [vmem:[%s5 + $0x100] sm:$0xf]
      %v1676 = vld [vmem:[%s5 + $0x104] sm:$0xf]
      %v1677 = vld [vmem:[%s5 + $0x108] sm:$0xf]
      %v1678 = vld [vmem:[%s5 + $0x10c] sm:$0xf]
      %v1679 = vld [vmem:[%s5 + $0x110] sm:$0xf]
      %v1680 = vld [vmem:[%s5 + $0x114] sm:$0xf]
      %v1681 = vld [vmem:[%s5 + $0x118] sm:$0xf]
      %v1682 = vld [vmem:[%s5 + $0x11c] sm:$0xf]
      %v1683 = vld [vmem:[%s5 + $0x120] sm:$0xf]
      %v1684 = vld [vmem:[%s5 + $0x124] sm:$0xf]
      %v1685 = vld [vmem:[%s5 + $0x128] sm:$0xf]
      %v1686 = vld [vmem:[%s5 + $0x12c] sm:$0xf]
      %v1687 = vld [vmem:[%s5 + $0x130] sm:$0xf]
      %v1688 = vld [vmem:[%s5 + $0x134] sm:$0xf]
      %v1689 = vld [vmem:[%s5 + $0x138] sm:$0xf]
      %v1690 = vld [vmem:[%s5 + $0x13c] sm:$0xf]
      %v1691 = vld [vmem:[%s5 + $0x140] sm:$0xf]
      %v1692 = vld [vmem:[%s5 + $0x144] sm:$0xf]
      %v1693 = vld [vmem:[%s5 + $0x148] sm:$0xf]
      %v1694 = vld [vmem:[%s5 + $0x14c] sm:$0xf]
      %v1695 = vld [vmem:[%s5 + $0x150] sm:$0xf]
      %v1696 = vld [vmem:[%s5 + $0x154] sm:$0xf]
      %v1697 = vld [vmem:[%s5 + $0x158] sm:$0xf]
      %v1698 = vld [vmem:[%s5 + $0x15c] sm:$0xf]
      %v1699 = vld [vmem:[%s5 + $0x160] sm:$0xf]
      %v1700 = vld [vmem:[%s5 + $0x164] sm:$0xf]
      %v1701 = vld [vmem:[%s5 + $0x168] sm:$0xf]
      %v1702 = vld [vmem:[%s5 + $0x16c] sm:$0xf]
      %v1703 = vld [vmem:[%s5 + $0x170] sm:$0xf]
      %v1704 = vld [vmem:[%s5 + $0x174] sm:$0xf]
      %v1705 = vld [vmem:[%s5 + $0x178] sm:$0xf]
      %v1706 = vld [vmem:[%s5 + $0x17c] sm:$0xf]
      %v1739 = vunpack.c.l.b16 %v1675
      %v1740 = vunpack.c.l.b16 %v1676
      %v1741 = vunpack.c.l.b16 %v1677
      %v1742 = vunpack.c.l.b16 %v1678
      %v1743 = vunpack.c.l.b16 %v1679
      %v1744 = vunpack.c.l.b16 %v1680
      %v1745 = vunpack.c.l.b16 %v1681
      %v1746 = vunpack.c.l.b16 %v1682
      %v1747 = vunpack.c.l.b16 %v1683
      %v1748 = vunpack.c.l.b16 %v1684
      %v1749 = vunpack.c.l.b16 %v1685
      %v1750 = vunpack.c.l.b16 %v1686
      %v1751 = vunpack.c.l.b16 %v1687
      %v1752 = vunpack.c.l.b16 %v1688
      %v1753 = vunpack.c.l.b16 %v1689
      %v1754 = vunpack.c.l.b16 %v1690
      %v1755 = vunpack.c.l.b16 %v1691
      %v1756 = vunpack.c.l.b16 %v1692
      %v1757 = vunpack.c.l.b16 %v1693
      %v1758 = vunpack.c.l.b16 %v1694
      %v1759 = vunpack.c.l.b16 %v1695
      %v1760 = vunpack.c.l.b16 %v1696
      %v1761 = vunpack.c.l.b16 %v1697
      %v1762 = vunpack.c.l.b16 %v1698
      %v1763 = vunpack.c.l.b16 %v1699
      %v1764 = vunpack.c.l.b16 %v1700
      %v1765 = vunpack.c.l.b16 %v1701
      %v1766 = vunpack.c.l.b16 %v1702
      %v1767 = vunpack.c.l.b16 %v1703
      %v1768 = vunpack.c.l.b16 %v1704
      %v1769 = vunpack.c.l.b16 %v1705
      %v1770 = vunpack.c.l.b16 %v1706
      %v1771 = vpack.c.b16 %v1740, %v1739
      %v1772 = vpack.c.b16 %v1742, %v1741
      %v1773 = vpack.c.b16 %v1744, %v1743
      %v1774 = vpack.c.b16 %v1746, %v1745
      %v1775 = vpack.c.b16 %v1748, %v1747
      %v1776 = vpack.c.b16 %v1750, %v1749
      %v1777 = vpack.c.b16 %v1752, %v1751
      %v1778 = vpack.c.b16 %v1754, %v1753
      %v1779 = vpack.c.b16 %v1756, %v1755
      %v1780 = vpack.c.b16 %v1758, %v1757
      %v1781 = vpack.c.b16 %v1760, %v1759
      %v1782 = vpack.c.b16 %v1762, %v1761
      %v1783 = vpack.c.b16 %v1764, %v1763
      %v1784 = vpack.c.b16 %v1766, %v1765
      %v1785 = vpack.c.b16 %v1768, %v1767
      %v1786 = vpack.c.b16 %v1770, %v1769
      %1803 = vmatprep.subr.bf16.mxu0 0
      %1804 = vmatpush1.bf16.msra.mxu0 %v904
      %1805 = vmatprep.subr.bf16.mxu0 0
      %1806 = vmatpush1.bf16.msra.mxu0 %v903
      %1807 = vmatprep.subr.bf16.mxu0 0
      %1808 = vmatpush1.bf16.msra.mxu0 %v902
      %1809 = vmatprep.subr.bf16.mxu0 0
      %1810 = vmatpush1.bf16.msra.mxu0 %v901
      %1811 = vmatprep.subr.bf16.mxu0 0
      %1812 = vmatpush1.bf16.msra.mxu0 %v900
      %1813 = vmatprep.subr.bf16.mxu0 0
      %1814 = vmatpush1.bf16.msra.mxu0 %v899
      %1815 = vmatprep.subr.bf16.mxu0 0
      %1816 = vmatpush1.bf16.msra.mxu0 %v898
      %1817 = vmatprep.subr.bf16.mxu0 0
      %1818 = vmatpush1.bf16.msra.mxu0 %v897
      %1819 = vmatprep.subr.bf16.mxu0 0
      %1820 = vmatpush2.bf16.msra.mxu0 0
      %1821 = vmatprep.subr.bf16.mxu0 0
      %1822 = vmatpush2.bf16.msra.mxu0 0
      %1823 = vmatprep.subr.bf16.mxu0 0
      %1824 = vmatpush2.bf16.msra.mxu0 0
      %1825 = vmatprep.subr.bf16.mxu0 0
      %1826 = vmatpush2.bf16.msra.mxu0 0
      %1827 = vmatprep.subr.bf16.mxu0 0
      %1828 = vmatpush2.bf16.msra.mxu0 0
      %1829 = vmatprep.subr.bf16.mxu0 0
      %1830 = vmatpush2.bf16.msra.mxu0 0
      %1831 = vmatprep.subr.bf16.mxu0 0
      %1832 = vmatpush2.bf16.msra.mxu0 0
      %1833 = vmatprep.subr.bf16.mxu0 0
      %1834 = vmatpush2.bf16.msra.mxu0 0
      %1835 = vmatprep.mubr.bf16.mxu0 0
      %1836 = vmatmul.mubr.bf16.gmra.mxu0 %v1771
      %v1837 = vpop.f32.mrf.mxu0
      %v1838 = vadd.f32 0.0, %v1837
      %v1839 = vpop.f32.mrf.mxu0
      %v1840 = vpop.f32.mrf.mxu0
      %v1841 = vadd.f32 0.0, %v1840
      %v1842 = vpop.f32.mrf.mxu0
      %1843 = vmatprep.mubr.bf16.mxu0 0
      %1844 = vmatmul.mubr.bf16.gmra.mxu0 %v1772
      %v1845 = vpop.f32.mrf.mxu0
      %v1846 = vadd.f32 0.0, %v1845
      %v1847 = vpop.f32.mrf.mxu0
      %v1848 = vpop.f32.mrf.mxu0
      %v1849 = vadd.f32 0.0, %v1848
      %v1850 = vpop.f32.mrf.mxu0
      %1851 = vmatprep.mubr.bf16.mxu0 0
      %1852 = vmatmul.mubr.bf16.gmra.mxu0 %v1773
      %v1853 = vpop.f32.mrf.mxu0
      %v1854 = vadd.f32 0.0, %v1853
      %v1855 = vpop.f32.mrf.mxu0
      %v1856 = vpop.f32.mrf.mxu0
      %v1857 = vadd.f32 0.0, %v1856
      %v1858 = vpop.f32.mrf.mxu0
      %1859 = vmatprep.mubr.bf16.mxu0 0
      %1860 = vmatmul.mubr.bf16.gmra.mxu0 %v1774
      %v1861 = vpop.f32.mrf.mxu0
      %v1862 = vadd.f32 0.0, %v1861
      %v1863 = vpop.f32.mrf.mxu0
      %v1864 = vpop.f32.mrf.mxu0
      %v1865 = vadd.f32 0.0, %v1864
      %v1866 = vpop.f32.mrf.mxu0
      %1867 = vmatprep.mubr.bf16.mxu0 0
      %1868 = vmatmul.mubr.bf16.gmra.mxu0 %v1775
      %v1869 = vpop.f32.mrf.mxu0
      %v1870 = vadd.f32 0.0, %v1869
      %v1871 = vpop.f32.mrf.mxu0
      %v1872 = vpop.f32.mrf.mxu0
      %v1873 = vadd.f32 0.0, %v1872
      %v1874 = vpop.f32.mrf.mxu0
      %1875 = vmatprep.mubr.bf16.mxu0 0
      %1876 = vmatmul.mubr.bf16.gmra.mxu0 %v1776
      %v1877 = vpop.f32.mrf.mxu0
      %v1878 = vadd.f32 0.0, %v1877
      %v1879 = vpop.f32.mrf.mxu0
      %v1880 = vpop.f32.mrf.mxu0
      %v1881 = vadd.f32 0.0, %v1880
      %v1882 = vpop.f32.mrf.mxu0
      %1883 = vmatprep.mubr.bf16.mxu0 0
      %1884 = vmatmul.mubr.bf16.gmra.mxu0 %v1777
      %v1885 = vpop.f32.mrf.mxu0
      %v1886 = vadd.f32 0.0, %v1885
      %v1887 = vpop.f32.mrf.mxu0
      %v1888 = vpop.f32.mrf.mxu0
      %v1889 = vadd.f32 0.0, %v1888
      %v1890 = vpop.f32.mrf.mxu0
      %1891 = vmatprep.mubr.bf16.mxu0 0
      %1892 = vmatmul.mubr.bf16.gmra.mxu0 %v1778
      %v1893 = vpop.f32.mrf.mxu0
      %v1894 = vadd.f32 0.0, %v1893
      %v1895 = vpop.f32.mrf.mxu0
      %v1896 = vpop.f32.mrf.mxu0
      %v1897 = vadd.f32 0.0, %v1896
      %v1898 = vpop.f32.mrf.mxu0
      %1899 = vmatprep.mubr.bf16.mxu0 0
      %1900 = vmatmul.mubr.bf16.gmra.mxu0 %v1779
      %v1901 = vpop.f32.mrf.mxu0
      %v1902 = vadd.f32 0.0, %v1901
      %v1903 = vpop.f32.mrf.mxu0
      %v1904 = vpop.f32.mrf.mxu0
      %v1905 = vadd.f32 0.0, %v1904
      %v1906 = vpop.f32.mrf.mxu0
      %1907 = vmatprep.mubr.bf16.mxu0 0
      %1908 = vmatmul.mubr.bf16.gmra.mxu0 %v1780
      %v1909 = vpop.f32.mrf.mxu0
      %v1910 = vadd.f32 0.0, %v1909
      %v1911 = vpop.f32.mrf.mxu0
      %v1912 = vpop.f32.mrf.mxu0
      %v1913 = vadd.f32 0.0, %v1912
      %v1914 = vpop.f32.mrf.mxu0
      %1915 = vmatprep.mubr.bf16.mxu0 0
      %1916 = vmatmul.mubr.bf16.gmra.mxu0 %v1781
      %v1917 = vpop.f32.mrf.mxu0
      %v1918 = vadd.f32 0.0, %v1917
      %v1919 = vpop.f32.mrf.mxu0
      %v1920 = vpop.f32.mrf.mxu0
      %v1921 = vadd.f32 0.0, %v1920
      %v1922 = vpop.f32.mrf.mxu0
      %1923 = vmatprep.mubr.bf16.mxu0 0
      %1924 = vmatmul.mubr.bf16.gmra.mxu0 %v1782
      %v1925 = vpop.f32.mrf.mxu0
      %v1926 = vadd.f32 0.0, %v1925
      %v1927 = vpop.f32.mrf.mxu0
      %v1928 = vpop.f32.mrf.mxu0
      %v1929 = vadd.f32 0.0, %v1928
      %v1930 = vpop.f32.mrf.mxu0
      %1931 = vmatprep.mubr.bf16.mxu0 0
      %1932 = vmatmul.mubr.bf16.gmra.mxu0 %v1783
      %v1933 = vpop.f32.mrf.mxu0
      %v1934 = vadd.f32 0.0, %v1933
      %v1935 = vpop.f32.mrf.mxu0
      %v1936 = vpop.f32.mrf.mxu0
      %v1937 = vadd.f32 0.0, %v1936
      %v1938 = vpop.f32.mrf.mxu0
      %1939 = vmatprep.mubr.bf16.mxu0 0
      %1940 = vmatmul.mubr.bf16.gmra.mxu0 %v1784
      %v1941 = vpop.f32.mrf.mxu0
      %v1942 = vadd.f32 0.0, %v1941
      %v1943 = vpop.f32.mrf.mxu0
      %v1944 = vpop.f32.mrf.mxu0
      %v1945 = vadd.f32 0.0, %v1944
      %v1946 = vpop.f32.mrf.mxu0
      %1947 = vmatprep.mubr.bf16.mxu0 0
      %1948 = vmatmul.mubr.bf16.gmra.mxu0 %v1785
      %v1949 = vpop.f32.mrf.mxu0
      %v1950 = vadd.f32 0.0, %v1949
      %v1951 = vpop.f32.mrf.mxu0
      %v1952 = vpop.f32.mrf.mxu0
      %v1953 = vadd.f32 0.0, %v1952
      %v1954 = vpop.f32.mrf.mxu0
      %1955 = vmatprep.mubr.bf16.mxu0 0
      %1956 = vmatmul.mubr.bf16.gmra.mxu0 %v1786
      %v1957 = vpop.f32.mrf.mxu0
      %v1958 = vadd.f32 0.0, %v1957
      %v1959 = vpop.f32.mrf.mxu0
      %v1960 = vpop.f32.mrf.mxu0
      %v1961 = vadd.f32 0.0, %v1960
      %v1962 = vpop.f32.mrf.mxu0
      %1963 = vdwg.mxu0
      %v1964 = vld [vmem:[#allocation2 + $0x200] sm:$0xff]
      %v1965 = vld [vmem:[#allocation2 + $0x208] sm:$0xff]
      %v1966 = vld [vmem:[#allocation2 + $0x210] sm:$0xff]
      %v1967 = vld [vmem:[#allocation2 + $0x218] sm:$0xff]
      %v1968 = vld [vmem:[#allocation2 + $0x220] sm:$0xff]
      %v1969 = vld [vmem:[#allocation2 + $0x228] sm:$0xff]
      %v1970 = vld [vmem:[#allocation2 + $0x230] sm:$0xff]
      %v1971 = vld [vmem:[#allocation2 + $0x238] sm:$0xff]
      %v1972 = vld [vmem:[#allocation2 + $0x240] sm:$0xff]
      %v1973 = vld [vmem:[#allocation2 + $0x248] sm:$0xff]
      %v1974 = vld [vmem:[#allocation2 + $0x250] sm:$0xff]
      %v1975 = vld [vmem:[#allocation2 + $0x258] sm:$0xff]
      %v1976 = vld [vmem:[#allocation2 + $0x260] sm:$0xff]
      %v1977 = vld [vmem:[#allocation2 + $0x268] sm:$0xff]
      %v1978 = vld [vmem:[#allocation2 + $0x270] sm:$0xff]
      %v1979 = vld [vmem:[#allocation2 + $0x278] sm:$0xff]
      %v1980 = vld [vmem:[#allocation2 + $0x280] sm:$0xff]
      %v1981 = vld [vmem:[#allocation2 + $0x288] sm:$0xff]
      %v1982 = vld [vmem:[#allocation2 + $0x290] sm:$0xff]
      %v1983 = vld [vmem:[#allocation2 + $0x298] sm:$0xff]
      %v1984 = vld [vmem:[#allocation2 + $0x2a0] sm:$0xff]
      %v1985 = vld [vmem:[#allocation2 + $0x2a8] sm:$0xff]
      %v1986 = vld [vmem:[#allocation2 + $0x2b0] sm:$0xff]
      %v1987 = vld [vmem:[#allocation2 + $0x2b8] sm:$0xff]
      %v1988 = vld [vmem:[#allocation2 + $0x2c0] sm:$0xff]
      %v1989 = vld [vmem:[#allocation2 + $0x2c8] sm:$0xff]
      %v1990 = vld [vmem:[#allocation2 + $0x2d0] sm:$0xff]
      %v1991 = vld [vmem:[#allocation2 + $0x2d8] sm:$0xff]
      %v1992 = vld [vmem:[#allocation2 + $0x2e0] sm:$0xff]
      %v1993 = vld [vmem:[#allocation2 + $0x2e8] sm:$0xff]
      %v1994 = vld [vmem:[#allocation2 + $0x2f0] sm:$0xff]
      %v1995 = vld [vmem:[#allocation2 + $0x2f8] sm:$0xff]
      %v1996 = vmax.f32 %v1964, %v1838
      %v1997 = vmax.f32 %v1965, %v1841
      %v1998 = vmax.f32 %v1966, %v1846
      %v1999 = vmax.f32 %v1967, %v1849
      %v2000 = vmax.f32 %v1968, %v1854
      %v2001 = vmax.f32 %v1969, %v1857
      %v2002 = vmax.f32 %v1970, %v1862
      %v2003 = vmax.f32 %v1971, %v1865
      %v2004 = vmax.f32 %v1972, %v1870
      %v2005 = vmax.f32 %v1973, %v1873
      %v2006 = vmax.f32 %v1974, %v1878
      %v2007 = vmax.f32 %v1975, %v1881
      %v2008 = vmax.f32 %v1976, %v1886
      %v2009 = vmax.f32 %v1977, %v1889
      %v2010 = vmax.f32 %v1978, %v1894
      %v2011 = vmax.f32 %v1979, %v1897
      %v2012 = vmax.f32 %v1980, %v1902
      %v2013 = vmax.f32 %v1981, %v1905
      %v2014 = vmax.f32 %v1982, %v1910
      %v2015 = vmax.f32 %v1983, %v1913
      %v2016 = vmax.f32 %v1984, %v1918
      %v2017 = vmax.f32 %v1985, %v1921
      %v2018 = vmax.f32 %v1986, %v1926
      %v2019 = vmax.f32 %v1987, %v1929
      %v2020 = vmax.f32 %v1988, %v1934
      %v2021 = vmax.f32 %v1989, %v1937
      %v2022 = vmax.f32 %v1990, %v1942
      %v2023 = vmax.f32 %v1991, %v1945
      %v2024 = vmax.f32 %v1992, %v1950
      %v2025 = vmax.f32 %v1993, %v1953
      %v2026 = vmax.f32 %v1994, %v1958
      %v2027 = vmax.f32 %v1995, %v1961
      %2028 = vst [vmem:[#allocation2 + $0x200] sm:$0xff] %v1996
      %2029 = vst [vmem:[#allocation2 + $0x208] sm:$0xff] %v1997
      %2030 = vst [vmem:[#allocation2 + $0x210] sm:$0xff] %v1998
      %2031 = vst [vmem:[#allocation2 + $0x218] sm:$0xff] %v1999
      %2032 = vst [vmem:[#allocation2 + $0x220] sm:$0xff] %v2000
      %2033 = vst [vmem:[#allocation2 + $0x228] sm:$0xff] %v2001
      %2034 = vst [vmem:[#allocation2 + $0x230] sm:$0xff] %v2002
      %2035 = vst [vmem:[#allocation2 + $0x238] sm:$0xff] %v2003
      %2036 = vst [vmem:[#allocation2 + $0x240] sm:$0xff] %v2004
      %2037 = vst [vmem:[#allocation2 + $0x248] sm:$0xff] %v2005
      %2038 = vst [vmem:[#allocation2 + $0x250] sm:$0xff] %v2006
      %2039 = vst [vmem:[#allocation2 + $0x258] sm:$0xff] %v2007
      %2040 = vst [vmem:[#allocation2 + $0x260] sm:$0xff] %v2008
      %2041 = vst [vmem:[#allocation2 + $0x268] sm:$0xff] %v2009
      %2042 = vst [vmem:[#allocation2 + $0x270] sm:$0xff] %v2010
      %2043 = vst [vmem:[#allocation2 + $0x278] sm:$0xff] %v2011
      %2044 = vst [vmem:[#allocation2 + $0x280] sm:$0xff] %v2012
      %2045 = vst [vmem:[#allocation2 + $0x288] sm:$0xff] %v2013
      %2046 = vst [vmem:[#allocation2 + $0x290] sm:$0xff] %v2014
      %2047 = vst [vmem:[#allocation2 + $0x298] sm:$0xff] %v2015
      %2048 = vst [vmem:[#allocation2 + $0x2a0] sm:$0xff] %v2016
      %2049 = vst [vmem:[#allocation2 + $0x2a8] sm:$0xff] %v2017
      %2050 = vst [vmem:[#allocation2 + $0x2b0] sm:$0xff] %v2018
      %2051 = vst [vmem:[#allocation2 + $0x2b8] sm:$0xff] %v2019
      %2052 = vst [vmem:[#allocation2 + $0x2c0] sm:$0xff] %v2020
      %2053 = vst [vmem:[#allocation2 + $0x2c8] sm:$0xff] %v2021
      %2054 = vst [vmem:[#allocation2 + $0x2d0] sm:$0xff] %v2022
      %2055 = vst [vmem:[#allocation2 + $0x2d8] sm:$0xff] %v2023
      %2056 = vst [vmem:[#allocation2 + $0x2e0] sm:$0xff] %v2024
      %2057 = vst [vmem:[#allocation2 + $0x2e8] sm:$0xff] %v2025
      %2058 = vst [vmem:[#allocation2 + $0x2f0] sm:$0xff] %v2026
      %2059 = vst [vmem:[#allocation2 + $0x2f8] sm:$0xff] %v2027
      %v2060 = vld [vmem:[%s5 + $0x180] sm:$0xf]
      %v2061 = vld [vmem:[%s5 + $0x184] sm:$0xf]
      %v2062 = vld [vmem:[%s5 + $0x188] sm:$0xf]
      %v2063 = vld [vmem:[%s5 + $0x18c] sm:$0xf]
      %v2064 = vld [vmem:[%s5 + $0x190] sm:$0xf]
      %v2065 = vld [vmem:[%s5 + $0x194] sm:$0xf]
      %v2066 = vld [vmem:[%s5 + $0x198] sm:$0xf]
      %v2067 = vld [vmem:[%s5 + $0x19c] sm:$0xf]
      %v2068 = vld [vmem:[%s5 + $0x1a0] sm:$0xf]
      %v2069 = vld [vmem:[%s5 + $0x1a4] sm:$0xf]
      %v2070 = vld [vmem:[%s5 + $0x1a8] sm:$0xf]
      %v2071 = vld [vmem:[%s5 + $0x1ac] sm:$0xf]
      %v2072 = vld [vmem:[%s5 + $0x1b0] sm:$0xf]
      %v2073 = vld [vmem:[%s5 + $0x1b4] sm:$0xf]
      %v2074 = vld [vmem:[%s5 + $0x1b8] sm:$0xf]
      %v2075 = vld [vmem:[%s5 + $0x1bc] sm:$0xf]
      %v2076 = vld [vmem:[%s5 + $0x1c0] sm:$0xf]
      %v2077 = vld [vmem:[%s5 + $0x1c4] sm:$0xf]
      %v2078 = vld [vmem:[%s5 + $0x1c8] sm:$0xf]
      %v2079 = vld [vmem:[%s5 + $0x1cc] sm:$0xf]
      %v2080 = vld [vmem:[%s5 + $0x1d0] sm:$0xf]
      %v2081 = vld [vmem:[%s5 + $0x1d4] sm:$0xf]
      %v2082 = vld [vmem:[%s5 + $0x1d8] sm:$0xf]
      %v2083 = vld [vmem:[%s5 + $0x1dc] sm:$0xf]
      %v2084 = vld [vmem:[%s5 + $0x1e0] sm:$0xf]
      %v2085 = vld [vmem:[%s5 + $0x1e4] sm:$0xf]
      %v2086 = vld [vmem:[%s5 + $0x1e8] sm:$0xf]
      %v2087 = vld [vmem:[%s5 + $0x1ec] sm:$0xf]
      %v2088 = vld [vmem:[%s5 + $0x1f0] sm:$0xf]
      %v2089 = vld [vmem:[%s5 + $0x1f4] sm:$0xf]
      %v2090 = vld [vmem:[%s5 + $0x1f8] sm:$0xf]
      %v2091 = vld [vmem:[%s5 + $0x1fc] sm:$0xf]
      %v2124 = vunpack.c.l.b16 %v2060
      %v2125 = vunpack.c.l.b16 %v2061
      %v2126 = vunpack.c.l.b16 %v2062
      %v2127 = vunpack.c.l.b16 %v2063
      %v2128 = vunpack.c.l.b16 %v2064
      %v2129 = vunpack.c.l.b16 %v2065
      %v2130 = vunpack.c.l.b16 %v2066
      %v2131 = vunpack.c.l.b16 %v2067
      %v2132 = vunpack.c.l.b16 %v2068
      %v2133 = vunpack.c.l.b16 %v2069
      %v2134 = vunpack.c.l.b16 %v2070
      %v2135 = vunpack.c.l.b16 %v2071
      %v2136 = vunpack.c.l.b16 %v2072
      %v2137 = vunpack.c.l.b16 %v2073
      %v2138 = vunpack.c.l.b16 %v2074
      %v2139 = vunpack.c.l.b16 %v2075
      %v2140 = vunpack.c.l.b16 %v2076
      %v2141 = vunpack.c.l.b16 %v2077
      %v2142 = vunpack.c.l.b16 %v2078
      %v2143 = vunpack.c.l.b16 %v2079
      %v2144 = vunpack.c.l.b16 %v2080
      %v2145 = vunpack.c.l.b16 %v2081
      %v2146 = vunpack.c.l.b16 %v2082
      %v2147 = vunpack.c.l.b16 %v2083
      %v2148 = vunpack.c.l.b16 %v2084
      %v2149 = vunpack.c.l.b16 %v2085
      %v2150 = vunpack.c.l.b16 %v2086
      %v2151 = vunpack.c.l.b16 %v2087
      %v2152 = vunpack.c.l.b16 %v2088
      %v2153 = vunpack.c.l.b16 %v2089
      %v2154 = vunpack.c.l.b16 %v2090
      %v2155 = vunpack.c.l.b16 %v2091
      %v2156 = vpack.c.b16 %v2125, %v2124
      %v2157 = vpack.c.b16 %v2127, %v2126
      %v2158 = vpack.c.b16 %v2129, %v2128
      %v2159 = vpack.c.b16 %v2131, %v2130
      %v2160 = vpack.c.b16 %v2133, %v2132
      %v2161 = vpack.c.b16 %v2135, %v2134
      %v2162 = vpack.c.b16 %v2137, %v2136
      %v2163 = vpack.c.b16 %v2139, %v2138
      %v2164 = vpack.c.b16 %v2141, %v2140
      %v2165 = vpack.c.b16 %v2143, %v2142
      %v2166 = vpack.c.b16 %v2145, %v2144
      %v2167 = vpack.c.b16 %v2147, %v2146
      %v2168 = vpack.c.b16 %v2149, %v2148
      %v2169 = vpack.c.b16 %v2151, %v2150
      %v2170 = vpack.c.b16 %v2153, %v2152
      %v2171 = vpack.c.b16 %v2155, %v2154
      %2188 = vmatprep.subr.bf16.mxu0 0
      %2189 = vmatpush1.bf16.msra.mxu0 %v904
      %2190 = vmatprep.subr.bf16.mxu0 0
      %2191 = vmatpush1.bf16.msra.mxu0 %v903
      %2192 = vmatprep.subr.bf16.mxu0 0
      %2193 = vmatpush1.bf16.msra.mxu0 %v902
      %2194 = vmatprep.subr.bf16.mxu0 0
      %2195 = vmatpush1.bf16.msra.mxu0 %v901
      %2196 = vmatprep.subr.bf16.mxu0 0
      %2197 = vmatpush1.bf16.msra.mxu0 %v900
      %2198 = vmatprep.subr.bf16.mxu0 0
      %2199 = vmatpush1.bf16.msra.mxu0 %v899
      %2200 = vmatprep.subr.bf16.mxu0 0
      %2201 = vmatpush1.bf16.msra.mxu0 %v898
      %2202 = vmatprep.subr.bf16.mxu0 0
      %2203 = vmatpush1.bf16.msra.mxu0 %v897
      %2204 = vmatprep.subr.bf16.mxu0 0
      %2205 = vmatpush2.bf16.msra.mxu0 0
      %2206 = vmatprep.subr.bf16.mxu0 0
      %2207 = vmatpush2.bf16.msra.mxu0 0
      %2208 = vmatprep.subr.bf16.mxu0 0
      %2209 = vmatpush2.bf16.msra.mxu0 0
      %2210 = vmatprep.subr.bf16.mxu0 0
      %2211 = vmatpush2.bf16.msra.mxu0 0
      %2212 = vmatprep.subr.bf16.mxu0 0
      %2213 = vmatpush2.bf16.msra.mxu0 0
      %2214 = vmatprep.subr.bf16.mxu0 0
      %2215 = vmatpush2.bf16.msra.mxu0 0
      %2216 = vmatprep.subr.bf16.mxu0 0
      %2217 = vmatpush2.bf16.msra.mxu0 0
      %2218 = vmatprep.subr.bf16.mxu0 0
      %2219 = vmatpush2.bf16.msra.mxu0 0
      %2220 = vmatprep.mubr.bf16.mxu0 0
      %2221 = vmatmul.mubr.bf16.gmra.mxu0 %v2156
      %v2222 = vpop.f32.mrf.mxu0
      %v2223 = vadd.f32 0.0, %v2222
      %v2224 = vpop.f32.mrf.mxu0
      %v2225 = vpop.f32.mrf.mxu0
      %v2226 = vadd.f32 0.0, %v2225
      %v2227 = vpop.f32.mrf.mxu0
      %2228 = vmatprep.mubr.bf16.mxu0 0
      %2229 = vmatmul.mubr.bf16.gmra.mxu0 %v2157
      %v2230 = vpop.f32.mrf.mxu0
      %v2231 = vadd.f32 0.0, %v2230
      %v2232 = vpop.f32.mrf.mxu0
      %v2233 = vpop.f32.mrf.mxu0
      %v2234 = vadd.f32 0.0, %v2233
      %v2235 = vpop.f32.mrf.mxu0
      %2236 = vmatprep.mubr.bf16.mxu0 0
      %2237 = vmatmul.mubr.bf16.gmra.mxu0 %v2158
      %v2238 = vpop.f32.mrf.mxu0
      %v2239 = vadd.f32 0.0, %v2238
      %v2240 = vpop.f32.mrf.mxu0
      %v2241 = vpop.f32.mrf.mxu0
      %v2242 = vadd.f32 0.0, %v2241
      %v2243 = vpop.f32.mrf.mxu0
      %2244 = vmatprep.mubr.bf16.mxu0 0
      %2245 = vmatmul.mubr.bf16.gmra.mxu0 %v2159
      %v2246 = vpop.f32.mrf.mxu0
      %v2247 = vadd.f32 0.0, %v2246
      %v2248 = vpop.f32.mrf.mxu0
      %v2249 = vpop.f32.mrf.mxu0
      %v2250 = vadd.f32 0.0, %v2249
      %v2251 = vpop.f32.mrf.mxu0
      %2252 = vmatprep.mubr.bf16.mxu0 0
      %2253 = vmatmul.mubr.bf16.gmra.mxu0 %v2160
      %v2254 = vpop.f32.mrf.mxu0
      %v2255 = vadd.f32 0.0, %v2254
      %v2256 = vpop.f32.mrf.mxu0
      %v2257 = vpop.f32.mrf.mxu0
      %v2258 = vadd.f32 0.0, %v2257
      %v2259 = vpop.f32.mrf.mxu0
      %2260 = vmatprep.mubr.bf16.mxu0 0
      %2261 = vmatmul.mubr.bf16.gmra.mxu0 %v2161
      %v2262 = vpop.f32.mrf.mxu0
      %v2263 = vadd.f32 0.0, %v2262
      %v2264 = vpop.f32.mrf.mxu0
      %v2265 = vpop.f32.mrf.mxu0
      %v2266 = vadd.f32 0.0, %v2265
      %v2267 = vpop.f32.mrf.mxu0
      %2268 = vmatprep.mubr.bf16.mxu0 0
      %2269 = vmatmul.mubr.bf16.gmra.mxu0 %v2162
      %v2270 = vpop.f32.mrf.mxu0
      %v2271 = vadd.f32 0.0, %v2270
      %v2272 = vpop.f32.mrf.mxu0
      %v2273 = vpop.f32.mrf.mxu0
      %v2274 = vadd.f32 0.0, %v2273
      %v2275 = vpop.f32.mrf.mxu0
      %2276 = vmatprep.mubr.bf16.mxu0 0
      %2277 = vmatmul.mubr.bf16.gmra.mxu0 %v2163
      %v2278 = vpop.f32.mrf.mxu0
      %v2279 = vadd.f32 0.0, %v2278
      %v2280 = vpop.f32.mrf.mxu0
      %v2281 = vpop.f32.mrf.mxu0
      %v2282 = vadd.f32 0.0, %v2281
      %v2283 = vpop.f32.mrf.mxu0
      %2284 = vmatprep.mubr.bf16.mxu0 0
      %2285 = vmatmul.mubr.bf16.gmra.mxu0 %v2164
      %v2286 = vpop.f32.mrf.mxu0
      %v2287 = vadd.f32 0.0, %v2286
      %v2288 = vpop.f32.mrf.mxu0
      %v2289 = vpop.f32.mrf.mxu0
      %v2290 = vadd.f32 0.0, %v2289
      %v2291 = vpop.f32.mrf.mxu0
      %2292 = vmatprep.mubr.bf16.mxu0 0
      %2293 = vmatmul.mubr.bf16.gmra.mxu0 %v2165
      %v2294 = vpop.f32.mrf.mxu0
      %v2295 = vadd.f32 0.0, %v2294
      %v2296 = vpop.f32.mrf.mxu0
      %v2297 = vpop.f32.mrf.mxu0
      %v2298 = vadd.f32 0.0, %v2297
      %v2299 = vpop.f32.mrf.mxu0
      %2300 = vmatprep.mubr.bf16.mxu0 0
      %2301 = vmatmul.mubr.bf16.gmra.mxu0 %v2166
      %v2302 = vpop.f32.mrf.mxu0
      %v2303 = vadd.f32 0.0, %v2302
      %v2304 = vpop.f32.mrf.mxu0
      %v2305 = vpop.f32.mrf.mxu0
      %v2306 = vadd.f32 0.0, %v2305
      %v2307 = vpop.f32.mrf.mxu0
      %2308 = vmatprep.mubr.bf16.mxu0 0
      %2309 = vmatmul.mubr.bf16.gmra.mxu0 %v2167
      %v2310 = vpop.f32.mrf.mxu0
      %v2311 = vadd.f32 0.0, %v2310
      %v2312 = vpop.f32.mrf.mxu0
      %v2313 = vpop.f32.mrf.mxu0
      %v2314 = vadd.f32 0.0, %v2313
      %v2315 = vpop.f32.mrf.mxu0
      %2316 = vmatprep.mubr.bf16.mxu0 0
      %2317 = vmatmul.mubr.bf16.gmra.mxu0 %v2168
      %v2318 = vpop.f32.mrf.mxu0
      %v2319 = vadd.f32 0.0, %v2318
      %v2320 = vpop.f32.mrf.mxu0
      %v2321 = vpop.f32.mrf.mxu0
      %v2322 = vadd.f32 0.0, %v2321
      %v2323 = vpop.f32.mrf.mxu0
      %2324 = vmatprep.mubr.bf16.mxu0 0
      %2325 = vmatmul.mubr.bf16.gmra.mxu0 %v2169
      %v2326 = vpop.f32.mrf.mxu0
      %v2327 = vadd.f32 0.0, %v2326
      %v2328 = vpop.f32.mrf.mxu0
      %v2329 = vpop.f32.mrf.mxu0
      %v2330 = vadd.f32 0.0, %v2329
      %v2331 = vpop.f32.mrf.mxu0
      %2332 = vmatprep.mubr.bf16.mxu0 0
      %2333 = vmatmul.mubr.bf16.gmra.mxu0 %v2170
      %v2334 = vpop.f32.mrf.mxu0
      %v2335 = vadd.f32 0.0, %v2334
      %v2336 = vpop.f32.mrf.mxu0
      %v2337 = vpop.f32.mrf.mxu0
      %v2338 = vadd.f32 0.0, %v2337
      %v2339 = vpop.f32.mrf.mxu0
      %2340 = vmatprep.mubr.bf16.mxu0 0
      %2341 = vmatmul.mubr.bf16.gmra.mxu0 %v2171
      %v2342 = vpop.f32.mrf.mxu0
      %v2343 = vadd.f32 0.0, %v2342
      %v2344 = vpop.f32.mrf.mxu0
      %v2345 = vpop.f32.mrf.mxu0
      %v2346 = vadd.f32 0.0, %v2345
      %v2347 = vpop.f32.mrf.mxu0
      %2348 = vdwg.mxu0
      %v2349 = vld [vmem:[#allocation2 + $0x300] sm:$0xff]
      %v2350 = vld [vmem:[#allocation2 + $0x308] sm:$0xff]
      %v2351 = vld [vmem:[#allocation2 + $0x310] sm:$0xff]
      %v2352 = vld [vmem:[#allocation2 + $0x318] sm:$0xff]
      %v2353 = vld [vmem:[#allocation2 + $0x320] sm:$0xff]
      %v2354 = vld [vmem:[#allocation2 + $0x328] sm:$0xff]
      %v2355 = vld [vmem:[#allocation2 + $0x330] sm:$0xff]
      %v2356 = vld [vmem:[#allocation2 + $0x338] sm:$0xff]
      %v2357 = vld [vmem:[#allocation2 + $0x340] sm:$0xff]
      %v2358 = vld [vmem:[#allocation2 + $0x348] sm:$0xff]
      %v2359 = vld [vmem:[#allocation2 + $0x350] sm:$0xff]
      %v2360 = vld [vmem:[#allocation2 + $0x358] sm:$0xff]
      %v2361 = vld [vmem:[#allocation2 + $0x360] sm:$0xff]
      %v2362 = vld [vmem:[#allocation2 + $0x368] sm:$0xff]
      %v2363 = vld [vmem:[#allocation2 + $0x370] sm:$0xff]
      %v2364 = vld [vmem:[#allocation2 + $0x378] sm:$0xff]
      %v2365 = vld [vmem:[#allocation2 + $0x380] sm:$0xff]
      %v2366 = vld [vmem:[#allocation2 + $0x388] sm:$0xff]
      %v2367 = vld [vmem:[#allocation2 + $0x390] sm:$0xff]
      %v2368 = vld [vmem:[#allocation2 + $0x398] sm:$0xff]
      %v2369 = vld [vmem:[#allocation2 + $0x3a0] sm:$0xff]
      %v2370 = vld [vmem:[#allocation2 + $0x3a8] sm:$0xff]
      %v2371 = vld [vmem:[#allocation2 + $0x3b0] sm:$0xff]
      %v2372 = vld [vmem:[#allocation2 + $0x3b8] sm:$0xff]
      %v2373 = vld [vmem:[#allocation2 + $0x3c0] sm:$0xff]
      %v2374 = vld [vmem:[#allocation2 + $0x3c8] sm:$0xff]
      %v2375 = vld [vmem:[#allocation2 + $0x3d0] sm:$0xff]
      %v2376 = vld [vmem:[#allocation2 + $0x3d8] sm:$0xff]
      %v2377 = vld [vmem:[#allocation2 + $0x3e0] sm:$0xff]
      %v2378 = vld [vmem:[#allocation2 + $0x3e8] sm:$0xff]
      %v2379 = vld [vmem:[#allocation2 + $0x3f0] sm:$0xff]
      %v2380 = vld [vmem:[#allocation2 + $0x3f8] sm:$0xff]
      %v2381 = vmax.f32 %v2349, %v2223
      %v2382 = vmax.f32 %v2350, %v2226
      %v2383 = vmax.f32 %v2351, %v2231
      %v2384 = vmax.f32 %v2352, %v2234
      %v2385 = vmax.f32 %v2353, %v2239
      %v2386 = vmax.f32 %v2354, %v2242
      %v2387 = vmax.f32 %v2355, %v2247
      %v2388 = vmax.f32 %v2356, %v2250
      %v2389 = vmax.f32 %v2357, %v2255
      %v2390 = vmax.f32 %v2358, %v2258
      %v2391 = vmax.f32 %v2359, %v2263
      %v2392 = vmax.f32 %v2360, %v2266
      %v2393 = vmax.f32 %v2361, %v2271
      %v2394 = vmax.f32 %v2362, %v2274
      %v2395 = vmax.f32 %v2363, %v2279
      %v2396 = vmax.f32 %v2364, %v2282
      %v2397 = vmax.f32 %v2365, %v2287
      %v2398 = vmax.f32 %v2366, %v2290
      %v2399 = vmax.f32 %v2367, %v2295
      %v2400 = vmax.f32 %v2368, %v2298
      %v2401 = vmax.f32 %v2369, %v2303
      %v2402 = vmax.f32 %v2370, %v2306
      %v2403 = vmax.f32 %v2371, %v2311
      %v2404 = vmax.f32 %v2372, %v2314
      %v2405 = vmax.f32 %v2373, %v2319
      %v2406 = vmax.f32 %v2374, %v2322
      %v2407 = vmax.f32 %v2375, %v2327
      %v2408 = vmax.f32 %v2376, %v2330
      %v2409 = vmax.f32 %v2377, %v2335
      %v2410 = vmax.f32 %v2378, %v2338
      %v2411 = vmax.f32 %v2379, %v2343
      %v2412 = vmax.f32 %v2380, %v2346
      %2413 = vst [vmem:[#allocation2 + $0x300] sm:$0xff] %v2381
      %2414 = vst [vmem:[#allocation2 + $0x308] sm:$0xff] %v2382
      %2415 = vst [vmem:[#allocation2 + $0x310] sm:$0xff] %v2383
      %2416 = vst [vmem:[#allocation2 + $0x318] sm:$0xff] %v2384
      %2417 = vst [vmem:[#allocation2 + $0x320] sm:$0xff] %v2385
      %2418 = vst [vmem:[#allocation2 + $0x328] sm:$0xff] %v2386
      %2419 = vst [vmem:[#allocation2 + $0x330] sm:$0xff] %v2387
      %2420 = vst [vmem:[#allocation2 + $0x338] sm:$0xff] %v2388
      %2421 = vst [vmem:[#allocation2 + $0x340] sm:$0xff] %v2389
      %2422 = vst [vmem:[#allocation2 + $0x348] sm:$0xff] %v2390
      %2423 = vst [vmem:[#allocation2 + $0x350] sm:$0xff] %v2391
      %2424 = vst [vmem:[#allocation2 + $0x358] sm:$0xff] %v2392
      %2425 = vst [vmem:[#allocation2 + $0x360] sm:$0xff] %v2393
      %2426 = vst [vmem:[#allocation2 + $0x368] sm:$0xff] %v2394
      %2427 = vst [vmem:[#allocation2 + $0x370] sm:$0xff] %v2395
      %2428 = vst [vmem:[#allocation2 + $0x378] sm:$0xff] %v2396
      %2429 = vst [vmem:[#allocation2 + $0x380] sm:$0xff] %v2397
      %2430 = vst [vmem:[#allocation2 + $0x388] sm:$0xff] %v2398
      %2431 = vst [vmem:[#allocation2 + $0x390] sm:$0xff] %v2399
      %2432 = vst [vmem:[#allocation2 + $0x398] sm:$0xff] %v2400
      %2433 = vst [vmem:[#allocation2 + $0x3a0] sm:$0xff] %v2401
      %2434 = vst [vmem:[#allocation2 + $0x3a8] sm:$0xff] %v2402
      %2435 = vst [vmem:[#allocation2 + $0x3b0] sm:$0xff] %v2403
      %2436 = vst [vmem:[#allocation2 + $0x3b8] sm:$0xff] %v2404
      %2437 = vst [vmem:[#allocation2 + $0x3c0] sm:$0xff] %v2405
      %2438 = vst [vmem:[#allocation2 + $0x3c8] sm:$0xff] %v2406
      %2439 = vst [vmem:[#allocation2 + $0x3d0] sm:$0xff] %v2407
      %2440 = vst [vmem:[#allocation2 + $0x3d8] sm:$0xff] %v2408
      %2441 = vst [vmem:[#allocation2 + $0x3e0] sm:$0xff] %v2409
      %2442 = vst [vmem:[#allocation2 + $0x3e8] sm:$0xff] %v2410
      %2443 = vst [vmem:[#allocation2 + $0x3f0] sm:$0xff] %v2411
      %2444 = vst [vmem:[#allocation2 + $0x3f8] sm:$0xff] %v2412
      // Predicated region
      $region53: #{tpu_custom_call.1} parent=47 // pred_check
        %p2445 = pneg %p300
      $region54: #{tpu_custom_call.1} parent=47 // pred_check_branch
        %2447 = sbr.rel (%p2445) target = $region56
      $region55: #{tpu_custom_call.1} parent=47 // pred_region
        %v2448 = vld [vmem:[#allocation2] sm:$0xff]
        %v2449 = vld [vmem:[#allocation2 + $0x8] sm:$0xff]
        %v2450 = vld [vmem:[#allocation2 + $0x10] sm:$0xff]
        %v2451 = vld [vmem:[#allocation2 + $0x18] sm:$0xff]
        %v2452 = vld [vmem:[#allocation2 + $0x20] sm:$0xff]
        %v2453 = vld [vmem:[#allocation2 + $0x28] sm:$0xff]
        %v2454 = vld [vmem:[#allocation2 + $0x30] sm:$0xff]
        %v2455 = vld [vmem:[#allocation2 + $0x38] sm:$0xff]
        %v2456 = vld [vmem:[#allocation2 + $0x40] sm:$0xff]
        %v2457 = vld [vmem:[#allocation2 + $0x48] sm:$0xff]
        %v2458 = vld [vmem:[#allocation2 + $0x50] sm:$0xff]
        %v2459 = vld [vmem:[#allocation2 + $0x58] sm:$0xff]
        %v2460 = vld [vmem:[#allocation2 + $0x60] sm:$0xff]
        %v2461 = vld [vmem:[#allocation2 + $0x68] sm:$0xff]
        %v2462 = vld [vmem:[#allocation2 + $0x70] sm:$0xff]
        %v2463 = vld [vmem:[#allocation2 + $0x78] sm:$0xff]
        %v2464 = vld [vmem:[#allocation2 + $0x80] sm:$0xff]
        %v2465 = vld [vmem:[#allocation2 + $0x88] sm:$0xff]
        %v2466 = vld [vmem:[#allocation2 + $0x90] sm:$0xff]
        %v2467 = vld [vmem:[#allocation2 + $0x98] sm:$0xff]
        %v2468 = vld [vmem:[#allocation2 + $0xa0] sm:$0xff]
        %v2469 = vld [vmem:[#allocation2 + $0xa8] sm:$0xff]
        %v2470 = vld [vmem:[#allocation2 + $0xb0] sm:$0xff]
        %v2471 = vld [vmem:[#allocation2 + $0xb8] sm:$0xff]
        %v2472 = vld [vmem:[#allocation2 + $0xc0] sm:$0xff]
        %v2473 = vld [vmem:[#allocation2 + $0xc8] sm:$0xff]
        %v2474 = vld [vmem:[#allocation2 + $0xd0] sm:$0xff]
        %v2475 = vld [vmem:[#allocation2 + $0xd8] sm:$0xff]
        %v2476 = vld [vmem:[#allocation2 + $0xe0] sm:$0xff]
        %v2477 = vld [vmem:[#allocation2 + $0xe8] sm:$0xff]
        %v2478 = vld [vmem:[#allocation2 + $0xf0] sm:$0xff]
        %v2479 = vld [vmem:[#allocation2 + $0xf8] sm:$0xff]
        %v2480 = vld [vmem:[#allocation2 + $0x100] sm:$0xff]
        %v2481 = vld [vmem:[#allocation2 + $0x108] sm:$0xff]
        %v2482 = vld [vmem:[#allocation2 + $0x110] sm:$0xff]
        %v2483 = vld [vmem:[#allocation2 + $0x118] sm:$0xff]
        %v2484 = vld [vmem:[#allocation2 + $0x120] sm:$0xff]
        %v2485 = vld [vmem:[#allocation2 + $0x128] sm:$0xff]
        %v2486 = vld [vmem:[#allocation2 + $0x130] sm:$0xff]
        %v2487 = vld [vmem:[#allocation2 + $0x138] sm:$0xff]
        %v2488 = vld [vmem:[#allocation2 + $0x140] sm:$0xff]
        %v2489 = vld [vmem:[#allocation2 + $0x148] sm:$0xff]
        %v2490 = vld [vmem:[#allocation2 + $0x150] sm:$0xff]
        %v2491 = vld [vmem:[#allocation2 + $0x158] sm:$0xff]
        %v2492 = vld [vmem:[#allocation2 + $0x160] sm:$0xff]
        %v2493 = vld [vmem:[#allocation2 + $0x168] sm:$0xff]
        %v2494 = vld [vmem:[#allocation2 + $0x170] sm:$0xff]
        %v2495 = vld [vmem:[#allocation2 + $0x178] sm:$0xff]
        %v2496 = vld [vmem:[#allocation2 + $0x180] sm:$0xff]
        %v2497 = vld [vmem:[#allocation2 + $0x188] sm:$0xff]
        %v2498 = vld [vmem:[#allocation2 + $0x190] sm:$0xff]
        %v2499 = vld [vmem:[#allocation2 + $0x198] sm:$0xff]
        %v2500 = vld [vmem:[#allocation2 + $0x1a0] sm:$0xff]
        %v2501 = vld [vmem:[#allocation2 + $0x1a8] sm:$0xff]
        %v2502 = vld [vmem:[#allocation2 + $0x1b0] sm:$0xff]
        %v2503 = vld [vmem:[#allocation2 + $0x1b8] sm:$0xff]
        %v2504 = vld [vmem:[#allocation2 + $0x1c0] sm:$0xff]
        %v2505 = vld [vmem:[#allocation2 + $0x1c8] sm:$0xff]
        %v2506 = vld [vmem:[#allocation2 + $0x1d0] sm:$0xff]
        %v2507 = vld [vmem:[#allocation2 + $0x1d8] sm:$0xff]
        %v2508 = vld [vmem:[#allocation2 + $0x1e0] sm:$0xff]
        %v2509 = vld [vmem:[#allocation2 + $0x1e8] sm:$0xff]
        %v2510 = vld [vmem:[#allocation2 + $0x1f0] sm:$0xff]
        %v2511 = vld [vmem:[#allocation2 + $0x1f8] sm:$0xff]
        %v2512 = vld [vmem:[#allocation2 + $0x200] sm:$0xff]
        %v2513 = vld [vmem:[#allocation2 + $0x208] sm:$0xff]
        %v2514 = vld [vmem:[#allocation2 + $0x210] sm:$0xff]
        %v2515 = vld [vmem:[#allocation2 + $0x218] sm:$0xff]
        %v2516 = vld [vmem:[#allocation2 + $0x220] sm:$0xff]
        %v2517 = vld [vmem:[#allocation2 + $0x228] sm:$0xff]
        %v2518 = vld [vmem:[#allocation2 + $0x230] sm:$0xff]
        %v2519 = vld [vmem:[#allocation2 + $0x238] sm:$0xff]
        %v2520 = vld [vmem:[#allocation2 + $0x240] sm:$0xff]
        %v2521 = vld [vmem:[#allocation2 + $0x248] sm:$0xff]
        %v2522 = vld [vmem:[#allocation2 + $0x250] sm:$0xff]
        %v2523 = vld [vmem:[#allocation2 + $0x258] sm:$0xff]
        %v2524 = vld [vmem:[#allocation2 + $0x260] sm:$0xff]
        %v2525 = vld [vmem:[#allocation2 + $0x268] sm:$0xff]
        %v2526 = vld [vmem:[#allocation2 + $0x270] sm:$0xff]
        %v2527 = vld [vmem:[#allocation2 + $0x278] sm:$0xff]
        %v2528 = vld [vmem:[#allocation2 + $0x280] sm:$0xff]
        %v2529 = vld [vmem:[#allocation2 + $0x288] sm:$0xff]
        %v2530 = vld [vmem:[#allocation2 + $0x290] sm:$0xff]
        %v2531 = vld [vmem:[#allocation2 + $0x298] sm:$0xff]
        %v2532 = vld [vmem:[#allocation2 + $0x2a0] sm:$0xff]
        %v2533 = vld [vmem:[#allocation2 + $0x2a8] sm:$0xff]
        %v2534 = vld [vmem:[#allocation2 + $0x2b0] sm:$0xff]
        %v2535 = vld [vmem:[#allocation2 + $0x2b8] sm:$0xff]
        %v2536 = vld [vmem:[#allocation2 + $0x2c0] sm:$0xff]
        %v2537 = vld [vmem:[#allocation2 + $0x2c8] sm:$0xff]
        %v2538 = vld [vmem:[#allocation2 + $0x2d0] sm:$0xff]
        %v2539 = vld [vmem:[#allocation2 + $0x2d8] sm:$0xff]
        %v2540 = vld [vmem:[#allocation2 + $0x2e0] sm:$0xff]
        %v2541 = vld [vmem:[#allocation2 + $0x2e8] sm:$0xff]
        %v2542 = vld [vmem:[#allocation2 + $0x2f0] sm:$0xff]
        %v2543 = vld [vmem:[#allocation2 + $0x2f8] sm:$0xff]
        %v2544 = vld [vmem:[#allocation2 + $0x300] sm:$0xff]
        %v2545 = vld [vmem:[#allocation2 + $0x308] sm:$0xff]
        %v2546 = vld [vmem:[#allocation2 + $0x310] sm:$0xff]
        %v2547 = vld [vmem:[#allocation2 + $0x318] sm:$0xff]
        %v2548 = vld [vmem:[#allocation2 + $0x320] sm:$0xff]
        %v2549 = vld [vmem:[#allocation2 + $0x328] sm:$0xff]
        %v2550 = vld [vmem:[#allocation2 + $0x330] sm:$0xff]
        %v2551 = vld [vmem:[#allocation2 + $0x338] sm:$0xff]
        %v2552 = vld [vmem:[#allocation2 + $0x340] sm:$0xff]
        %v2553 = vld [vmem:[#allocation2 + $0x348] sm:$0xff]
        %v2554 = vld [vmem:[#allocation2 + $0x350] sm:$0xff]
        %v2555 = vld [vmem:[#allocation2 + $0x358] sm:$0xff]
        %v2556 = vld [vmem:[#allocation2 + $0x360] sm:$0xff]
        %v2557 = vld [vmem:[#allocation2 + $0x368] sm:$0xff]
        %v2558 = vld [vmem:[#allocation2 + $0x370] sm:$0xff]
        %v2559 = vld [vmem:[#allocation2 + $0x378] sm:$0xff]
        %v2560 = vld [vmem:[#allocation2 + $0x380] sm:$0xff]
        %v2561 = vld [vmem:[#allocation2 + $0x388] sm:$0xff]
        %v2562 = vld [vmem:[#allocation2 + $0x390] sm:$0xff]
        %v2563 = vld [vmem:[#allocation2 + $0x398] sm:$0xff]
        %v2564 = vld [vmem:[#allocation2 + $0x3a0] sm:$0xff]
        %v2565 = vld [vmem:[#allocation2 + $0x3a8] sm:$0xff]
        %v2566 = vld [vmem:[#allocation2 + $0x3b0] sm:$0xff]
        %v2567 = vld [vmem:[#allocation2 + $0x3b8] sm:$0xff]
        %v2568 = vld [vmem:[#allocation2 + $0x3c0] sm:$0xff]
        %v2569 = vld [vmem:[#allocation2 + $0x3c8] sm:$0xff]
        %v2570 = vld [vmem:[#allocation2 + $0x3d0] sm:$0xff]
        %v2571 = vld [vmem:[#allocation2 + $0x3d8] sm:$0xff]
        %v2572 = vld [vmem:[#allocation2 + $0x3e0] sm:$0xff]
        %v2573 = vld [vmem:[#allocation2 + $0x3e8] sm:$0xff]
        %v2574 = vld [vmem:[#allocation2 + $0x3f0] sm:$0xff]
        %v2575 = vld [vmem:[#allocation2 + $0x3f8] sm:$0xff]
        %2576 = vmax.xlane.f32.xlu0 %v2448
        %v2577 = vpop.xlane.xlu0 %2576
        %2578 = vmax.xlane.f32.xlu0 %v2449
        %v2579 = vpop.xlane.xlu0 %2578
        %2580 = vmax.xlane.f32.xlu0 %v2450
        %v2581 = vpop.xlane.xlu0 %2580
        %2582 = vmax.xlane.f32.xlu0 %v2451
        %v2583 = vpop.xlane.xlu0 %2582
        %2584 = vmax.xlane.f32.xlu0 %v2452
        %v2585 = vpop.xlane.xlu0 %2584
        %2586 = vmax.xlane.f32.xlu0 %v2453
        %v2587 = vpop.xlane.xlu0 %2586
        %2588 = vmax.xlane.f32.xlu0 %v2454
        %v2589 = vpop.xlane.xlu0 %2588
        %2590 = vmax.xlane.f32.xlu0 %v2455
        %v2591 = vpop.xlane.xlu0 %2590
        %2592 = vmax.xlane.f32.xlu0 %v2456
        %v2593 = vpop.xlane.xlu0 %2592
        %2594 = vmax.xlane.f32.xlu0 %v2457
        %v2595 = vpop.xlane.xlu0 %2594
        %2596 = vmax.xlane.f32.xlu0 %v2458
        %v2597 = vpop.xlane.xlu0 %2596
        %2598 = vmax.xlane.f32.xlu0 %v2459
        %v2599 = vpop.xlane.xlu0 %2598
        %2600 = vmax.xlane.f32.xlu0 %v2460
        %v2601 = vpop.xlane.xlu0 %2600
        %2602 = vmax.xlane.f32.xlu0 %v2461
        %v2603 = vpop.xlane.xlu0 %2602
        %2604 = vmax.xlane.f32.xlu0 %v2462
        %v2605 = vpop.xlane.xlu0 %2604
        %2606 = vmax.xlane.f32.xlu0 %v2463
        %v2607 = vpop.xlane.xlu0 %2606
        %2608 = vmax.xlane.f32.xlu0 %v2464
        %v2609 = vpop.xlane.xlu0 %2608
        %2610 = vmax.xlane.f32.xlu0 %v2465
        %v2611 = vpop.xlane.xlu0 %2610
        %2612 = vmax.xlane.f32.xlu0 %v2466
        %v2613 = vpop.xlane.xlu0 %2612
        %2614 = vmax.xlane.f32.xlu0 %v2467
        %v2615 = vpop.xlane.xlu0 %2614
        %2616 = vmax.xlane.f32.xlu0 %v2468
        %v2617 = vpop.xlane.xlu0 %2616
        %2618 = vmax.xlane.f32.xlu0 %v2469
        %v2619 = vpop.xlane.xlu0 %2618
        %2620 = vmax.xlane.f32.xlu0 %v2470
        %v2621 = vpop.xlane.xlu0 %2620
        %2622 = vmax.xlane.f32.xlu0 %v2471
        %v2623 = vpop.xlane.xlu0 %2622
        %2624 = vmax.xlane.f32.xlu0 %v2472
        %v2625 = vpop.xlane.xlu0 %2624
        %2626 = vmax.xlane.f32.xlu0 %v2473
        %v2627 = vpop.xlane.xlu0 %2626
        %2628 = vmax.xlane.f32.xlu0 %v2474
        %v2629 = vpop.xlane.xlu0 %2628
        %2630 = vmax.xlane.f32.xlu0 %v2475
        %v2631 = vpop.xlane.xlu0 %2630
        %2632 = vmax.xlane.f32.xlu0 %v2476
        %v2633 = vpop.xlane.xlu0 %2632
        %2634 = vmax.xlane.f32.xlu0 %v2477
        %v2635 = vpop.xlane.xlu0 %2634
        %2636 = vmax.xlane.f32.xlu0 %v2478
        %v2637 = vpop.xlane.xlu0 %2636
        %2638 = vmax.xlane.f32.xlu0 %v2479
        %v2639 = vpop.xlane.xlu0 %2638
        %2640 = vmax.xlane.f32.xlu0 %v2480
        %v2641 = vpop.xlane.xlu0 %2640
        %2642 = vmax.xlane.f32.xlu0 %v2481
        %v2643 = vpop.xlane.xlu0 %2642
        %2644 = vmax.xlane.f32.xlu0 %v2482
        %v2645 = vpop.xlane.xlu0 %2644
        %2646 = vmax.xlane.f32.xlu0 %v2483
        %v2647 = vpop.xlane.xlu0 %2646
        %2648 = vmax.xlane.f32.xlu0 %v2484
        %v2649 = vpop.xlane.xlu0 %2648
        %2650 = vmax.xlane.f32.xlu0 %v2485
        %v2651 = vpop.xlane.xlu0 %2650
        %2652 = vmax.xlane.f32.xlu0 %v2486
        %v2653 = vpop.xlane.xlu0 %2652
        %2654 = vmax.xlane.f32.xlu0 %v2487
        %v2655 = vpop.xlane.xlu0 %2654
        %2656 = vmax.xlane.f32.xlu0 %v2488
        %v2657 = vpop.xlane.xlu0 %2656
        %2658 = vmax.xlane.f32.xlu0 %v2489
        %v2659 = vpop.xlane.xlu0 %2658
        %2660 = vmax.xlane.f32.xlu0 %v2490
        %v2661 = vpop.xlane.xlu0 %2660
        %2662 = vmax.xlane.f32.xlu0 %v2491
        %v2663 = vpop.xlane.xlu0 %2662
        %2664 = vmax.xlane.f32.xlu0 %v2492
        %v2665 = vpop.xlane.xlu0 %2664
        %2666 = vmax.xlane.f32.xlu0 %v2493
        %v2667 = vpop.xlane.xlu0 %2666
        %2668 = vmax.xlane.f32.xlu0 %v2494
        %v2669 = vpop.xlane.xlu0 %2668
        %2670 = vmax.xlane.f32.xlu0 %v2495
        %v2671 = vpop.xlane.xlu0 %2670
        %2672 = vmax.xlane.f32.xlu0 %v2496
        %v2673 = vpop.xlane.xlu0 %2672
        %2674 = vmax.xlane.f32.xlu0 %v2497
        %v2675 = vpop.xlane.xlu0 %2674
        %2676 = vmax.xlane.f32.xlu0 %v2498
        %v2677 = vpop.xlane.xlu0 %2676
        %2678 = vmax.xlane.f32.xlu0 %v2499
        %v2679 = vpop.xlane.xlu0 %2678
        %2680 = vmax.xlane.f32.xlu0 %v2500
        %v2681 = vpop.xlane.xlu0 %2680
        %2682 = vmax.xlane.f32.xlu0 %v2501
        %v2683 = vpop.xlane.xlu0 %2682
        %2684 = vmax.xlane.f32.xlu0 %v2502
        %v2685 = vpop.xlane.xlu0 %2684
        %2686 = vmax.xlane.f32.xlu0 %v2503
        %v2687 = vpop.xlane.xlu0 %2686
        %2688 = vmax.xlane.f32.xlu0 %v2504
        %v2689 = vpop.xlane.xlu0 %2688
        %2690 = vmax.xlane.f32.xlu0 %v2505
        %v2691 = vpop.xlane.xlu0 %2690
        %2692 = vmax.xlane.f32.xlu0 %v2506
        %v2693 = vpop.xlane.xlu0 %2692
        %2694 = vmax.xlane.f32.xlu0 %v2507
        %v2695 = vpop.xlane.xlu0 %2694
        %2696 = vmax.xlane.f32.xlu0 %v2508
        %v2697 = vpop.xlane.xlu0 %2696
        %2698 = vmax.xlane.f32.xlu0 %v2509
        %v2699 = vpop.xlane.xlu0 %2698
        %2700 = vmax.xlane.f32.xlu0 %v2510
        %v2701 = vpop.xlane.xlu0 %2700
        %2702 = vmax.xlane.f32.xlu0 %v2511
        %v2703 = vpop.xlane.xlu0 %2702
        %2704 = vmax.xlane.f32.xlu0 %v2512
        %v2705 = vpop.xlane.xlu0 %2704
        %2706 = vmax.xlane.f32.xlu0 %v2513
        %v2707 = vpop.xlane.xlu0 %2706
        %2708 = vmax.xlane.f32.xlu0 %v2514
        %v2709 = vpop.xlane.xlu0 %2708
        %2710 = vmax.xlane.f32.xlu0 %v2515
        %v2711 = vpop.xlane.xlu0 %2710
        %2712 = vmax.xlane.f32.xlu0 %v2516
        %v2713 = vpop.xlane.xlu0 %2712
        %2714 = vmax.xlane.f32.xlu0 %v2517
        %v2715 = vpop.xlane.xlu0 %2714
        %2716 = vmax.xlane.f32.xlu0 %v2518
        %v2717 = vpop.xlane.xlu0 %2716
        %2718 = vmax.xlane.f32.xlu0 %v2519
        %v2719 = vpop.xlane.xlu0 %2718
        %2720 = vmax.xlane.f32.xlu0 %v2520
        %v2721 = vpop.xlane.xlu0 %2720
        %2722 = vmax.xlane.f32.xlu0 %v2521
        %v2723 = vpop.xlane.xlu0 %2722
        %2724 = vmax.xlane.f32.xlu0 %v2522
        %v2725 = vpop.xlane.xlu0 %2724
        %2726 = vmax.xlane.f32.xlu0 %v2523
        %v2727 = vpop.xlane.xlu0 %2726
        %2728 = vmax.xlane.f32.xlu0 %v2524
        %v2729 = vpop.xlane.xlu0 %2728
        %2730 = vmax.xlane.f32.xlu0 %v2525
        %v2731 = vpop.xlane.xlu0 %2730
        %2732 = vmax.xlane.f32.xlu0 %v2526
        %v2733 = vpop.xlane.xlu0 %2732
        %2734 = vmax.xlane.f32.xlu0 %v2527
        %v2735 = vpop.xlane.xlu0 %2734
        %2736 = vmax.xlane.f32.xlu0 %v2528
        %v2737 = vpop.xlane.xlu0 %2736
        %2738 = vmax.xlane.f32.xlu0 %v2529
        %v2739 = vpop.xlane.xlu0 %2738
        %2740 = vmax.xlane.f32.xlu0 %v2530
        %v2741 = vpop.xlane.xlu0 %2740
        %2742 = vmax.xlane.f32.xlu0 %v2531
        %v2743 = vpop.xlane.xlu0 %2742
        %2744 = vmax.xlane.f32.xlu0 %v2532
        %v2745 = vpop.xlane.xlu0 %2744
        %2746 = vmax.xlane.f32.xlu0 %v2533
        %v2747 = vpop.xlane.xlu0 %2746
        %2748 = vmax.xlane.f32.xlu0 %v2534
        %v2749 = vpop.xlane.xlu0 %2748
        %2750 = vmax.xlane.f32.xlu0 %v2535
        %v2751 = vpop.xlane.xlu0 %2750
        %2752 = vmax.xlane.f32.xlu0 %v2536
        %v2753 = vpop.xlane.xlu0 %2752
        %2754 = vmax.xlane.f32.xlu0 %v2537
        %v2755 = vpop.xlane.xlu0 %2754
        %2756 = vmax.xlane.f32.xlu0 %v2538
        %v2757 = vpop.xlane.xlu0 %2756
        %2758 = vmax.xlane.f32.xlu0 %v2539
        %v2759 = vpop.xlane.xlu0 %2758
        %2760 = vmax.xlane.f32.xlu0 %v2540
        %v2761 = vpop.xlane.xlu0 %2760
        %2762 = vmax.xlane.f32.xlu0 %v2541
        %v2763 = vpop.xlane.xlu0 %2762
        %2764 = vmax.xlane.f32.xlu0 %v2542
        %v2765 = vpop.xlane.xlu0 %2764
        %2766 = vmax.xlane.f32.xlu0 %v2543
        %v2767 = vpop.xlane.xlu0 %2766
        %2768 = vmax.xlane.f32.xlu0 %v2544
        %v2769 = vpop.xlane.xlu0 %2768
        %2770 = vmax.xlane.f32.xlu0 %v2545
        %v2771 = vpop.xlane.xlu0 %2770
        %2772 = vmax.xlane.f32.xlu0 %v2546
        %v2773 = vpop.xlane.xlu0 %2772
        %2774 = vmax.xlane.f32.xlu0 %v2547
        %v2775 = vpop.xlane.xlu0 %2774
        %2776 = vmax.xlane.f32.xlu0 %v2548
        %v2777 = vpop.xlane.xlu0 %2776
        %2778 = vmax.xlane.f32.xlu0 %v2549
        %v2779 = vpop.xlane.xlu0 %2778
        %2780 = vmax.xlane.f32.xlu0 %v2550
        %v2781 = vpop.xlane.xlu0 %2780
        %2782 = vmax.xlane.f32.xlu0 %v2551
        %v2783 = vpop.xlane.xlu0 %2782
        %2784 = vmax.xlane.f32.xlu0 %v2552
        %v2785 = vpop.xlane.xlu0 %2784
        %2786 = vmax.xlane.f32.xlu0 %v2553
        %v2787 = vpop.xlane.xlu0 %2786
        %2788 = vmax.xlane.f32.xlu0 %v2554
        %v2789 = vpop.xlane.xlu0 %2788
        %2790 = vmax.xlane.f32.xlu0 %v2555
        %v2791 = vpop.xlane.xlu0 %2790
        %2792 = vmax.xlane.f32.xlu0 %v2556
        %v2793 = vpop.xlane.xlu0 %2792
        %2794 = vmax.xlane.f32.xlu0 %v2557
        %v2795 = vpop.xlane.xlu0 %2794
        %2796 = vmax.xlane.f32.xlu0 %v2558
        %v2797 = vpop.xlane.xlu0 %2796
        %2798 = vmax.xlane.f32.xlu0 %v2559
        %v2799 = vpop.xlane.xlu0 %2798
        %2800 = vmax.xlane.f32.xlu0 %v2560
        %v2801 = vpop.xlane.xlu0 %2800
        %2802 = vmax.xlane.f32.xlu0 %v2561
        %v2803 = vpop.xlane.xlu0 %2802
        %2804 = vmax.xlane.f32.xlu0 %v2562
        %v2805 = vpop.xlane.xlu0 %2804
        %2806 = vmax.xlane.f32.xlu0 %v2563
        %v2807 = vpop.xlane.xlu0 %2806
        %2808 = vmax.xlane.f32.xlu0 %v2564
        %v2809 = vpop.xlane.xlu0 %2808
        %2810 = vmax.xlane.f32.xlu0 %v2565
        %v2811 = vpop.xlane.xlu0 %2810
        %2812 = vmax.xlane.f32.xlu0 %v2566
        %v2813 = vpop.xlane.xlu0 %2812
        %2814 = vmax.xlane.f32.xlu0 %v2567
        %v2815 = vpop.xlane.xlu0 %2814
        %2816 = vmax.xlane.f32.xlu0 %v2568
        %v2817 = vpop.xlane.xlu0 %2816
        %2818 = vmax.xlane.f32.xlu0 %v2569
        %v2819 = vpop.xlane.xlu0 %2818
        %2820 = vmax.xlane.f32.xlu0 %v2570
        %v2821 = vpop.xlane.xlu0 %2820
        %2822 = vmax.xlane.f32.xlu0 %v2571
        %v2823 = vpop.xlane.xlu0 %2822
        %2824 = vmax.xlane.f32.xlu0 %v2572
        %v2825 = vpop.xlane.xlu0 %2824
        %2826 = vmax.xlane.f32.xlu0 %v2573
        %v2827 = vpop.xlane.xlu0 %2826
        %2828 = vmax.xlane.f32.xlu0 %v2574
        %v2829 = vpop.xlane.xlu0 %2828
        %2830 = vmax.xlane.f32.xlu0 %v2575
        %v2831 = vpop.xlane.xlu0 %2830
        %v2832 = vld [vmem:[%s6] sm:$0xff]
        %v2833 = vld [vmem:[%s6 + $0x8] sm:$0xff]
        %v2834 = vld [vmem:[%s6 + $0x10] sm:$0xff]
        %v2835 = vld [vmem:[%s6 + $0x18] sm:$0xff]
        %v2836 = vld [vmem:[%s6 + $0x20] sm:$0xff]
        %v2837 = vld [vmem:[%s6 + $0x28] sm:$0xff]
        %v2838 = vld [vmem:[%s6 + $0x30] sm:$0xff]
        %v2839 = vld [vmem:[%s6 + $0x38] sm:$0xff]
        %v2840 = vld [vmem:[%s6 + $0x40] sm:$0xff]
        %v2841 = vld [vmem:[%s6 + $0x48] sm:$0xff]
        %v2842 = vld [vmem:[%s6 + $0x50] sm:$0xff]
        %v2843 = vld [vmem:[%s6 + $0x58] sm:$0xff]
        %v2844 = vld [vmem:[%s6 + $0x60] sm:$0xff]
        %v2845 = vld [vmem:[%s6 + $0x68] sm:$0xff]
        %v2846 = vld [vmem:[%s6 + $0x70] sm:$0xff]
        %v2847 = vld [vmem:[%s6 + $0x78] sm:$0xff]
        %v2848 = vld [vmem:[%s6 + $0x80] sm:$0xff]
        %v2849 = vld [vmem:[%s6 + $0x88] sm:$0xff]
        %v2850 = vld [vmem:[%s6 + $0x90] sm:$0xff]
        %v2851 = vld [vmem:[%s6 + $0x98] sm:$0xff]
        %v2852 = vld [vmem:[%s6 + $0xa0] sm:$0xff]
        %v2853 = vld [vmem:[%s6 + $0xa8] sm:$0xff]
        %v2854 = vld [vmem:[%s6 + $0xb0] sm:$0xff]
        %v2855 = vld [vmem:[%s6 + $0xb8] sm:$0xff]
        %v2856 = vld [vmem:[%s6 + $0xc0] sm:$0xff]
        %v2857 = vld [vmem:[%s6 + $0xc8] sm:$0xff]
        %v2858 = vld [vmem:[%s6 + $0xd0] sm:$0xff]
        %v2859 = vld [vmem:[%s6 + $0xd8] sm:$0xff]
        %v2860 = vld [vmem:[%s6 + $0xe0] sm:$0xff]
        %v2861 = vld [vmem:[%s6 + $0xe8] sm:$0xff]
        %v2862 = vld [vmem:[%s6 + $0xf0] sm:$0xff]
        %v2863 = vld [vmem:[%s6 + $0xf8] sm:$0xff]
        %v2864 = vld [vmem:[%s6 + $0x100] sm:$0xff]
        %v2865 = vld [vmem:[%s6 + $0x108] sm:$0xff]
        %v2866 = vld [vmem:[%s6 + $0x110] sm:$0xff]
        %v2867 = vld [vmem:[%s6 + $0x118] sm:$0xff]
        %v2868 = vld [vmem:[%s6 + $0x120] sm:$0xff]
        %v2869 = vld [vmem:[%s6 + $0x128] sm:$0xff]
        %v2870 = vld [vmem:[%s6 + $0x130] sm:$0xff]
        %v2871 = vld [vmem:[%s6 + $0x138] sm:$0xff]
        %v2872 = vld [vmem:[%s6 + $0x140] sm:$0xff]
        %v2873 = vld [vmem:[%s6 + $0x148] sm:$0xff]
        %v2874 = vld [vmem:[%s6 + $0x150] sm:$0xff]
        %v2875 = vld [vmem:[%s6 + $0x158] sm:$0xff]
        %v2876 = vld [vmem:[%s6 + $0x160] sm:$0xff]
        %v2877 = vld [vmem:[%s6 + $0x168] sm:$0xff]
        %v2878 = vld [vmem:[%s6 + $0x170] sm:$0xff]
        %v2879 = vld [vmem:[%s6 + $0x178] sm:$0xff]
        %v2880 = vld [vmem:[%s6 + $0x180] sm:$0xff]
        %v2881 = vld [vmem:[%s6 + $0x188] sm:$0xff]
        %v2882 = vld [vmem:[%s6 + $0x190] sm:$0xff]
        %v2883 = vld [vmem:[%s6 + $0x198] sm:$0xff]
        %v2884 = vld [vmem:[%s6 + $0x1a0] sm:$0xff]
        %v2885 = vld [vmem:[%s6 + $0x1a8] sm:$0xff]
        %v2886 = vld [vmem:[%s6 + $0x1b0] sm:$0xff]
        %v2887 = vld [vmem:[%s6 + $0x1b8] sm:$0xff]
        %v2888 = vld [vmem:[%s6 + $0x1c0] sm:$0xff]
        %v2889 = vld [vmem:[%s6 + $0x1c8] sm:$0xff]
        %v2890 = vld [vmem:[%s6 + $0x1d0] sm:$0xff]
        %v2891 = vld [vmem:[%s6 + $0x1d8] sm:$0xff]
        %v2892 = vld [vmem:[%s6 + $0x1e0] sm:$0xff]
        %v2893 = vld [vmem:[%s6 + $0x1e8] sm:$0xff]
        %v2894 = vld [vmem:[%s6 + $0x1f0] sm:$0xff]
        %v2895 = vld [vmem:[%s6 + $0x1f8] sm:$0xff]
        %v2896 = vld [vmem:[%s6 + $0x200] sm:$0xff]
        %v2897 = vld [vmem:[%s6 + $0x208] sm:$0xff]
        %v2898 = vld [vmem:[%s6 + $0x210] sm:$0xff]
        %v2899 = vld [vmem:[%s6 + $0x218] sm:$0xff]
        %v2900 = vld [vmem:[%s6 + $0x220] sm:$0xff]
        %v2901 = vld [vmem:[%s6 + $0x228] sm:$0xff]
        %v2902 = vld [vmem:[%s6 + $0x230] sm:$0xff]
        %v2903 = vld [vmem:[%s6 + $0x238] sm:$0xff]
        %v2904 = vld [vmem:[%s6 + $0x240] sm:$0xff]
        %v2905 = vld [vmem:[%s6 + $0x248] sm:$0xff]
        %v2906 = vld [vmem:[%s6 + $0x250] sm:$0xff]
        %v2907 = vld [vmem:[%s6 + $0x258] sm:$0xff]
        %v2908 = vld [vmem:[%s6 + $0x260] sm:$0xff]
        %v2909 = vld [vmem:[%s6 + $0x268] sm:$0xff]
        %v2910 = vld [vmem:[%s6 + $0x270] sm:$0xff]
        %v2911 = vld [vmem:[%s6 + $0x278] sm:$0xff]
        %v2912 = vld [vmem:[%s6 + $0x280] sm:$0xff]
        %v2913 = vld [vmem:[%s6 + $0x288] sm:$0xff]
        %v2914 = vld [vmem:[%s6 + $0x290] sm:$0xff]
        %v2915 = vld [vmem:[%s6 + $0x298] sm:$0xff]
        %v2916 = vld [vmem:[%s6 + $0x2a0] sm:$0xff]
        %v2917 = vld [vmem:[%s6 + $0x2a8] sm:$0xff]
        %v2918 = vld [vmem:[%s6 + $0x2b0] sm:$0xff]
        %v2919 = vld [vmem:[%s6 + $0x2b8] sm:$0xff]
        %v2920 = vld [vmem:[%s6 + $0x2c0] sm:$0xff]
        %v2921 = vld [vmem:[%s6 + $0x2c8] sm:$0xff]
        %v2922 = vld [vmem:[%s6 + $0x2d0] sm:$0xff]
        %v2923 = vld [vmem:[%s6 + $0x2d8] sm:$0xff]
        %v2924 = vld [vmem:[%s6 + $0x2e0] sm:$0xff]
        %v2925 = vld [vmem:[%s6 + $0x2e8] sm:$0xff]
        %v2926 = vld [vmem:[%s6 + $0x2f0] sm:$0xff]
        %v2927 = vld [vmem:[%s6 + $0x2f8] sm:$0xff]
        %v2928 = vld [vmem:[%s6 + $0x300] sm:$0xff]
        %v2929 = vld [vmem:[%s6 + $0x308] sm:$0xff]
        %v2930 = vld [vmem:[%s6 + $0x310] sm:$0xff]
        %v2931 = vld [vmem:[%s6 + $0x318] sm:$0xff]
        %v2932 = vld [vmem:[%s6 + $0x320] sm:$0xff]
        %v2933 = vld [vmem:[%s6 + $0x328] sm:$0xff]
        %v2934 = vld [vmem:[%s6 + $0x330] sm:$0xff]
        %v2935 = vld [vmem:[%s6 + $0x338] sm:$0xff]
        %v2936 = vld [vmem:[%s6 + $0x340] sm:$0xff]
        %v2937 = vld [vmem:[%s6 + $0x348] sm:$0xff]
        %v2938 = vld [vmem:[%s6 + $0x350] sm:$0xff]
        %v2939 = vld [vmem:[%s6 + $0x358] sm:$0xff]
        %v2940 = vld [vmem:[%s6 + $0x360] sm:$0xff]
        %v2941 = vld [vmem:[%s6 + $0x368] sm:$0xff]
        %v2942 = vld [vmem:[%s6 + $0x370] sm:$0xff]
        %v2943 = vld [vmem:[%s6 + $0x378] sm:$0xff]
        %v2944 = vld [vmem:[%s6 + $0x380] sm:$0xff]
        %v2945 = vld [vmem:[%s6 + $0x388] sm:$0xff]
        %v2946 = vld [vmem:[%s6 + $0x390] sm:$0xff]
        %v2947 = vld [vmem:[%s6 + $0x398] sm:$0xff]
        %v2948 = vld [vmem:[%s6 + $0x3a0] sm:$0xff]
        %v2949 = vld [vmem:[%s6 + $0x3a8] sm:$0xff]
        %v2950 = vld [vmem:[%s6 + $0x3b0] sm:$0xff]
        %v2951 = vld [vmem:[%s6 + $0x3b8] sm:$0xff]
        %v2952 = vld [vmem:[%s6 + $0x3c0] sm:$0xff]
        %v2953 = vld [vmem:[%s6 + $0x3c8] sm:$0xff]
        %v2954 = vld [vmem:[%s6 + $0x3d0] sm:$0xff]
        %v2955 = vld [vmem:[%s6 + $0x3d8] sm:$0xff]
        %v2956 = vld [vmem:[%s6 + $0x3e0] sm:$0xff]
        %v2957 = vld [vmem:[%s6 + $0x3e8] sm:$0xff]
        %v2958 = vld [vmem:[%s6 + $0x3f0] sm:$0xff]
        %v2959 = vld [vmem:[%s6 + $0x3f8] sm:$0xff]
        %v2960 = vadd.f32 %v2577, %v2832
        %v2961 = vadd.f32 %v2579, %v2833
        %v2962 = vadd.f32 %v2581, %v2834
        %v2963 = vadd.f32 %v2583, %v2835
        %v2964 = vadd.f32 %v2585, %v2836
        %v2965 = vadd.f32 %v2587, %v2837
        %v2966 = vadd.f32 %v2589, %v2838
        %v2967 = vadd.f32 %v2591, %v2839
        %v2968 = vadd.f32 %v2593, %v2840
        %v2969 = vadd.f32 %v2595, %v2841
        %v2970 = vadd.f32 %v2597, %v2842
        %v2971 = vadd.f32 %v2599, %v2843
        %v2972 = vadd.f32 %v2601, %v2844
        %v2973 = vadd.f32 %v2603, %v2845
        %v2974 = vadd.f32 %v2605, %v2846
        %v2975 = vadd.f32 %v2607, %v2847
        %v2976 = vadd.f32 %v2609, %v2848
        %v2977 = vadd.f32 %v2611, %v2849
        %v2978 = vadd.f32 %v2613, %v2850
        %v2979 = vadd.f32 %v2615, %v2851
        %v2980 = vadd.f32 %v2617, %v2852
        %v2981 = vadd.f32 %v2619, %v2853
        %v2982 = vadd.f32 %v2621, %v2854
        %v2983 = vadd.f32 %v2623, %v2855
        %v2984 = vadd.f32 %v2625, %v2856
        %v2985 = vadd.f32 %v2627, %v2857
        %v2986 = vadd.f32 %v2629, %v2858
        %v2987 = vadd.f32 %v2631, %v2859
        %v2988 = vadd.f32 %v2633, %v2860
        %v2989 = vadd.f32 %v2635, %v2861
        %v2990 = vadd.f32 %v2637, %v2862
        %v2991 = vadd.f32 %v2639, %v2863
        %v2992 = vadd.f32 %v2641, %v2864
        %v2993 = vadd.f32 %v2643, %v2865
        %v2994 = vadd.f32 %v2645, %v2866
        %v2995 = vadd.f32 %v2647, %v2867
        %v2996 = vadd.f32 %v2649, %v2868
        %v2997 = vadd.f32 %v2651, %v2869
        %v2998 = vadd.f32 %v2653, %v2870
        %v2999 = vadd.f32 %v2655, %v2871
        %v3000 = vadd.f32 %v2657, %v2872
        %v3001 = vadd.f32 %v2659, %v2873
        %v3002 = vadd.f32 %v2661, %v2874
        %v3003 = vadd.f32 %v2663, %v2875
        %v3004 = vadd.f32 %v2665, %v2876
        %v3005 = vadd.f32 %v2667, %v2877
        %v3006 = vadd.f32 %v2669, %v2878
        %v3007 = vadd.f32 %v2671, %v2879
        %v3008 = vadd.f32 %v2673, %v2880
        %v3009 = vadd.f32 %v2675, %v2881
        %v3010 = vadd.f32 %v2677, %v2882
        %v3011 = vadd.f32 %v2679, %v2883
        %v3012 = vadd.f32 %v2681, %v2884
        %v3013 = vadd.f32 %v2683, %v2885
        %v3014 = vadd.f32 %v2685, %v2886
        %v3015 = vadd.f32 %v2687, %v2887
        %v3016 = vadd.f32 %v2689, %v2888
        %v3017 = vadd.f32 %v2691, %v2889
        %v3018 = vadd.f32 %v2693, %v2890
        %v3019 = vadd.f32 %v2695, %v2891
        %v3020 = vadd.f32 %v2697, %v2892
        %v3021 = vadd.f32 %v2699, %v2893
        %v3022 = vadd.f32 %v2701, %v2894
        %v3023 = vadd.f32 %v2703, %v2895
        %v3024 = vadd.f32 %v2705, %v2896
        %v3025 = vadd.f32 %v2707, %v2897
        %v3026 = vadd.f32 %v2709, %v2898
        %v3027 = vadd.f32 %v2711, %v2899
        %v3028 = vadd.f32 %v2713, %v2900
        %v3029 = vadd.f32 %v2715, %v2901
        %v3030 = vadd.f32 %v2717, %v2902
        %v3031 = vadd.f32 %v2719, %v2903
        %v3032 = vadd.f32 %v2721, %v2904
        %v3033 = vadd.f32 %v2723, %v2905
        %v3034 = vadd.f32 %v2725, %v2906
        %v3035 = vadd.f32 %v2727, %v2907
        %v3036 = vadd.f32 %v2729, %v2908
        %v3037 = vadd.f32 %v2731, %v2909
        %v3038 = vadd.f32 %v2733, %v2910
        %v3039 = vadd.f32 %v2735, %v2911
        %v3040 = vadd.f32 %v2737, %v2912
        %v3041 = vadd.f32 %v2739, %v2913
        %v3042 = vadd.f32 %v2741, %v2914
        %v3043 = vadd.f32 %v2743, %v2915
        %v3044 = vadd.f32 %v2745, %v2916
        %v3045 = vadd.f32 %v2747, %v2917
        %v3046 = vadd.f32 %v2749, %v2918
        %v3047 = vadd.f32 %v2751, %v2919
        %v3048 = vadd.f32 %v2753, %v2920
        %v3049 = vadd.f32 %v2755, %v2921
        %v3050 = vadd.f32 %v2757, %v2922
        %v3051 = vadd.f32 %v2759, %v2923
        %v3052 = vadd.f32 %v2761, %v2924
        %v3053 = vadd.f32 %v2763, %v2925
        %v3054 = vadd.f32 %v2765, %v2926
        %v3055 = vadd.f32 %v2767, %v2927
        %v3056 = vadd.f32 %v2769, %v2928
        %v3057 = vadd.f32 %v2771, %v2929
        %v3058 = vadd.f32 %v2773, %v2930
        %v3059 = vadd.f32 %v2775, %v2931
        %v3060 = vadd.f32 %v2777, %v2932
        %v3061 = vadd.f32 %v2779, %v2933
        %v3062 = vadd.f32 %v2781, %v2934
        %v3063 = vadd.f32 %v2783, %v2935
        %v3064 = vadd.f32 %v2785, %v2936
        %v3065 = vadd.f32 %v2787, %v2937
        %v3066 = vadd.f32 %v2789, %v2938
        %v3067 = vadd.f32 %v2791, %v2939
        %v3068 = vadd.f32 %v2793, %v2940
        %v3069 = vadd.f32 %v2795, %v2941
        %v3070 = vadd.f32 %v2797, %v2942
        %v3071 = vadd.f32 %v2799, %v2943
        %v3072 = vadd.f32 %v2801, %v2944
        %v3073 = vadd.f32 %v2803, %v2945
        %v3074 = vadd.f32 %v2805, %v2946
        %v3075 = vadd.f32 %v2807, %v2947
        %v3076 = vadd.f32 %v2809, %v2948
        %v3077 = vadd.f32 %v2811, %v2949
        %v3078 = vadd.f32 %v2813, %v2950
        %v3079 = vadd.f32 %v2815, %v2951
        %v3080 = vadd.f32 %v2817, %v2952
        %v3081 = vadd.f32 %v2819, %v2953
        %v3082 = vadd.f32 %v2821, %v2954
        %v3083 = vadd.f32 %v2823, %v2955
        %v3084 = vadd.f32 %v2825, %v2956
        %v3085 = vadd.f32 %v2827, %v2957
        %v3086 = vadd.f32 %v2829, %v2958
        %v3087 = vadd.f32 %v2831, %v2959
        %v3088 = vmax.f32 %v2960, 0.0
        %v3089 = vmax.f32 %v2961, 0.0
        %v3090 = vmax.f32 %v2962, 0.0
        %v3091 = vmax.f32 %v2963, 0.0
        %v3092 = vmax.f32 %v2964, 0.0
        %v3093 = vmax.f32 %v2965, 0.0
        %v3094 = vmax.f32 %v2966, 0.0
        %v3095 = vmax.f32 %v2967, 0.0
        %v3096 = vmax.f32 %v2968, 0.0
        %v3097 = vmax.f32 %v2969, 0.0
        %v3098 = vmax.f32 %v2970, 0.0
        %v3099 = vmax.f32 %v2971, 0.0
        %v3100 = vmax.f32 %v2972, 0.0
        %v3101 = vmax.f32 %v2973, 0.0
        %v3102 = vmax.f32 %v2974, 0.0
        %v3103 = vmax.f32 %v2975, 0.0
        %v3104 = vmax.f32 %v2976, 0.0
        %v3105 = vmax.f32 %v2977, 0.0
        %v3106 = vmax.f32 %v2978, 0.0
        %v3107 = vmax.f32 %v2979, 0.0
        %v3108 = vmax.f32 %v2980, 0.0
        %v3109 = vmax.f32 %v2981, 0.0
        %v3110 = vmax.f32 %v2982, 0.0
        %v3111 = vmax.f32 %v2983, 0.0
        %v3112 = vmax.f32 %v2984, 0.0
        %v3113 = vmax.f32 %v2985, 0.0
        %v3114 = vmax.f32 %v2986, 0.0
        %v3115 = vmax.f32 %v2987, 0.0
        %v3116 = vmax.f32 %v2988, 0.0
        %v3117 = vmax.f32 %v2989, 0.0
        %v3118 = vmax.f32 %v2990, 0.0
        %v3119 = vmax.f32 %v2991, 0.0
        %v3120 = vmax.f32 %v2992, 0.0
        %v3121 = vmax.f32 %v2993, 0.0
        %v3122 = vmax.f32 %v2994, 0.0
        %v3123 = vmax.f32 %v2995, 0.0
        %v3124 = vmax.f32 %v2996, 0.0
        %v3125 = vmax.f32 %v2997, 0.0
        %v3126 = vmax.f32 %v2998, 0.0
        %v3127 = vmax.f32 %v2999, 0.0
        %v3128 = vmax.f32 %v3000, 0.0
        %v3129 = vmax.f32 %v3001, 0.0
        %v3130 = vmax.f32 %v3002, 0.0
        %v3131 = vmax.f32 %v3003, 0.0
        %v3132 = vmax.f32 %v3004, 0.0
        %v3133 = vmax.f32 %v3005, 0.0
        %v3134 = vmax.f32 %v3006, 0.0
        %v3135 = vmax.f32 %v3007, 0.0
        %v3136 = vmax.f32 %v3008, 0.0
        %v3137 = vmax.f32 %v3009, 0.0
        %v3138 = vmax.f32 %v3010, 0.0
        %v3139 = vmax.f32 %v3011, 0.0
        %v3140 = vmax.f32 %v3012, 0.0
        %v3141 = vmax.f32 %v3013, 0.0
        %v3142 = vmax.f32 %v3014, 0.0
        %v3143 = vmax.f32 %v3015, 0.0
        %v3144 = vmax.f32 %v3016, 0.0
        %v3145 = vmax.f32 %v3017, 0.0
        %v3146 = vmax.f32 %v3018, 0.0
        %v3147 = vmax.f32 %v3019, 0.0
        %v3148 = vmax.f32 %v3020, 0.0
        %v3149 = vmax.f32 %v3021, 0.0
        %v3150 = vmax.f32 %v3022, 0.0
        %v3151 = vmax.f32 %v3023, 0.0
        %v3152 = vmax.f32 %v3024, 0.0
        %v3153 = vmax.f32 %v3025, 0.0
        %v3154 = vmax.f32 %v3026, 0.0
        %v3155 = vmax.f32 %v3027, 0.0
        %v3156 = vmax.f32 %v3028, 0.0
        %v3157 = vmax.f32 %v3029, 0.0
        %v3158 = vmax.f32 %v3030, 0.0
        %v3159 = vmax.f32 %v3031, 0.0
        %v3160 = vmax.f32 %v3032, 0.0
        %v3161 = vmax.f32 %v3033, 0.0
        %v3162 = vmax.f32 %v3034, 0.0
        %v3163 = vmax.f32 %v3035, 0.0
        %v3164 = vmax.f32 %v3036, 0.0
        %v3165 = vmax.f32 %v3037, 0.0
        %v3166 = vmax.f32 %v3038, 0.0
        %v3167 = vmax.f32 %v3039, 0.0
        %v3168 = vmax.f32 %v3040, 0.0
        %v3169 = vmax.f32 %v3041, 0.0
        %v3170 = vmax.f32 %v3042, 0.0
        %v3171 = vmax.f32 %v3043, 0.0
        %v3172 = vmax.f32 %v3044, 0.0
        %v3173 = vmax.f32 %v3045, 0.0
        %v3174 = vmax.f32 %v3046, 0.0
        %v3175 = vmax.f32 %v3047, 0.0
        %v3176 = vmax.f32 %v3048, 0.0
        %v3177 = vmax.f32 %v3049, 0.0
        %v3178 = vmax.f32 %v3050, 0.0
        %v3179 = vmax.f32 %v3051, 0.0
        %v3180 = vmax.f32 %v3052, 0.0
        %v3181 = vmax.f32 %v3053, 0.0
        %v3182 = vmax.f32 %v3054, 0.0
        %v3183 = vmax.f32 %v3055, 0.0
        %v3184 = vmax.f32 %v3056, 0.0
        %v3185 = vmax.f32 %v3057, 0.0
        %v3186 = vmax.f32 %v3058, 0.0
        %v3187 = vmax.f32 %v3059, 0.0
        %v3188 = vmax.f32 %v3060, 0.0
        %v3189 = vmax.f32 %v3061, 0.0
        %v3190 = vmax.f32 %v3062, 0.0
        %v3191 = vmax.f32 %v3063, 0.0
        %v3192 = vmax.f32 %v3064, 0.0
        %v3193 = vmax.f32 %v3065, 0.0
        %v3194 = vmax.f32 %v3066, 0.0
        %v3195 = vmax.f32 %v3067, 0.0
        %v3196 = vmax.f32 %v3068, 0.0
        %v3197 = vmax.f32 %v3069, 0.0
        %v3198 = vmax.f32 %v3070, 0.0
        %v3199 = vmax.f32 %v3071, 0.0
        %v3200 = vmax.f32 %v3072, 0.0
        %v3201 = vmax.f32 %v3073, 0.0
        %v3202 = vmax.f32 %v3074, 0.0
        %v3203 = vmax.f32 %v3075, 0.0
        %v3204 = vmax.f32 %v3076, 0.0
        %v3205 = vmax.f32 %v3077, 0.0
        %v3206 = vmax.f32 %v3078, 0.0
        %v3207 = vmax.f32 %v3079, 0.0
        %v3208 = vmax.f32 %v3080, 0.0
        %v3209 = vmax.f32 %v3081, 0.0
        %v3210 = vmax.f32 %v3082, 0.0
        %v3211 = vmax.f32 %v3083, 0.0
        %v3212 = vmax.f32 %v3084, 0.0
        %v3213 = vmax.f32 %v3085, 0.0
        %v3214 = vmax.f32 %v3086, 0.0
        %v3215 = vmax.f32 %v3087, 0.0
        %vm3216 = vcmask 7168
        %3217 = vst.msk [vmem:[%s298] sm:$0xff] %vm3216, %v3088
        %3218 = vst.msk [vmem:[%s298 + $0x8] sm:$0xff] %vm3216, %v3089
        %3219 = vst.msk [vmem:[%s298 + $0x10] sm:$0xff] %vm3216, %v3090
        %3220 = vst.msk [vmem:[%s298 + $0x18] sm:$0xff] %vm3216, %v3091
        %3221 = vst.msk [vmem:[%s298 + $0x20] sm:$0xff] %vm3216, %v3092
        %3222 = vst.msk [vmem:[%s298 + $0x28] sm:$0xff] %vm3216, %v3093
        %3223 = vst.msk [vmem:[%s298 + $0x30] sm:$0xff] %vm3216, %v3094
        %3224 = vst.msk [vmem:[%s298 + $0x38] sm:$0xff] %vm3216, %v3095
        %3225 = vst.msk [vmem:[%s298 + $0x40] sm:$0xff] %vm3216, %v3096
        %3226 = vst.msk [vmem:[%s298 + $0x48] sm:$0xff] %vm3216, %v3097
        %3227 = vst.msk [vmem:[%s298 + $0x50] sm:$0xff] %vm3216, %v3098
        %3228 = vst.msk [vmem:[%s298 + $0x58] sm:$0xff] %vm3216, %v3099
        %3229 = vst.msk [vmem:[%s298 + $0x60] sm:$0xff] %vm3216, %v3100
        %3230 = vst.msk [vmem:[%s298 + $0x68] sm:$0xff] %vm3216, %v3101
        %3231 = vst.msk [vmem:[%s298 + $0x70] sm:$0xff] %vm3216, %v3102
        %3232 = vst.msk [vmem:[%s298 + $0x78] sm:$0xff] %vm3216, %v3103
        %3233 = vst.msk [vmem:[%s298 + $0x80] sm:$0xff] %vm3216, %v3104
        %3234 = vst.msk [vmem:[%s298 + $0x88] sm:$0xff] %vm3216, %v3105
        %3235 = vst.msk [vmem:[%s298 + $0x90] sm:$0xff] %vm3216, %v3106
        %3236 = vst.msk [vmem:[%s298 + $0x98] sm:$0xff] %vm3216, %v3107
        %3237 = vst.msk [vmem:[%s298 + $0xa0] sm:$0xff] %vm3216, %v3108
        %3238 = vst.msk [vmem:[%s298 + $0xa8] sm:$0xff] %vm3216, %v3109
        %3239 = vst.msk [vmem:[%s298 + $0xb0] sm:$0xff] %vm3216, %v3110
        %3240 = vst.msk [vmem:[%s298 + $0xb8] sm:$0xff] %vm3216, %v3111
        %3241 = vst.msk [vmem:[%s298 + $0xc0] sm:$0xff] %vm3216, %v3112
        %3242 = vst.msk [vmem:[%s298 + $0xc8] sm:$0xff] %vm3216, %v3113
        %3243 = vst.msk [vmem:[%s298 + $0xd0] sm:$0xff] %vm3216, %v3114
        %3244 = vst.msk [vmem:[%s298 + $0xd8] sm:$0xff] %vm3216, %v3115
        %3245 = vst.msk [vmem:[%s298 + $0xe0] sm:$0xff] %vm3216, %v3116
        %3246 = vst.msk [vmem:[%s298 + $0xe8] sm:$0xff] %vm3216, %v3117
        %3247 = vst.msk [vmem:[%s298 + $0xf0] sm:$0xff] %vm3216, %v3118
        %3248 = vst.msk [vmem:[%s298 + $0xf8] sm:$0xff] %vm3216, %v3119
        %3249 = vst.msk [vmem:[%s298 + $0x100] sm:$0xff] %vm3216, %v3120
        %3250 = vst.msk [vmem:[%s298 + $0x108] sm:$0xff] %vm3216, %v3121
        %3251 = vst.msk [vmem:[%s298 + $0x110] sm:$0xff] %vm3216, %v3122
        %3252 = vst.msk [vmem:[%s298 + $0x118] sm:$0xff] %vm3216, %v3123
        %3253 = vst.msk [vmem:[%s298 + $0x120] sm:$0xff] %vm3216, %v3124
        %3254 = vst.msk [vmem:[%s298 + $0x128] sm:$0xff] %vm3216, %v3125
        %3255 = vst.msk [vmem:[%s298 + $0x130] sm:$0xff] %vm3216, %v3126
        %3256 = vst.msk [vmem:[%s298 + $0x138] sm:$0xff] %vm3216, %v3127
        %3257 = vst.msk [vmem:[%s298 + $0x140] sm:$0xff] %vm3216, %v3128
        %3258 = vst.msk [vmem:[%s298 + $0x148] sm:$0xff] %vm3216, %v3129
        %3259 = vst.msk [vmem:[%s298 + $0x150] sm:$0xff] %vm3216, %v3130
        %3260 = vst.msk [vmem:[%s298 + $0x158] sm:$0xff] %vm3216, %v3131
        %3261 = vst.msk [vmem:[%s298 + $0x160] sm:$0xff] %vm3216, %v3132
        %3262 = vst.msk [vmem:[%s298 + $0x168] sm:$0xff] %vm3216, %v3133
        %3263 = vst.msk [vmem:[%s298 + $0x170] sm:$0xff] %vm3216, %v3134
        %3264 = vst.msk [vmem:[%s298 + $0x178] sm:$0xff] %vm3216, %v3135
        %3265 = vst.msk [vmem:[%s298 + $0x180] sm:$0xff] %vm3216, %v3136
        %3266 = vst.msk [vmem:[%s298 + $0x188] sm:$0xff] %vm3216, %v3137
        %3267 = vst.msk [vmem:[%s298 + $0x190] sm:$0xff] %vm3216, %v3138
        %3268 = vst.msk [vmem:[%s298 + $0x198] sm:$0xff] %vm3216, %v3139
        %3269 = vst.msk [vmem:[%s298 + $0x1a0] sm:$0xff] %vm3216, %v3140
        %3270 = vst.msk [vmem:[%s298 + $0x1a8] sm:$0xff] %vm3216, %v3141
        %3271 = vst.msk [vmem:[%s298 + $0x1b0] sm:$0xff] %vm3216, %v3142
        %3272 = vst.msk [vmem:[%s298 + $0x1b8] sm:$0xff] %vm3216, %v3143
        %3273 = vst.msk [vmem:[%s298 + $0x1c0] sm:$0xff] %vm3216, %v3144
        %3274 = vst.msk [vmem:[%s298 + $0x1c8] sm:$0xff] %vm3216, %v3145
        %3275 = vst.msk [vmem:[%s298 + $0x1d0] sm:$0xff] %vm3216, %v3146
        %3276 = vst.msk [vmem:[%s298 + $0x1d8] sm:$0xff] %vm3216, %v3147
        %3277 = vst.msk [vmem:[%s298 + $0x1e0] sm:$0xff] %vm3216, %v3148
        %3278 = vst.msk [vmem:[%s298 + $0x1e8] sm:$0xff] %vm3216, %v3149
        %3279 = vst.msk [vmem:[%s298 + $0x1f0] sm:$0xff] %vm3216, %v3150
        %3280 = vst.msk [vmem:[%s298 + $0x1f8] sm:$0xff] %vm3216, %v3151
        %3281 = vst.msk [vmem:[%s298 + $0x200] sm:$0xff] %vm3216, %v3152
        %3282 = vst.msk [vmem:[%s298 + $0x208] sm:$0xff] %vm3216, %v3153
        %3283 = vst.msk [vmem:[%s298 + $0x210] sm:$0xff] %vm3216, %v3154
        %3284 = vst.msk [vmem:[%s298 + $0x218] sm:$0xff] %vm3216, %v3155
        %3285 = vst.msk [vmem:[%s298 + $0x220] sm:$0xff] %vm3216, %v3156
        %3286 = vst.msk [vmem:[%s298 + $0x228] sm:$0xff] %vm3216, %v3157
        %3287 = vst.msk [vmem:[%s298 + $0x230] sm:$0xff] %vm3216, %v3158
        %3288 = vst.msk [vmem:[%s298 + $0x238] sm:$0xff] %vm3216, %v3159
        %3289 = vst.msk [vmem:[%s298 + $0x240] sm:$0xff] %vm3216, %v3160
        %3290 = vst.msk [vmem:[%s298 + $0x248] sm:$0xff] %vm3216, %v3161
        %3291 = vst.msk [vmem:[%s298 + $0x250] sm:$0xff] %vm3216, %v3162
        %3292 = vst.msk [vmem:[%s298 + $0x258] sm:$0xff] %vm3216, %v3163
        %3293 = vst.msk [vmem:[%s298 + $0x260] sm:$0xff] %vm3216, %v3164
        %3294 = vst.msk [vmem:[%s298 + $0x268] sm:$0xff] %vm3216, %v3165
        %3295 = vst.msk [vmem:[%s298 + $0x270] sm:$0xff] %vm3216, %v3166
        %3296 = vst.msk [vmem:[%s298 + $0x278] sm:$0xff] %vm3216, %v3167
        %3297 = vst.msk [vmem:[%s298 + $0x280] sm:$0xff] %vm3216, %v3168
        %3298 = vst.msk [vmem:[%s298 + $0x288] sm:$0xff] %vm3216, %v3169
        %3299 = vst.msk [vmem:[%s298 + $0x290] sm:$0xff] %vm3216, %v3170
        %3300 = vst.msk [vmem:[%s298 + $0x298] sm:$0xff] %vm3216, %v3171
        %3301 = vst.msk [vmem:[%s298 + $0x2a0] sm:$0xff] %vm3216, %v3172
        %3302 = vst.msk [vmem:[%s298 + $0x2a8] sm:$0xff] %vm3216, %v3173
        %3303 = vst.msk [vmem:[%s298 + $0x2b0] sm:$0xff] %vm3216, %v3174
        %3304 = vst.msk [vmem:[%s298 + $0x2b8] sm:$0xff] %vm3216, %v3175
        %3305 = vst.msk [vmem:[%s298 + $0x2c0] sm:$0xff] %vm3216, %v3176
        %3306 = vst.msk [vmem:[%s298 + $0x2c8] sm:$0xff] %vm3216, %v3177
        %3307 = vst.msk [vmem:[%s298 + $0x2d0] sm:$0xff] %vm3216, %v3178
        %3308 = vst.msk [vmem:[%s298 + $0x2d8] sm:$0xff] %vm3216, %v3179
        %3309 = vst.msk [vmem:[%s298 + $0x2e0] sm:$0xff] %vm3216, %v3180
        %3310 = vst.msk [vmem:[%s298 + $0x2e8] sm:$0xff] %vm3216, %v3181
        %3311 = vst.msk [vmem:[%s298 + $0x2f0] sm:$0xff] %vm3216, %v3182
        %3312 = vst.msk [vmem:[%s298 + $0x2f8] sm:$0xff] %vm3216, %v3183
        %3313 = vst.msk [vmem:[%s298 + $0x300] sm:$0xff] %vm3216, %v3184
        %3314 = vst.msk [vmem:[%s298 + $0x308] sm:$0xff] %vm3216, %v3185
        %3315 = vst.msk [vmem:[%s298 + $0x310] sm:$0xff] %vm3216, %v3186
        %3316 = vst.msk [vmem:[%s298 + $0x318] sm:$0xff] %vm3216, %v3187
        %3317 = vst.msk [vmem:[%s298 + $0x320] sm:$0xff] %vm3216, %v3188
        %3318 = vst.msk [vmem:[%s298 + $0x328] sm:$0xff] %vm3216, %v3189
        %3319 = vst.msk [vmem:[%s298 + $0x330] sm:$0xff] %vm3216, %v3190
        %3320 = vst.msk [vmem:[%s298 + $0x338] sm:$0xff] %vm3216, %v3191
        %3321 = vst.msk [vmem:[%s298 + $0x340] sm:$0xff] %vm3216, %v3192
        %3322 = vst.msk [vmem:[%s298 + $0x348] sm:$0xff] %vm3216, %v3193
        %3323 = vst.msk [vmem:[%s298 + $0x350] sm:$0xff] %vm3216, %v3194
        %3324 = vst.msk [vmem:[%s298 + $0x358] sm:$0xff] %vm3216, %v3195
        %3325 = vst.msk [vmem:[%s298 + $0x360] sm:$0xff] %vm3216, %v3196
        %3326 = vst.msk [vmem:[%s298 + $0x368] sm:$0xff] %vm3216, %v3197
        %3327 = vst.msk [vmem:[%s298 + $0x370] sm:$0xff] %vm3216, %v3198
        %3328 = vst.msk [vmem:[%s298 + $0x378] sm:$0xff] %vm3216, %v3199
        %3329 = vst.msk [vmem:[%s298 + $0x380] sm:$0xff] %vm3216, %v3200
        %3330 = vst.msk [vmem:[%s298 + $0x388] sm:$0xff] %vm3216, %v3201
        %3331 = vst.msk [vmem:[%s298 + $0x390] sm:$0xff] %vm3216, %v3202
        %3332 = vst.msk [vmem:[%s298 + $0x398] sm:$0xff] %vm3216, %v3203
        %3333 = vst.msk [vmem:[%s298 + $0x3a0] sm:$0xff] %vm3216, %v3204
        %3334 = vst.msk [vmem:[%s298 + $0x3a8] sm:$0xff] %vm3216, %v3205
        %3335 = vst.msk [vmem:[%s298 + $0x3b0] sm:$0xff] %vm3216, %v3206
        %3336 = vst.msk [vmem:[%s298 + $0x3b8] sm:$0xff] %vm3216, %v3207
        %3337 = vst.msk [vmem:[%s298 + $0x3c0] sm:$0xff] %vm3216, %v3208
        %3338 = vst.msk [vmem:[%s298 + $0x3c8] sm:$0xff] %vm3216, %v3209
        %3339 = vst.msk [vmem:[%s298 + $0x3d0] sm:$0xff] %vm3216, %v3210
        %3340 = vst.msk [vmem:[%s298 + $0x3d8] sm:$0xff] %vm3216, %v3211
        %3341 = vst.msk [vmem:[%s298 + $0x3e0] sm:$0xff] %vm3216, %v3212
        %3342 = vst.msk [vmem:[%s298 + $0x3e8] sm:$0xff] %vm3216, %v3213
        %3343 = vst.msk [vmem:[%s298 + $0x3f0] sm:$0xff] %vm3216, %v3214
        %3344 = vst.msk [vmem:[%s298 + $0x3f8] sm:$0xff] %vm3216, %v3215
      $region56: #{tpu_custom_call.1} parent=47 // pred_fallthru
        _
      %p3345 = scmp.lt.s32.totalorder %s22, 1
      %s3346 = scalar_select %p3345, %s22, 1
      %s3347 = smul.addr %s3346, 128
      %s3348 = smul.addr %s3347, 8
      %s3349 = scalar_lea.vmem %s7, %s3348
      // Predicated region
      $region57: #{tpu_custom_call.1} parent=47 // pred_check
        %p3350 = pneg %p202
      $region58: #{tpu_custom_call.1} parent=47 // pred_check_branch
        %3352 = sbr.rel (%p3350) target = $region60
      $region59: #{tpu_custom_call.1} parent=47 // pred_region
        _
      $region60: #{tpu_custom_call.1} parent=47 // pred_fallthru
        _
    $region48: #{tpu_custom_call.1} parent=5 // pred_fallthru
      _
    %p3353 = scmp.le.s32.totalorder 2, %s13
    // Predicated region
    $region61: #{tpu_custom_call.1} parent=5 // pred_check
      %p3354 = pneg %p3353
    $region62: #{tpu_custom_call.1} parent=5 // pred_check_branch
      %3356 = sbr.rel (%p3354) target = $region64
    $region63: #{tpu_custom_call.1} parent=5 // pred_region
      %s3357 = ssub.s32 %s13, 2
      // Predicated region
      $region65: #{tpu_custom_call.1} parent=63 // pred_check
        %p3358 = pneg %p208
      $region66: #{tpu_custom_call.1} parent=63 // pred_check_branch
        %3360 = sbr.rel (%p3358) target = $region68
      $region67: #{tpu_custom_call.1} parent=63 // pred_region
        %p3361 = scmp.lt.s32.totalorder %s24, 1
        %s3362 = scalar_select %p3361, %s24, 1
        %s3363 = smul.addr %s3362, 128
        %s3364 = smul.addr %s3363, 8
        %s3365 = scalar_lea.vmem %s7, %s3364
      $region68: #{tpu_custom_call.1} parent=63 // pred_fallthru
        _
    $region64: #{tpu_custom_call.1} parent=5 // pred_fallthru
      _
  $region6: #{tpu_custom_call.1} parent=0 // loop_footer
    %s17 = sadd.s32 1, %s13
  $region7: #{tpu_custom_call.1} parent=0 // loop_footer_branch
    %12 = sbr.rel target = $region3
  $region8: #{tpu_custom_call.1} parent=0 // loop_exit
    _

</llo_original>
